<compile_context>
chip_gen: v6e
topology: v6e:2x2x1
jax: 0.10.0
libtpu: 0.0.40
codegen_flags: <defaults>
</compile_context>

<pallas_src>
import math

import jax
import jax.numpy as jnp
from jax import lax
from jax.experimental import pallas as pl
from jax.experimental.pallas import tpu as pltpu

BN_EPS = 0.8          # nn.BatchNorm1d(out_feat, 0.8) -> eps = 0.8
LEAKY_SLOPE = 0.2

LATENT_DIM = 128                    # opt.latent_dim (== Generator.Embeddedsize)
IMG_SHAPE = (1, 32, 32)             # (opt.channels, opt.img_size, opt.img_size)
IMG_DIM = IMG_SHAPE[0] * IMG_SHAPE[1] * IMG_SHAPE[2]   # 1024 -> lane-dense output

LAYER_SIZES = (LATENT_DIM, 128, 256, 512, 1024, IMG_DIM)
VEC_COLS = max(LAYER_SIZES[1:])     # 1024, lane-dense (multiple of 128)

# rows of the packed vector slab: (row, name, length)
_VEC_ROWS = (
    ("b1", LAYER_SIZES[1]),
    ("g2", LAYER_SIZES[2]), ("be2", LAYER_SIZES[2]),
    ("g3", LAYER_SIZES[3]), ("be3", LAYER_SIZES[3]),
    ("g4", LAYER_SIZES[4]), ("be4", LAYER_SIZES[4]),
    ("b5", LAYER_SIZES[5]),
)


# ----------------------------- Pallas kernel ------------------------------- #

def _leaky_relu(x):
    # slope < 1  =>  LeakyReLU == max(x, slope*x); single VALU op per vreg.
    return jnp.maximum(x, LEAKY_SLOPE * x)


def _bn_train(x, gamma, beta):
    """BatchNorm1d, training mode: biased batch statistics over rows (f32)."""
    m = x.shape[0]
    mean = jnp.sum(x, axis=0, keepdims=True) * (1.0 / m)
    c = x - mean
    var = jnp.sum(c * c, axis=0, keepdims=True) * (1.0 / m)
    return c * lax.rsqrt(var + BN_EPS) * gamma + beta


def _generator_kernel(z_ref, vec_ref, w1_ref, w2_ref, w3_ref, w4_hbm, w5_hbm,
                      o_ref, w4_buf, w5_buf, sem):
    """Whole generator in one launch: 5 MXU matmuls (bf16 in / f32 acc) with the
    BatchNorm + LeakyReLU and bias + tanh epilogues fused on the VPU/EUP.  The
    two big weights are DMA'd HBM->VMEM manually so the copies overlap layers
    1-3 compute (P4-style)."""
    # Kick off the large weight DMAs immediately.
    cp4 = pltpu.make_async_copy(w4_hbm, w4_buf, sem.at[0])
    cp5 = pltpu.make_async_copy(w5_hbm, w5_buf, sem.at[1])
    cp4.start()
    cp5.start()

    # Static slices of the packed vector slab (all lane counts are x128).
    b1 = vec_ref[0:1, :LAYER_SIZES[1]]
    g2, be2 = vec_ref[1:2, :LAYER_SIZES[2]], vec_ref[2:3, :LAYER_SIZES[2]]
    g3, be3 = vec_ref[3:4, :LAYER_SIZES[3]], vec_ref[4:5, :LAYER_SIZES[3]]
    g4, be4 = vec_ref[5:6, :LAYER_SIZES[4]], vec_ref[6:7, :LAYER_SIZES[4]]
    b5 = vec_ref[7:8, :LAYER_SIZES[5]]

    # block(latent, 128, normalize=False)
    h = jnp.dot(z_ref[...].astype(jnp.bfloat16), w1_ref[...],
                preferred_element_type=jnp.float32)
    h = _leaky_relu(h + b1)

    # block(128, 256)   (linear bias dropped: cancelled by BN mean subtraction)
    h = jnp.dot(h.astype(jnp.bfloat16), w2_ref[...],
                preferred_element_type=jnp.float32)
    h = _leaky_relu(_bn_train(h, g2, be2))

    # block(256, 512)
    h = jnp.dot(h.astype(jnp.bfloat16), w3_ref[...],
                preferred_element_type=jnp.float32)
    h = _leaky_relu(_bn_train(h, g3, be3))

    # block(512, 1024)  -- w4 arrives via the overlapped DMA
    cp4.wait()
    h = jnp.dot(h.astype(jnp.bfloat16), w4_buf[...],
                preferred_element_type=jnp.float32)
    h = _leaky_relu(_bn_train(h, g4, be4))

    # Linear(1024, prod(img_shape)) -> Tanh   (IMG_DIM % 128 == 0: lane-dense)
    cp5.wait()
    h = jnp.dot(h.astype(jnp.bfloat16), w5_buf[...],
                preferred_element_type=jnp.float32)
    o_ref[...] = jnp.tanh(h + b5)


# ------------------------------- wrapper ------------------------------------ #

def prepare_params(params):
    """One-time conversion: weights -> bf16, small vectors packed into one slab.
    Do this once (at init / first call), NOT per forward call."""
    prep = {f"w{i}": params[f"w{i}"].astype(jnp.bfloat16) for i in range(1, 6)}
    vec = jnp.zeros((len(_VEC_ROWS), VEC_COLS), jnp.float32)
    for r, (name, n) in enumerate(_VEC_ROWS):
        vec = vec.at[r, :n].set(params[name].astype(jnp.float32))
    prep["vec"] = vec
    return prep


def generator_forward(prep, z):
    """z: (B, latent_dim) float32 -> img: (B, *IMG_SHAPE) float32."""
    B = z.shape[0]
    vmem = pl.BlockSpec(memory_space=pltpu.MemorySpace.VMEM)
    any_spec = pl.BlockSpec(memory_space=pl.ANY)   # stay in HBM; manual DMA in-kernel

    out = pl.pallas_call(
        _generator_kernel,
        out_shape=jax.ShapeDtypeStruct((B, IMG_DIM), jnp.float32),
        in_specs=[vmem, vmem, vmem, vmem, vmem, any_spec, any_spec],
        out_specs=vmem,
        scratch_shapes=[
            pltpu.VMEM((LAYER_SIZES[3], LAYER_SIZES[4]), jnp.bfloat16),  # w4 buf
            pltpu.VMEM((LAYER_SIZES[4], LAYER_SIZES[5]), jnp.bfloat16),  # w5 buf
            pltpu.SemaphoreType.DMA((2,)),
        ],
        compiler_params=pltpu.CompilerParams(vmem_limit_bytes=8 * 1024 * 1024),
    )(z, prep["vec"], prep["w1"], prep["w2"], prep["w3"], prep["w4"], prep["w5"])
    return out.reshape(B, *IMG_SHAPE)          # torch .view(B, *img_shape)


# --------------------------- parameters (PyTorch-like init) ----------------- #

def init_params(key):
    keys = jax.random.split(key, 2 * (len(LAYER_SIZES) - 1))
    params = {}
    k = 0
    for i, (fin, fout) in enumerate(zip(LAYER_SIZES[:-1], LAYER_SIZES[1:]), start=1):
        bound = 1.0 / math.sqrt(fin)   # matches nn.Linear default init bounds
        params[f"w{i}"] = jax.random.uniform(keys[k], (fin, fout), jnp.float32,
                                             -bound, bound); k += 1
        params[f"b{i}"] = jax.random.uniform(keys[k], (fout,), jnp.float32,
                                             -bound, bound); k += 1
        if i in (2, 3, 4):             # fresh BatchNorm1d: gamma=1, beta=0
            params[f"g{i}"] = jnp.ones((fout,), jnp.float32)
            params[f"be{i}"] = jnp.zeros((fout,), jnp.float32)
    return params


# ------------------------------ pure-JAX reference -------------------------- #

def reference_forward(params, z):
    def lin(x, i):
        return jnp.dot(x, params[f"w{i}"], precision=lax.Precision.HIGHEST) + params[f"b{i}"]

    x = jnp.where(z > 0, z, LEAKY_SLOPE * z)  # placeholder, replaced below
    x = lin(z, 1)
    x = jnp.where(x > 0, x, LEAKY_SLOPE * x)
    for i in (2, 3, 4):
        x = lin(x, i)   # bias kept here; it is cancelled by the BN mean anyway
        mean = jnp.mean(x, axis=0, keepdims=True)
        var = jnp.mean((x - mean) ** 2, axis=0, keepdims=True)
        x = (x - mean) / jnp.sqrt(var + BN_EPS) * params[f"g{i}"] + params[f"be{i}"]
        x = jnp.where(x > 0, x, LEAKY_SLOPE * x)
    x = jnp.tanh(lin(x, 5))
    return x.reshape(x.shape[0], *IMG_SHAPE)


# ---------------------------------- main ------------------------------------ #

if __name__ == "__main__":
    key = jax.random.PRNGKey(0)
    pkey, zkey = jax.random.split(key)
    params = init_params(pkey)
    prep = prepare_params(params)      # one-time bf16 cast + vector packing

    B = 8  # small test batch; BN uses batch stats so keep B on one block
    z = jax.random.normal(zkey, (B, LATENT_DIM), jnp.float32)

    img = jax.block_until_ready(jax.jit(generator_forward)(prep, z))
    assert img.shape == (B, *IMG_SHAPE), img.shape

    ref = jax.block_until_ready(jax.jit(reference_forward)(params, z))
    max_err = float(jnp.max(jnp.abs(img - ref)))
    assert max_err < 5e-2, f"mismatch vs reference: {max_err}"
    assert bool(jnp.all(jnp.isfinite(img)))

    print("KERNEL_OK")
</pallas_src>

<mosaic_0001>
module attributes {stable_mosaic.version = 11 : i64} {
  func.func @_generator_kernel(%arg0: memref<8x128xf32, #tpu.memory_space<vmem>>, %arg1: memref<8x1024xf32, #tpu.memory_space<vmem>>, %arg2: memref<128x128xbf16, #tpu.memory_space<vmem>>, %arg3: memref<128x256xbf16, #tpu.memory_space<vmem>>, %arg4: memref<256x512xbf16, #tpu.memory_space<vmem>>, %arg5: memref<512x1024xbf16, #tpu.memory_space<any>>, %arg6: memref<1024x1024xbf16, #tpu.memory_space<any>>, %arg7: memref<8x1024xf32, #tpu.memory_space<vmem>>, %arg8: memref<512x1024xbf16, #tpu.memory_space<vmem>>, %arg9: memref<1024x1024xbf16, #tpu.memory_space<vmem>>, %arg10: memref<2x!tpu.dma_semaphore, #tpu.memory_space<semaphore_mem>>) attributes {dimension_semantics = [], scalar_prefetch = 0 : i64, scratch_operands = 3 : i64, tpu.core_type = #tpu.core_type<tc>} {
    %c0_i32 = arith.constant 0 : i32
    %0 = tpu.memref_slice %arg10[%c0_i32] : memref<2x!tpu.dma_semaphore, #tpu.memory_space<semaphore_mem>> -> memref<1x!tpu.dma_semaphore, #tpu.memory_space<semaphore_mem>>
    %1 = tpu.memref_squeeze %0 : memref<1x!tpu.dma_semaphore, #tpu.memory_space<semaphore_mem>> -> memref<!tpu.dma_semaphore, #tpu.memory_space<semaphore_mem>>
    tpu.enqueue_dma source(%arg5 : memref<512x1024xbf16, #tpu.memory_space<any>>) target(%arg8 : memref<512x1024xbf16, #tpu.memory_space<vmem>>) target_semaphore(%1 : memref<!tpu.dma_semaphore, #tpu.memory_space<semaphore_mem>>)
    %c1_i32 = arith.constant 1 : i32
    %2 = tpu.memref_slice %arg10[%c1_i32] : memref<2x!tpu.dma_semaphore, #tpu.memory_space<semaphore_mem>> -> memref<1x!tpu.dma_semaphore, #tpu.memory_space<semaphore_mem>>
    %3 = tpu.memref_squeeze %2 : memref<1x!tpu.dma_semaphore, #tpu.memory_space<semaphore_mem>> -> memref<!tpu.dma_semaphore, #tpu.memory_space<semaphore_mem>>
    tpu.enqueue_dma source(%arg6 : memref<1024x1024xbf16, #tpu.memory_space<any>>) target(%arg9 : memref<1024x1024xbf16, #tpu.memory_space<vmem>>) target_semaphore(%3 : memref<!tpu.dma_semaphore, #tpu.memory_space<semaphore_mem>>)
    %c0 = arith.constant 0 : index
    %c0_0 = arith.constant 0 : index
    %4 = vector.load %arg1[%c0, %c0_0] : memref<8x1024xf32, #tpu.memory_space<vmem>>, vector<1x128xf32>
    %c1 = arith.constant 1 : index
    %c0_1 = arith.constant 0 : index
    %5 = vector.load %arg1[%c1, %c0_1] : memref<8x1024xf32, #tpu.memory_space<vmem>>, vector<1x256xf32>
    %c2 = arith.constant 2 : index
    %c0_2 = arith.constant 0 : index
    %6 = vector.load %arg1[%c2, %c0_2] : memref<8x1024xf32, #tpu.memory_space<vmem>>, vector<1x256xf32>
    %c3 = arith.constant 3 : index
    %c0_3 = arith.constant 0 : index
    %7 = vector.load %arg1[%c3, %c0_3] : memref<8x1024xf32, #tpu.memory_space<vmem>>, vector<1x512xf32>
    %c4 = arith.constant 4 : index
    %c0_4 = arith.constant 0 : index
    %8 = vector.load %arg1[%c4, %c0_4] : memref<8x1024xf32, #tpu.memory_space<vmem>>, vector<1x512xf32>
    %c5 = arith.constant 5 : index
    %c0_5 = arith.constant 0 : index
    %9 = vector.load %arg1[%c5, %c0_5] : memref<8x1024xf32, #tpu.memory_space<vmem>>, vector<1x1024xf32>
    %c6 = arith.constant 6 : index
    %c0_6 = arith.constant 0 : index
    %10 = vector.load %arg1[%c6, %c0_6] : memref<8x1024xf32, #tpu.memory_space<vmem>>, vector<1x1024xf32>
    %c7 = arith.constant 7 : index
    %c0_7 = arith.constant 0 : index
    %11 = vector.load %arg1[%c7, %c0_7] : memref<8x1024xf32, #tpu.memory_space<vmem>>, vector<1x1024xf32>
    %c0_8 = arith.constant 0 : index
    %c0_9 = arith.constant 0 : index
    %12 = vector.load %arg0[%c0_8, %c0_9] : memref<8x128xf32, #tpu.memory_space<vmem>>, vector<8x128xf32>
    %13 = arith.truncf %12 : vector<8x128xf32> to vector<8x128xbf16>
    %c0_10 = arith.constant 0 : index
    %c0_11 = arith.constant 0 : index
    %14 = vector.load %arg2[%c0_10, %c0_11] : memref<128x128xbf16, #tpu.memory_space<vmem>>, vector<128x128xbf16>
    %cst = arith.constant dense<0.000000e+00> : vector<8x128xf32>
    %15 = tpu.matmul %13, %14, %cst {dimension_numbers = #tpu.dot_dimension_numbers<[1], [0], [0], [1], [0, 0, 1, 1], [], []>} : vector<8x128xbf16>, vector<128x128xbf16>, vector<8x128xf32> -> vector<8x128xf32>
    %16 = vector.broadcast %4 : vector<1x128xf32> to vector<8x128xf32>
    %17 = arith.addf %15, %16 : vector<8x128xf32>
    %cst_12 = arith.constant 2.000000e-01 : f32
    %18 = vector.broadcast %cst_12 : f32 to vector<8x128xf32>
    %19 = arith.mulf %18, %17 : vector<8x128xf32>
    %20 = arith.maximumf %17, %19 : vector<8x128xf32>
    %21 = arith.truncf %20 : vector<8x128xf32> to vector<8x128xbf16>
    %c0_13 = arith.constant 0 : index
    %c0_14 = arith.constant 0 : index
    %22 = vector.load %arg3[%c0_13, %c0_14] : memref<128x256xbf16, #tpu.memory_space<vmem>>, vector<128x256xbf16>
    %cst_15 = arith.constant dense<0.000000e+00> : vector<8x256xf32>
    %23 = tpu.matmul %21, %22, %cst_15 {dimension_numbers = #tpu.dot_dimension_numbers<[1], [0], [0], [1], [0, 0, 1, 1], [], []>} : vector<8x128xbf16>, vector<128x256xbf16>, vector<8x256xf32> -> vector<8x256xf32>
    %cst_16 = arith.constant dense<0.000000e+00> : vector<256xf32>
    %24 = vector.multi_reduction <add>, %23, %cst_16 [0] : vector<8x256xf32> to vector<256xf32>
    %25 = vector.shape_cast %24 : vector<256xf32> to vector<1x256xf32>
    %cst_17 = arith.constant 1.250000e-01 : f32
    %26 = vector.broadcast %cst_17 : f32 to vector<1x256xf32>
    %27 = arith.mulf %25, %26 : vector<1x256xf32>
    %28 = vector.broadcast %27 : vector<1x256xf32> to vector<8x256xf32>
    %29 = arith.subf %23, %28 : vector<8x256xf32>
    %30 = arith.mulf %29, %29 : vector<8x256xf32>
    %cst_18 = arith.constant dense<0.000000e+00> : vector<256xf32>
    %31 = vector.multi_reduction <add>, %30, %cst_18 [0] : vector<8x256xf32> to vector<256xf32>
    %32 = vector.shape_cast %31 : vector<256xf32> to vector<1x256xf32>
    %cst_19 = arith.constant 1.250000e-01 : f32
    %33 = vector.broadcast %cst_19 : f32 to vector<1x256xf32>
    %34 = arith.mulf %32, %33 : vector<1x256xf32>
    %cst_20 = arith.constant 8.000000e-01 : f32
    %35 = vector.broadcast %cst_20 : f32 to vector<1x256xf32>
    %36 = arith.addf %34, %35 : vector<1x256xf32>
    %37 = math.rsqrt %36 : vector<1x256xf32>
    %38 = vector.broadcast %37 : vector<1x256xf32> to vector<8x256xf32>
    %39 = arith.mulf %29, %38 : vector<8x256xf32>
    %40 = vector.broadcast %5 : vector<1x256xf32> to vector<8x256xf32>
    %41 = arith.mulf %39, %40 : vector<8x256xf32>
    %42 = vector.broadcast %6 : vector<1x256xf32> to vector<8x256xf32>
    %43 = arith.addf %41, %42 : vector<8x256xf32>
    %cst_21 = arith.constant 2.000000e-01 : f32
    %44 = vector.broadcast %cst_21 : f32 to vector<8x256xf32>
    %45 = arith.mulf %44, %43 : vector<8x256xf32>
    %46 = arith.maximumf %43, %45 : vector<8x256xf32>
    %47 = arith.truncf %46 : vector<8x256xf32> to vector<8x256xbf16>
    %c0_22 = arith.constant 0 : index
    %c0_23 = arith.constant 0 : index
    %48 = vector.load %arg4[%c0_22, %c0_23] : memref<256x512xbf16, #tpu.memory_space<vmem>>, vector<256x512xbf16>
    %cst_24 = arith.constant dense<0.000000e+00> : vector<8x512xf32>
    %49 = tpu.matmul %47, %48, %cst_24 {dimension_numbers = #tpu.dot_dimension_numbers<[1], [0], [0], [1], [0, 0, 1, 1], [], []>} : vector<8x256xbf16>, vector<256x512xbf16>, vector<8x512xf32> -> vector<8x512xf32>
    %cst_25 = arith.constant dense<0.000000e+00> : vector<512xf32>
    %50 = vector.multi_reduction <add>, %49, %cst_25 [0] : vector<8x512xf32> to vector<512xf32>
    %51 = vector.shape_cast %50 : vector<512xf32> to vector<1x512xf32>
    %cst_26 = arith.constant 1.250000e-01 : f32
    %52 = vector.broadcast %cst_26 : f32 to vector<1x512xf32>
    %53 = arith.mulf %51, %52 : vector<1x512xf32>
    %54 = vector.broadcast %53 : vector<1x512xf32> to vector<8x512xf32>
    %55 = arith.subf %49, %54 : vector<8x512xf32>
    %56 = arith.mulf %55, %55 : vector<8x512xf32>
    %cst_27 = arith.constant dense<0.000000e+00> : vector<512xf32>
    %57 = vector.multi_reduction <add>, %56, %cst_27 [0] : vector<8x512xf32> to vector<512xf32>
    %58 = vector.shape_cast %57 : vector<512xf32> to vector<1x512xf32>
    %cst_28 = arith.constant 1.250000e-01 : f32
    %59 = vector.broadcast %cst_28 : f32 to vector<1x512xf32>
    %60 = arith.mulf %58, %59 : vector<1x512xf32>
    %cst_29 = arith.constant 8.000000e-01 : f32
    %61 = vector.broadcast %cst_29 : f32 to vector<1x512xf32>
    %62 = arith.addf %60, %61 : vector<1x512xf32>
    %63 = math.rsqrt %62 : vector<1x512xf32>
    %64 = vector.broadcast %63 : vector<1x512xf32> to vector<8x512xf32>
    %65 = arith.mulf %55, %64 : vector<8x512xf32>
    %66 = vector.broadcast %7 : vector<1x512xf32> to vector<8x512xf32>
    %67 = arith.mulf %65, %66 : vector<8x512xf32>
    %68 = vector.broadcast %8 : vector<1x512xf32> to vector<8x512xf32>
    %69 = arith.addf %67, %68 : vector<8x512xf32>
    %cst_30 = arith.constant 2.000000e-01 : f32
    %70 = vector.broadcast %cst_30 : f32 to vector<8x512xf32>
    %71 = arith.mulf %70, %69 : vector<8x512xf32>
    %72 = arith.maximumf %69, %71 : vector<8x512xf32>
    %c0_i32_31 = arith.constant 0 : i32
    %73 = tpu.memref_slice %arg10[%c0_i32_31] : memref<2x!tpu.dma_semaphore, #tpu.memory_space<semaphore_mem>> -> memref<1x!tpu.dma_semaphore, #tpu.memory_space<semaphore_mem>>
    %74 = tpu.memref_squeeze %73 : memref<1x!tpu.dma_semaphore, #tpu.memory_space<semaphore_mem>> -> memref<!tpu.dma_semaphore, #tpu.memory_space<semaphore_mem>>
    tpu.wait_dma2 semaphore(%74 : memref<!tpu.dma_semaphore, #tpu.memory_space<semaphore_mem>>) src(%arg5 : memref<512x1024xbf16, #tpu.memory_space<any>>) dst(%arg8 : memref<512x1024xbf16, #tpu.memory_space<vmem>>)
    %75 = arith.truncf %72 : vector<8x512xf32> to vector<8x512xbf16>
    %c0_32 = arith.constant 0 : index
    %c0_33 = arith.constant 0 : index
    %76 = vector.load %arg8[%c0_32, %c0_33] : memref<512x1024xbf16, #tpu.memory_space<vmem>>, vector<512x1024xbf16>
    %cst_34 = arith.constant dense<0.000000e+00> : vector<8x1024xf32>
    %77 = tpu.matmul %75, %76, %cst_34 {dimension_numbers = #tpu.dot_dimension_numbers<[1], [0], [0], [1], [0, 0, 1, 1], [], []>} : vector<8x512xbf16>, vector<512x1024xbf16>, vector<8x1024xf32> -> vector<8x1024xf32>
    %cst_35 = arith.constant dense<0.000000e+00> : vector<1024xf32>
    %78 = vector.multi_reduction <add>, %77, %cst_35 [0] : vector<8x1024xf32> to vector<1024xf32>
    %79 = vector.shape_cast %78 : vector<1024xf32> to vector<1x1024xf32>
    %cst_36 = arith.constant 1.250000e-01 : f32
    %80 = vector.broadcast %cst_36 : f32 to vector<1x1024xf32>
    %81 = arith.mulf %79, %80 : vector<1x1024xf32>
    %82 = vector.broadcast %81 : vector<1x1024xf32> to vector<8x1024xf32>
    %83 = arith.subf %77, %82 : vector<8x1024xf32>
    %84 = arith.mulf %83, %83 : vector<8x1024xf32>
    %cst_37 = arith.constant dense<0.000000e+00> : vector<1024xf32>
    %85 = vector.multi_reduction <add>, %84, %cst_37 [0] : vector<8x1024xf32> to vector<1024xf32>
    %86 = vector.shape_cast %85 : vector<1024xf32> to vector<1x1024xf32>
    %cst_38 = arith.constant 1.250000e-01 : f32
    %87 = vector.broadcast %cst_38 : f32 to vector<1x1024xf32>
    %88 = arith.mulf %86, %87 : vector<1x1024xf32>
    %cst_39 = arith.constant 8.000000e-01 : f32
    %89 = vector.broadcast %cst_39 : f32 to vector<1x1024xf32>
    %90 = arith.addf %88, %89 : vector<1x1024xf32>
    %91 = math.rsqrt %90 : vector<1x1024xf32>
    %92 = vector.broadcast %91 : vector<1x1024xf32> to vector<8x1024xf32>
    %93 = arith.mulf %83, %92 : vector<8x1024xf32>
    %94 = vector.broadcast %9 : vector<1x1024xf32> to vector<8x1024xf32>
    %95 = arith.mulf %93, %94 : vector<8x1024xf32>
    %96 = vector.broadcast %10 : vector<1x1024xf32> to vector<8x1024xf32>
    %97 = arith.addf %95, %96 : vector<8x1024xf32>
    %cst_40 = arith.constant 2.000000e-01 : f32
    %98 = vector.broadcast %cst_40 : f32 to vector<8x1024xf32>
    %99 = arith.mulf %98, %97 : vector<8x1024xf32>
    %100 = arith.maximumf %97, %99 : vector<8x1024xf32>
    %c1_i32_41 = arith.constant 1 : i32
    %101 = tpu.memref_slice %arg10[%c1_i32_41] : memref<2x!tpu.dma_semaphore, #tpu.memory_space<semaphore_mem>> -> memref<1x!tpu.dma_semaphore, #tpu.memory_space<semaphore_mem>>
    %102 = tpu.memref_squeeze %101 : memref<1x!tpu.dma_semaphore, #tpu.memory_space<semaphore_mem>> -> memref<!tpu.dma_semaphore, #tpu.memory_space<semaphore_mem>>
    tpu.wait_dma2 semaphore(%102 : memref<!tpu.dma_semaphore, #tpu.memory_space<semaphore_mem>>) src(%arg6 : memref<1024x1024xbf16, #tpu.memory_space<any>>) dst(%arg9 : memref<1024x1024xbf16, #tpu.memory_space<vmem>>)
    %103 = arith.truncf %100 : vector<8x1024xf32> to vector<8x1024xbf16>
    %c0_42 = arith.constant 0 : index
    %c0_43 = arith.constant 0 : index
    %104 = vector.load %arg9[%c0_42, %c0_43] : memref<1024x1024xbf16, #tpu.memory_space<vmem>>, vector<1024x1024xbf16>
    %cst_44 = arith.constant dense<0.000000e+00> : vector<8x1024xf32>
    %105 = tpu.matmul %103, %104, %cst_44 {dimension_numbers = #tpu.dot_dimension_numbers<[1], [0], [0], [1], [0, 0, 1, 1], [], []>} : vector<8x1024xbf16>, vector<1024x1024xbf16>, vector<8x1024xf32> -> vector<8x1024xf32>
    %106 = vector.broadcast %11 : vector<1x1024xf32> to vector<8x1024xf32>
    %107 = arith.addf %105, %106 : vector<8x1024xf32>
    %108 = math.tanh %107 : vector<8x1024xf32>
    %c0_45 = arith.constant 0 : index
    %c0_46 = arith.constant 0 : index
    %109 = vector.load %arg7[%c0_45, %c0_46] : memref<8x1024xf32, #tpu.memory_space<vmem>>, vector<8x1024xf32>
    tpu.vector_store %arg7[%c0_45, %c0_46], %108 {strides = array<i32>} : memref<8x1024xf32, #tpu.memory_space<vmem>>, vector<8x1024xf32>,
    return
  }
}

</mosaic_0001>

<llo_original>
// kernel: generator_forward.1
$region0: #{generator_forward.1}
  #allocation0 [shape = 'u32[]', space=smem, size = 0x4, offset = 0x4, fixed_abs, tag = 'smem constant byte address 0x4 - core index']
  #allocation1 [shape = 'u32[144,128]{1,0:T(1,128)}', space=vmem, size = 0x12000, scoped, tag = 'internal scratch']
  #allocation2 [shape = 'bf16[512,1024]{1,0:T(8,128)(2,1)}', space=vmem, size = 0x100000, scoped, tag = 'scratch operand']
  #allocation3 [shape = 'bf16[1024,1024]{1,0:T(8,128)(2,1)}', space=vmem, size = 0x200000, scoped, tag = 'scratch operand']
  #allocation4 [shape = 's32[2]{0}', space=sflag, size = 0x8, scoped, tag = 'scratch operand']
  #allocation13 [shape = 's32[]', space=sflag, size = 0x4, offset = 0, fixed_abs, tag = 'sflag constant byte address 0x0 - dummy sync flag']
  #allocation14 [shape = 's32[]', space=sflag, size = 0x4, offset = 0, fixed_abs, tag = 'sflag constant byte address 0x0 - dummy sync flag']
  #allocation15 [shape = 'u32[]', space=smem, size = 0x4, offset = 0x44, fixed_abs, tag = 'smem constant byte address 0x44 - assertion arg 0']
  #allocation16 [shape = 'u32[]', space=smem, size = 0x4, offset = 0x48, fixed_abs, tag = 'smem constant byte address 0x48 - assertion arg 1']
  #allocation17 [shape = 's32[]', space=sflag, size = 0x4, offset = 0, fixed_abs, tag = 'sflag constant byte address 0x0 - dummy sync flag']
  #allocation18 [shape = 's32[]', space=sflag, size = 0x4, offset = 0, fixed_abs, tag = 'sflag constant byte address 0x0 - dummy sync flag']
  %s0 = inlined_call_operand.hbm [shape: f32[8,128], index: 0, kind: input, shape index: {}]
  %s1 = inlined_call_operand.hbm [shape: f32[8,1024], index: 1, kind: input, shape index: {}]
  %s2 = inlined_call_operand.hbm [shape: bf16[128,128], index: 2, kind: input, shape index: {}]
  %s3 = inlined_call_operand.hbm [shape: bf16[128,256], index: 3, kind: input, shape index: {}]
  %s4 = inlined_call_operand.hbm [shape: bf16[256,512], index: 4, kind: input, shape index: {}]
  %s5 = inlined_call_operand.hbm [shape: bf16[512,1024], index: 5, kind: input, shape index: {}]
  %s6 = inlined_call_operand.hbm [shape: bf16[1024,1024], index: 6, kind: input, shape index: {}]
  %s7 = inlined_call_operand.vmem [shape: f32[8,1024], index: 7, kind: output, shape index: {}]
  %s8 = sld [smem:[#allocation0]]
  $region58: #{generator_forward.1} parent=0
    _
  %s10 = ssub.s32 1, %s8
  %s11 = scalar_select 0, %s10, %s8
  $region1: #{generator_forward.1} parent=0
    #allocation5 [shape = 'u8[4096]{0}', space=vmem, size = 0x1000, scoped, tag = 'input window, operand 0, single buffered']
    #allocation6 [shape = 's32[1]{0}', space=sflag, size = 0x4, scoped, tag = 'scoped memory for generator_forward.1']
    #allocation7 [shape = 'u8[32768]{0}', space=vmem, size = 0x8000, scoped, tag = 'input window, operand 1, single buffered']
    #allocation8 [shape = 's32[1]{0}', space=sflag, size = 0x4, scoped, tag = 'scoped memory for generator_forward.1']
    #allocation9 [shape = 'u8[32768]{0}', space=vmem, size = 0x8000, scoped, tag = 'input window, operand 2, single buffered']
    #allocation10 [shape = 'u8[65536]{0}', space=vmem, size = 0x10000, scoped, tag = 'input window, operand 3, single buffered']
    #allocation11 [shape = 's32[1]{0}', space=sflag, size = 0x4, scoped, tag = 'scoped memory for generator_forward.1']
    #allocation12 [shape = 'u8[262144]{0}', space=vmem, size = 0x40000, scoped, tag = 'input window, operand 4, single buffered']
    %12 = vsyncpa [#allocation6], 0
    %13 = vsyncpa [#allocation8], 0
    %14 = vsyncpa [#allocation11], 0
    // Predicated region
    $region2: #{generator_forward.1} parent=1 // pred_check
      _
    $region3: #{generator_forward.1} parent=1 // pred_check_branch
      %16 = sbr.rel (0) target = $region5
    $region4: #{generator_forward.1} parent=1 // pred_region
      %s18 = ssub.s32 128, 128
      %19 = vsyncadd [#allocation6], %s18
      %s21 = sshll.u32 [#allocation5], 4
      %s22 = int_to_ptr.vmem [resolvable:$true] %s21
      %24 = dma.hbm_to_vmem [thread:$0]  %s0, 128, %s22, [#allocation6]
    $region5: #{generator_forward.1} parent=1 // pred_fallthru
      _
    // Predicated region
    $region6: #{generator_forward.1} parent=1 // pred_check
      _
    $region7: #{generator_forward.1} parent=1 // pred_check_branch
      %26 = sbr.rel (0) target = $region9
    $region8: #{generator_forward.1} parent=1 // pred_region
      %s28 = ssub.s32 1024, 1024
      %29 = vsyncadd [#allocation8], %s28
      %s31 = sshll.u32 [#allocation7], 4
      %s32 = int_to_ptr.vmem [resolvable:$true] %s31
      %34 = dma.hbm_to_vmem [thread:$0]  %s1, 1024, %s32, [#allocation8]
    $region9: #{generator_forward.1} parent=1 // pred_fallthru
      _
    // Predicated region
    $region10: #{generator_forward.1} parent=1 // pred_check
      _
    $region11: #{generator_forward.1} parent=1 // pred_check_branch
      %36 = sbr.rel (0) target = $region13
    $region12: #{generator_forward.1} parent=1 // pred_region
      %s38 = ssub.s32 1024, 1024
      %39 = vsyncadd [#allocation8], %s38
      %s40 = sshll.u32 [#allocation9], 4
      %s41 = int_to_ptr.vmem [resolvable:$true] %s40
      %46 = dma.hbm_to_vmem [thread:$0]  %s2, 1024, %s41, [#allocation8], 64, 64, 4
    $region13: #{generator_forward.1} parent=1 // pred_fallthru
      _
    // Predicated region
    $region14: #{generator_forward.1} parent=1 // pred_check
      _
    $region15: #{generator_forward.1} parent=1 // pred_check_branch
      %48 = sbr.rel (0) target = $region17
    $region16: #{generator_forward.1} parent=1 // pred_region
      %s50 = ssub.s32 2048, 2048
      %51 = vsyncadd [#allocation11], %s50
      %s52 = sshll.u32 [#allocation10], 4
      %s53 = int_to_ptr.vmem [resolvable:$true] %s52
      %58 = dma.hbm_to_vmem [thread:$0]  %s3, 2048, %s53, [#allocation11], 128, 128, 8
    $region17: #{generator_forward.1} parent=1 // pred_fallthru
      _
    // Predicated region
    $region18: #{generator_forward.1} parent=1 // pred_check
      _
    $region19: #{generator_forward.1} parent=1 // pred_check_branch
      %60 = sbr.rel (0) target = $region21
    $region20: #{generator_forward.1} parent=1 // pred_region
      %s62 = ssub.s32 8192, 8192
      %63 = vsyncadd [#allocation11], %s62
      %s64 = sshll.u32 [#allocation12], 4
      %s65 = int_to_ptr.vmem [resolvable:$true] %s64
      %70 = dma.hbm_to_vmem [thread:$0]  %s4, 8192, %s65, [#allocation11], 256, 256, 16
    $region21: #{generator_forward.1} parent=1 // pred_fallthru
      _
    // Predicated region
    $region22: #{generator_forward.1} parent=1 // pred_check
      _
    $region23: #{generator_forward.1} parent=1 // pred_check_branch
      %72 = sbr.rel (0) target = $region25
    $region24: #{generator_forward.1} parent=1 // pred_region
      %73 = dma.done [#allocation6], 128
    $region25: #{generator_forward.1} parent=1 // pred_fallthru
      _
    // Predicated region
    $region26: #{generator_forward.1} parent=1 // pred_check
      _
    $region27: #{generator_forward.1} parent=1 // pred_check_branch
      %75 = sbr.rel (0) target = $region29
    $region28: #{generator_forward.1} parent=1 // pred_region
      %76 = dma.done [#allocation8], 1024
    $region29: #{generator_forward.1} parent=1 // pred_fallthru
      _
    // Predicated region
    $region30: #{generator_forward.1} parent=1 // pred_check
      _
    $region31: #{generator_forward.1} parent=1 // pred_check_branch
      %78 = sbr.rel (0) target = $region33
    $region32: #{generator_forward.1} parent=1 // pred_region
      %79 = dma.done [#allocation8], 1024
    $region33: #{generator_forward.1} parent=1 // pred_fallthru
      _
    // Predicated region
    $region34: #{generator_forward.1} parent=1 // pred_check
      _
    $region35: #{generator_forward.1} parent=1 // pred_check_branch
      %81 = sbr.rel (0) target = $region37
    $region36: #{generator_forward.1} parent=1 // pred_region
      %82 = dma.done [#allocation11], 2048
    $region37: #{generator_forward.1} parent=1 // pred_fallthru
      _
    // Predicated region
    $region38: #{generator_forward.1} parent=1 // pred_check
      _
    $region39: #{generator_forward.1} parent=1 // pred_check_branch
      %84 = sbr.rel (0) target = $region41
    $region40: #{generator_forward.1} parent=1 // pred_region
      %85 = dma.done [#allocation11], 8192
    $region41: #{generator_forward.1} parent=1 // pred_fallthru
      _
    // Predicated region
    $region42: #{generator_forward.1} parent=1 // pred_check
      _
    $region43: #{generator_forward.1} parent=1 // pred_check_branch
      %88 = sbr.rel target = $region45
    $region44: #{generator_forward.1} parent=1 // pred_region
      %89 = sst [smem:[#allocation15]] [#allocation14]
      %90 = sst [smem:[#allocation16]] [#allocation13]
    $region45: #{generator_forward.1} parent=1 // pred_fallthru
      _
    %92 = shalt.err (0)
    %s94 = sshll.u32 [#allocation2], 4
    %s95 = int_to_ptr.vmem [resolvable:$true] %s94
    %97 = dma.hbm_to_vmem [thread:$0]  %s5, 32768, %s95, [#allocation4]
    %s98 = scalar_lea.sflag [#allocation4], 1
    // Predicated region
    $region46: #{generator_forward.1} parent=1 // pred_check
      _
    $region47: #{generator_forward.1} parent=1 // pred_check_branch
      %100 = sbr.rel target = $region49
    $region48: #{generator_forward.1} parent=1 // pred_region
      %101 = sst [smem:[#allocation15]] [#allocation18]
      %102 = sst [smem:[#allocation16]] [#allocation17]
    $region49: #{generator_forward.1} parent=1 // pred_fallthru
      _
    %104 = shalt.err (0)
    %s106 = sshll.u32 [#allocation3], 4
    %s107 = int_to_ptr.vmem [resolvable:$true] %s106
    %109 = dma.hbm_to_vmem [thread:$0]  %s6, 65536, %s107, %s98
    %v110 = vld [vmem:[#allocation7] ss:$0 sm:$0xff]
    %s111 = scalar_lea.vmem [#allocation7], 1
    %v112 = vld [vmem:[%s111] ss:$8 sm:$0x3]
    %s113 = scalar_lea.vmem [#allocation7], 2
    %v114 = vld [vmem:[%s113] ss:$8 sm:$0x3]
    %s115 = scalar_lea.vmem [#allocation7], 3
    %v116 = vld [vmem:[%s115] ss:$8 sm:$0xf]
    %s117 = scalar_lea.vmem [#allocation7], 4
    %v118 = vld [vmem:[%s117] ss:$8 sm:$0xf]
    %s119 = scalar_lea.vmem [#allocation7], 5
    %v120 = vld [vmem:[%s119] ss:$8 sm:$0xf]
    %v121 = vld [vmem:[%s119] ss:$8 sm:$0xf0]
    %v122 = vor.u32 %v120, %v121
    %s123 = scalar_lea.vmem [#allocation7], 6
    %v124 = vld [vmem:[%s123] ss:$8 sm:$0xf]
    %v125 = vld [vmem:[%s123] ss:$8 sm:$0xf0]
    %v126 = vor.u32 %v124, %v125
    %s127 = scalar_lea.vmem [#allocation7], 7
    %v128 = vld [vmem:[%s127] ss:$8 sm:$0xf]
    %v129 = vld [vmem:[%s127] ss:$8 sm:$0xf0]
    %v130 = vor.u32 %v128, %v129
    %v131 = vld [vmem:[#allocation5] sm:$0xff]
    %v132 = vpack.c.bf16 %v131, %v131
    %v133 = vld [vmem:[#allocation9] sm:$0xf]
    %v134 = vld [vmem:[#allocation9 + $0x4] sm:$0xf]
    %v135 = vld [vmem:[#allocation9 + $0x8] sm:$0xf]
    %v136 = vld [vmem:[#allocation9 + $0xc] sm:$0xf]
    %v137 = vld [vmem:[#allocation9 + $0x10] sm:$0xf]
    %v138 = vld [vmem:[#allocation9 + $0x14] sm:$0xf]
    %v139 = vld [vmem:[#allocation9 + $0x18] sm:$0xf]
    %v140 = vld [vmem:[#allocation9 + $0x1c] sm:$0xf]
    %v141 = vld [vmem:[#allocation9 + $0x20] sm:$0xf]
    %v142 = vld [vmem:[#allocation9 + $0x24] sm:$0xf]
    %v143 = vld [vmem:[#allocation9 + $0x28] sm:$0xf]
    %v144 = vld [vmem:[#allocation9 + $0x2c] sm:$0xf]
    %v145 = vld [vmem:[#allocation9 + $0x30] sm:$0xf]
    %v146 = vld [vmem:[#allocation9 + $0x34] sm:$0xf]
    %v147 = vld [vmem:[#allocation9 + $0x38] sm:$0xf]
    %v148 = vld [vmem:[#allocation9 + $0x3c] sm:$0xf]
    %v165 = vunpack.c.l.b16 %v133
    %v166 = vunpack.c.l.b16 %v134
    %v167 = vunpack.c.l.b16 %v135
    %v168 = vunpack.c.l.b16 %v136
    %v169 = vunpack.c.l.b16 %v137
    %v170 = vunpack.c.l.b16 %v138
    %v171 = vunpack.c.l.b16 %v139
    %v172 = vunpack.c.l.b16 %v140
    %v173 = vunpack.c.l.b16 %v141
    %v174 = vunpack.c.l.b16 %v142
    %v175 = vunpack.c.l.b16 %v143
    %v176 = vunpack.c.l.b16 %v144
    %v177 = vunpack.c.l.b16 %v145
    %v178 = vunpack.c.l.b16 %v146
    %v179 = vunpack.c.l.b16 %v147
    %v180 = vunpack.c.l.b16 %v148
    %v181 = vpack.c.b16 %v166, %v165
    %v182 = vpack.c.b16 %v168, %v167
    %v183 = vpack.c.b16 %v170, %v169
    %v184 = vpack.c.b16 %v172, %v171
    %v185 = vpack.c.b16 %v174, %v173
    %v186 = vpack.c.b16 %v176, %v175
    %v187 = vpack.c.b16 %v178, %v177
    %v188 = vpack.c.b16 %v180, %v179
    %197 = vmatprep.subr.bf16.mxu0 0
    %198 = vmatpush1.bf16.msra.mxu0 %v188
    %199 = vmatprep.subr.bf16.mxu0 0
    %200 = vmatpush1.bf16.msra.mxu0 %v187
    %201 = vmatprep.subr.bf16.mxu0 0
    %202 = vmatpush1.bf16.msra.mxu0 %v186
    %203 = vmatprep.subr.bf16.mxu0 0
    %204 = vmatpush1.bf16.msra.mxu0 %v185
    %205 = vmatprep.subr.bf16.mxu0 0
    %206 = vmatpush1.bf16.msra.mxu0 %v184
    %207 = vmatprep.subr.bf16.mxu0 0
    %208 = vmatpush1.bf16.msra.mxu0 %v183
    %209 = vmatprep.subr.bf16.mxu0 0
    %210 = vmatpush1.bf16.msra.mxu0 %v182
    %211 = vmatprep.subr.bf16.mxu0 0
    %212 = vmatpush1.bf16.msra.mxu0 %v181
    %213 = vmatprep.subr.bf16.mxu0 0
    %214 = vmatpush2.bf16.msra.mxu0 0
    %215 = vmatprep.subr.bf16.mxu0 0
    %216 = vmatpush2.bf16.msra.mxu0 0
    %217 = vmatprep.subr.bf16.mxu0 0
    %218 = vmatpush2.bf16.msra.mxu0 0
    %219 = vmatprep.subr.bf16.mxu0 0
    %220 = vmatpush2.bf16.msra.mxu0 0
    %221 = vmatprep.subr.bf16.mxu0 0
    %222 = vmatpush2.bf16.msra.mxu0 0
    %223 = vmatprep.subr.bf16.mxu0 0
    %224 = vmatpush2.bf16.msra.mxu0 0
    %225 = vmatprep.subr.bf16.mxu0 0
    %226 = vmatpush2.bf16.msra.mxu0 0
    %227 = vmatprep.subr.bf16.mxu0 0
    %228 = vmatpush2.bf16.msra.mxu0 0
    %229 = vmatprep.mubr.bf16.mxu0 0
    %230 = vmatmul.mubr.bf16.gmra.mxu0 %v132
    %v231 = vpop.f32.mrf.mxu0
    %v232 = vadd.f32 %v110, %v231
    %v233 = vpop.f32.mrf.mxu0
    %v234 = vpop.f32.mrf.mxu0
    %v235 = vpop.f32.mrf.mxu0
    %236 = vdwg.mxu0
    %v237 = vmul.f32 %v232, 0.2
    %v238 = vmax.f32 %v232, %v237
    %v239 = vpack.c.bf16 %v238, %v238
    %v240 = vld [vmem:[#allocation10] sm:$0xff]
    %v241 = vld [vmem:[#allocation10 + $0x8] sm:$0xff]
    %v242 = vld [vmem:[#allocation10 + $0x10] sm:$0xff]
    %v243 = vld [vmem:[#allocation10 + $0x18] sm:$0xff]
    %v244 = vld [vmem:[#allocation10 + $0x20] sm:$0xff]
    %v245 = vld [vmem:[#allocation10 + $0x28] sm:$0xff]
    %v246 = vld [vmem:[#allocation10 + $0x30] sm:$0xff]
    %v247 = vld [vmem:[#allocation10 + $0x38] sm:$0xff]
    %v248 = vld [vmem:[#allocation10 + $0x40] sm:$0xff]
    %v249 = vld [vmem:[#allocation10 + $0x48] sm:$0xff]
    %v250 = vld [vmem:[#allocation10 + $0x50] sm:$0xff]
    %v251 = vld [vmem:[#allocation10 + $0x58] sm:$0xff]
    %v252 = vld [vmem:[#allocation10 + $0x60] sm:$0xff]
    %v253 = vld [vmem:[#allocation10 + $0x68] sm:$0xff]
    %v254 = vld [vmem:[#allocation10 + $0x70] sm:$0xff]
    %v255 = vld [vmem:[#allocation10 + $0x78] sm:$0xff]
    %v272 = vunpack.c.l.b16 %v240
    %v273 = vunpack.c.h.b16 %v240
    %v274 = vunpack.c.l.b16 %v241
    %v275 = vunpack.c.h.b16 %v241
    %v276 = vunpack.c.l.b16 %v242
    %v277 = vunpack.c.h.b16 %v242
    %v278 = vunpack.c.l.b16 %v243
    %v279 = vunpack.c.h.b16 %v243
    %v280 = vunpack.c.l.b16 %v244
    %v281 = vunpack.c.h.b16 %v244
    %v282 = vunpack.c.l.b16 %v245
    %v283 = vunpack.c.h.b16 %v245
    %v284 = vunpack.c.l.b16 %v246
    %v285 = vunpack.c.h.b16 %v246
    %v286 = vunpack.c.l.b16 %v247
    %v287 = vunpack.c.h.b16 %v247
    %v288 = vunpack.c.l.b16 %v248
    %v289 = vunpack.c.h.b16 %v248
    %v290 = vunpack.c.l.b16 %v249
    %v291 = vunpack.c.h.b16 %v249
    %v292 = vunpack.c.l.b16 %v250
    %v293 = vunpack.c.h.b16 %v250
    %v294 = vunpack.c.l.b16 %v251
    %v295 = vunpack.c.h.b16 %v251
    %v296 = vunpack.c.l.b16 %v252
    %v297 = vunpack.c.h.b16 %v252
    %v298 = vunpack.c.l.b16 %v253
    %v299 = vunpack.c.h.b16 %v253
    %v300 = vunpack.c.l.b16 %v254
    %v301 = vunpack.c.h.b16 %v254
    %v302 = vunpack.c.l.b16 %v255
    %v303 = vunpack.c.h.b16 %v255
    %v304 = vpack.c.b16 %v274, %v272
    %v305 = vpack.c.b16 %v275, %v273
    %v306 = vpack.c.b16 %v278, %v276
    %v307 = vpack.c.b16 %v279, %v277
    %v308 = vpack.c.b16 %v282, %v280
    %v309 = vpack.c.b16 %v283, %v281
    %v310 = vpack.c.b16 %v286, %v284
    %v311 = vpack.c.b16 %v287, %v285
    %v312 = vpack.c.b16 %v290, %v288
    %v313 = vpack.c.b16 %v291, %v289
    %v314 = vpack.c.b16 %v294, %v292
    %v315 = vpack.c.b16 %v295, %v293
    %v316 = vpack.c.b16 %v298, %v296
    %v317 = vpack.c.b16 %v299, %v297
    %v318 = vpack.c.b16 %v302, %v300
    %v319 = vpack.c.b16 %v303, %v301
    %336 = vmatprep.subr.bf16.mxu0 %v319
    %337 = vmatpush1.bf16.msra.mxu0 %v318
    %338 = vmatprep.subr.bf16.mxu0 %v317
    %339 = vmatpush1.bf16.msra.mxu0 %v316
    %340 = vmatprep.subr.bf16.mxu0 %v315
    %341 = vmatpush1.bf16.msra.mxu0 %v314
    %342 = vmatprep.subr.bf16.mxu0 %v313
    %343 = vmatpush1.bf16.msra.mxu0 %v312
    %344 = vmatprep.subr.bf16.mxu0 %v311
    %345 = vmatpush1.bf16.msra.mxu0 %v310
    %346 = vmatprep.subr.bf16.mxu0 %v309
    %347 = vmatpush1.bf16.msra.mxu0 %v308
    %348 = vmatprep.subr.bf16.mxu0 %v307
    %349 = vmatpush1.bf16.msra.mxu0 %v306
    %350 = vmatprep.subr.bf16.mxu0 %v305
    %351 = vmatpush1.bf16.msra.mxu0 %v304
    %352 = vmatprep.subr.bf16.mxu0 0
    %353 = vmatpush2.bf16.msra.mxu0 0
    %354 = vmatprep.subr.bf16.mxu0 0
    %355 = vmatpush2.bf16.msra.mxu0 0
    %356 = vmatprep.subr.bf16.mxu0 0
    %357 = vmatpush2.bf16.msra.mxu0 0
    %358 = vmatprep.subr.bf16.mxu0 0
    %359 = vmatpush2.bf16.msra.mxu0 0
    %360 = vmatprep.subr.bf16.mxu0 0
    %361 = vmatpush2.bf16.msra.mxu0 0
    %362 = vmatprep.subr.bf16.mxu0 0
    %363 = vmatpush2.bf16.msra.mxu0 0
    %364 = vmatprep.subr.bf16.mxu0 0
    %365 = vmatpush2.bf16.msra.mxu0 0
    %366 = vmatprep.subr.bf16.mxu0 0
    %367 = vmatpush2.bf16.msra.mxu0 0
    %368 = vmatprep.mubr.bf16.mxu0 0
    %369 = vmatmul.mubr.bf16.gmra.mxu0 %v239
    %v370 = vpop.f32.mrf.mxu0
    %v371 = vadd.f32 0.0, %v370
    %v372 = vpop.f32.mrf.mxu0
    %v373 = vadd.f32 0.0, %v372
    %v374 = vpop.f32.mrf.mxu0
    %v375 = vpop.f32.mrf.mxu0
    %376 = vdwg.mxu0
    %v377 = vrot.slane %v371, 4
    %v378 = vadd.f32 %v371, %v377
    %v379 = vrot.slane %v378, 2
    %v380 = vadd.f32 %v378, %v379
    %v381 = vrot.slane %v380, 1
    %v382 = vadd.f32 %v380, %v381
    %v383 = vrot.slane %v373, 4
    %v384 = vadd.f32 %v373, %v383
    %v385 = vrot.slane %v384, 2
    %v386 = vadd.f32 %v384, %v385
    %v387 = vrot.slane %v386, 1
    %v388 = vadd.f32 %v386, %v387
    %v389 = vmul.f32 %v382, 0.125
    %v390 = vmul.f32 %v388, 0.125
    %v391 = vsub.f32 %v371, %v389
    %v392 = vsub.f32 %v373, %v390
    %v393 = vmul.f32 %v391, %v391
    %v394 = vmul.f32 %v392, %v392
    %v395 = vrot.slane %v393, 4
    %v396 = vadd.f32 %v393, %v395
    %v397 = vrot.slane %v396, 2
    %v398 = vadd.f32 %v396, %v397
    %v399 = vrot.slane %v398, 1
    %v400 = vadd.f32 %v398, %v399
    %v401 = vrot.slane %v394, 4
    %v402 = vadd.f32 %v394, %v401
    %v403 = vrot.slane %v402, 2
    %v404 = vadd.f32 %v402, %v403
    %v405 = vrot.slane %v404, 1
    %v406 = vadd.f32 %v404, %v405
    %v407 = vmul.f32 %v400, 0.125
    %v408 = vmul.f32 %v406, 0.125
    %v409 = vadd.f32 %v407, 0.8
    %v410 = vadd.f32 %v408, 0.8
    %v411 = vrsqrt.pop %v409
    %v412 = vrsqrt.pop %v410
    %v413 = vmul.f32 %v391, %v411
    %v414 = vmul.f32 %v392, %v412
    %v416 = vlaneseq
    %v417 = vshrl.u32 %v416, 7
    %v418 = vsub.s32 0, %v417
    %v419 = vrot.slane %v112, %v418
    %v420 = vlaneseq
    %v421 = vshrl.u32 %v420, 7
    %v422 = vsub.s32 1, %v421
    %v423 = vrot.slane %v112, %v422
    %v426 = vmul.f32 %v413, %v419
    %v427 = vmul.f32 %v414, %v423
    %v429 = vlaneseq
    %v430 = vshrl.u32 %v429, 7
    %v431 = vsub.s32 0, %v430
    %v432 = vrot.slane %v114, %v431
    %v433 = vlaneseq
    %v434 = vshrl.u32 %v433, 7
    %v435 = vsub.s32 1, %v434
    %v436 = vrot.slane %v114, %v435
    %v439 = vadd.f32 %v426, %v432
    %v440 = vadd.f32 %v427, %v436
    %v441 = vmul.f32 %v439, 0.2
    %v442 = vmul.f32 %v440, 0.2
    %v443 = vmax.f32 %v439, %v441
    %v444 = vmax.f32 %v440, %v442
    %v445 = vpack.c.bf16 %v443, %v443
    %v446 = vpack.c.bf16 %v444, %v444
    %v447 = vld [vmem:[#allocation12] sm:$0xff]
    %v448 = vld [vmem:[#allocation12 + $0x8] sm:$0xff]
    %v449 = vld [vmem:[#allocation12 + $0x10] sm:$0xff]
    %v450 = vld [vmem:[#allocation12 + $0x18] sm:$0xff]
    %v451 = vld [vmem:[#allocation12 + $0x20] sm:$0xff]
    %v452 = vld [vmem:[#allocation12 + $0x28] sm:$0xff]
    %v453 = vld [vmem:[#allocation12 + $0x30] sm:$0xff]
    %v454 = vld [vmem:[#allocation12 + $0x38] sm:$0xff]
    %v455 = vld [vmem:[#allocation12 + $0x40] sm:$0xff]
    %v456 = vld [vmem:[#allocation12 + $0x48] sm:$0xff]
    %v457 = vld [vmem:[#allocation12 + $0x50] sm:$0xff]
    %v458 = vld [vmem:[#allocation12 + $0x58] sm:$0xff]
    %v459 = vld [vmem:[#allocation12 + $0x60] sm:$0xff]
    %v460 = vld [vmem:[#allocation12 + $0x68] sm:$0xff]
    %v461 = vld [vmem:[#allocation12 + $0x70] sm:$0xff]
    %v462 = vld [vmem:[#allocation12 + $0x78] sm:$0xff]
    %v463 = vld [vmem:[#allocation12 + $0x80] sm:$0xff]
    %v464 = vld [vmem:[#allocation12 + $0x88] sm:$0xff]
    %v465 = vld [vmem:[#allocation12 + $0x90] sm:$0xff]
    %v466 = vld [vmem:[#allocation12 + $0x98] sm:$0xff]
    %v467 = vld [vmem:[#allocation12 + $0xa0] sm:$0xff]
    %v468 = vld [vmem:[#allocation12 + $0xa8] sm:$0xff]
    %v469 = vld [vmem:[#allocation12 + $0xb0] sm:$0xff]
    %v470 = vld [vmem:[#allocation12 + $0xb8] sm:$0xff]
    %v471 = vld [vmem:[#allocation12 + $0xc0] sm:$0xff]
    %v472 = vld [vmem:[#allocation12 + $0xc8] sm:$0xff]
    %v473 = vld [vmem:[#allocation12 + $0xd0] sm:$0xff]
    %v474 = vld [vmem:[#allocation12 + $0xd8] sm:$0xff]
    %v475 = vld [vmem:[#allocation12 + $0xe0] sm:$0xff]
    %v476 = vld [vmem:[#allocation12 + $0xe8] sm:$0xff]
    %v477 = vld [vmem:[#allocation12 + $0xf0] sm:$0xff]
    %v478 = vld [vmem:[#allocation12 + $0xf8] sm:$0xff]
    %v479 = vld [vmem:[#allocation12 + $0x100] sm:$0xff]
    %v480 = vld [vmem:[#allocation12 + $0x108] sm:$0xff]
    %v481 = vld [vmem:[#allocation12 + $0x110] sm:$0xff]
    %v482 = vld [vmem:[#allocation12 + $0x118] sm:$0xff]
    %v483 = vld [vmem:[#allocation12 + $0x120] sm:$0xff]
    %v484 = vld [vmem:[#allocation12 + $0x128] sm:$0xff]
    %v485 = vld [vmem:[#allocation12 + $0x130] sm:$0xff]
    %v486 = vld [vmem:[#allocation12 + $0x138] sm:$0xff]
    %v487 = vld [vmem:[#allocation12 + $0x140] sm:$0xff]
    %v488 = vld [vmem:[#allocation12 + $0x148] sm:$0xff]
    %v489 = vld [vmem:[#allocation12 + $0x150] sm:$0xff]
    %v490 = vld [vmem:[#allocation12 + $0x158] sm:$0xff]
    %v491 = vld [vmem:[#allocation12 + $0x160] sm:$0xff]
    %v492 = vld [vmem:[#allocation12 + $0x168] sm:$0xff]
    %v493 = vld [vmem:[#allocation12 + $0x170] sm:$0xff]
    %v494 = vld [vmem:[#allocation12 + $0x178] sm:$0xff]
    %v495 = vld [vmem:[#allocation12 + $0x180] sm:$0xff]
    %v496 = vld [vmem:[#allocation12 + $0x188] sm:$0xff]
    %v497 = vld [vmem:[#allocation12 + $0x190] sm:$0xff]
    %v498 = vld [vmem:[#allocation12 + $0x198] sm:$0xff]
    %v499 = vld [vmem:[#allocation12 + $0x1a0] sm:$0xff]
    %v500 = vld [vmem:[#allocation12 + $0x1a8] sm:$0xff]
    %v501 = vld [vmem:[#allocation12 + $0x1b0] sm:$0xff]
    %v502 = vld [vmem:[#allocation12 + $0x1b8] sm:$0xff]
    %v503 = vld [vmem:[#allocation12 + $0x1c0] sm:$0xff]
    %v504 = vld [vmem:[#allocation12 + $0x1c8] sm:$0xff]
    %v505 = vld [vmem:[#allocation12 + $0x1d0] sm:$0xff]
    %v506 = vld [vmem:[#allocation12 + $0x1d8] sm:$0xff]
    %v507 = vld [vmem:[#allocation12 + $0x1e0] sm:$0xff]
    %v508 = vld [vmem:[#allocation12 + $0x1e8] sm:$0xff]
    %v509 = vld [vmem:[#allocation12 + $0x1f0] sm:$0xff]
    %v510 = vld [vmem:[#allocation12 + $0x1f8] sm:$0xff]
    %v575 = vunpack.c.l.b16 %v447
    %v576 = vunpack.c.h.b16 %v447
    %v577 = vunpack.c.l.b16 %v448
    %v578 = vunpack.c.h.b16 %v448
    %v579 = vunpack.c.l.b16 %v449
    %v580 = vunpack.c.h.b16 %v449
    %v581 = vunpack.c.l.b16 %v450
    %v582 = vunpack.c.h.b16 %v450
    %v583 = vunpack.c.l.b16 %v451
    %v584 = vunpack.c.h.b16 %v451
    %v585 = vunpack.c.l.b16 %v452
    %v586 = vunpack.c.h.b16 %v452
    %v587 = vunpack.c.l.b16 %v453
    %v588 = vunpack.c.h.b16 %v453
    %v589 = vunpack.c.l.b16 %v454
    %v590 = vunpack.c.h.b16 %v454
    %v591 = vunpack.c.l.b16 %v455
    %v592 = vunpack.c.h.b16 %v455
    %v593 = vunpack.c.l.b16 %v456
    %v594 = vunpack.c.h.b16 %v456
    %v595 = vunpack.c.l.b16 %v457
    %v596 = vunpack.c.h.b16 %v457
    %v597 = vunpack.c.l.b16 %v458
    %v598 = vunpack.c.h.b16 %v458
    %v599 = vunpack.c.l.b16 %v459
    %v600 = vunpack.c.h.b16 %v459
    %v601 = vunpack.c.l.b16 %v460
    %v602 = vunpack.c.h.b16 %v460
    %v603 = vunpack.c.l.b16 %v461
    %v604 = vunpack.c.h.b16 %v461
    %v605 = vunpack.c.l.b16 %v462
    %v606 = vunpack.c.h.b16 %v462
    %v607 = vunpack.c.l.b16 %v463
    %v608 = vunpack.c.h.b16 %v463
    %v609 = vunpack.c.l.b16 %v464
    %v610 = vunpack.c.h.b16 %v464
    %v611 = vunpack.c.l.b16 %v465
    %v612 = vunpack.c.h.b16 %v465
    %v613 = vunpack.c.l.b16 %v466
    %v614 = vunpack.c.h.b16 %v466
    %v615 = vunpack.c.l.b16 %v467
    %v616 = vunpack.c.h.b16 %v467
    %v617 = vunpack.c.l.b16 %v468
    %v618 = vunpack.c.h.b16 %v468
    %v619 = vunpack.c.l.b16 %v469
    %v620 = vunpack.c.h.b16 %v469
    %v621 = vunpack.c.l.b16 %v470
    %v622 = vunpack.c.h.b16 %v470
    %v623 = vunpack.c.l.b16 %v471
    %v624 = vunpack.c.h.b16 %v471
    %v625 = vunpack.c.l.b16 %v472
    %v626 = vunpack.c.h.b16 %v472
    %v627 = vunpack.c.l.b16 %v473
    %v628 = vunpack.c.h.b16 %v473
    %v629 = vunpack.c.l.b16 %v474
    %v630 = vunpack.c.h.b16 %v474
    %v631 = vunpack.c.l.b16 %v475
    %v632 = vunpack.c.h.b16 %v475
    %v633 = vunpack.c.l.b16 %v476
    %v634 = vunpack.c.h.b16 %v476
    %v635 = vunpack.c.l.b16 %v477
    %v636 = vunpack.c.h.b16 %v477
    %v637 = vunpack.c.l.b16 %v478
    %v638 = vunpack.c.h.b16 %v478
    %v639 = vunpack.c.l.b16 %v479
    %v640 = vunpack.c.h.b16 %v479
    %v641 = vunpack.c.l.b16 %v480
    %v642 = vunpack.c.h.b16 %v480
    %v643 = vunpack.c.l.b16 %v481
    %v644 = vunpack.c.h.b16 %v481
    %v645 = vunpack.c.l.b16 %v482
    %v646 = vunpack.c.h.b16 %v482
    %v647 = vunpack.c.l.b16 %v483
    %v648 = vunpack.c.h.b16 %v483
    %v649 = vunpack.c.l.b16 %v484
    %v650 = vunpack.c.h.b16 %v484
    %v651 = vunpack.c.l.b16 %v485
    %v652 = vunpack.c.h.b16 %v485
    %v653 = vunpack.c.l.b16 %v486
    %v654 = vunpack.c.h.b16 %v486
    %v655 = vunpack.c.l.b16 %v487
    %v656 = vunpack.c.h.b16 %v487
    %v657 = vunpack.c.l.b16 %v488
    %v658 = vunpack.c.h.b16 %v488
    %v659 = vunpack.c.l.b16 %v489
    %v660 = vunpack.c.h.b16 %v489
    %v661 = vunpack.c.l.b16 %v490
    %v662 = vunpack.c.h.b16 %v490
    %v663 = vunpack.c.l.b16 %v491
    %v664 = vunpack.c.h.b16 %v491
    %v665 = vunpack.c.l.b16 %v492
    %v666 = vunpack.c.h.b16 %v492
    %v667 = vunpack.c.l.b16 %v493
    %v668 = vunpack.c.h.b16 %v493
    %v669 = vunpack.c.l.b16 %v494
    %v670 = vunpack.c.h.b16 %v494
    %v671 = vunpack.c.l.b16 %v495
    %v672 = vunpack.c.h.b16 %v495
    %v673 = vunpack.c.l.b16 %v496
    %v674 = vunpack.c.h.b16 %v496
    %v675 = vunpack.c.l.b16 %v497
    %v676 = vunpack.c.h.b16 %v497
    %v677 = vunpack.c.l.b16 %v498
    %v678 = vunpack.c.h.b16 %v498
    %v679 = vunpack.c.l.b16 %v499
    %v680 = vunpack.c.h.b16 %v499
    %v681 = vunpack.c.l.b16 %v500
    %v682 = vunpack.c.h.b16 %v500
    %v683 = vunpack.c.l.b16 %v501
    %v684 = vunpack.c.h.b16 %v501
    %v685 = vunpack.c.l.b16 %v502
    %v686 = vunpack.c.h.b16 %v502
    %v687 = vunpack.c.l.b16 %v503
    %v688 = vunpack.c.h.b16 %v503
    %v689 = vunpack.c.l.b16 %v504
    %v690 = vunpack.c.h.b16 %v504
    %v691 = vunpack.c.l.b16 %v505
    %v692 = vunpack.c.h.b16 %v505
    %v693 = vunpack.c.l.b16 %v506
    %v694 = vunpack.c.h.b16 %v506
    %v695 = vunpack.c.l.b16 %v507
    %v696 = vunpack.c.h.b16 %v507
    %v697 = vunpack.c.l.b16 %v508
    %v698 = vunpack.c.h.b16 %v508
    %v699 = vunpack.c.l.b16 %v509
    %v700 = vunpack.c.h.b16 %v509
    %v701 = vunpack.c.l.b16 %v510
    %v702 = vunpack.c.h.b16 %v510
    %v703 = vpack.c.b16 %v579, %v575
    %v704 = vpack.c.b16 %v580, %v576
    %v705 = vpack.c.b16 %v581, %v577
    %v706 = vpack.c.b16 %v582, %v578
    %v707 = vpack.c.b16 %v587, %v583
    %v708 = vpack.c.b16 %v588, %v584
    %v709 = vpack.c.b16 %v589, %v585
    %v710 = vpack.c.b16 %v590, %v586
    %v711 = vpack.c.b16 %v595, %v591
    %v712 = vpack.c.b16 %v596, %v592
    %v713 = vpack.c.b16 %v597, %v593
    %v714 = vpack.c.b16 %v598, %v594
    %v715 = vpack.c.b16 %v603, %v599
    %v716 = vpack.c.b16 %v604, %v600
    %v717 = vpack.c.b16 %v605, %v601
    %v718 = vpack.c.b16 %v606, %v602
    %v719 = vpack.c.b16 %v611, %v607
    %v720 = vpack.c.b16 %v612, %v608
    %v721 = vpack.c.b16 %v613, %v609
    %v722 = vpack.c.b16 %v614, %v610
    %v723 = vpack.c.b16 %v619, %v615
    %v724 = vpack.c.b16 %v620, %v616
    %v725 = vpack.c.b16 %v621, %v617
    %v726 = vpack.c.b16 %v622, %v618
    %v727 = vpack.c.b16 %v627, %v623
    %v728 = vpack.c.b16 %v628, %v624
    %v729 = vpack.c.b16 %v629, %v625
    %v730 = vpack.c.b16 %v630, %v626
    %v731 = vpack.c.b16 %v635, %v631
    %v732 = vpack.c.b16 %v636, %v632
    %v733 = vpack.c.b16 %v637, %v633
    %v734 = vpack.c.b16 %v638, %v634
    %v735 = vpack.c.b16 %v643, %v639
    %v736 = vpack.c.b16 %v644, %v640
    %v737 = vpack.c.b16 %v645, %v641
    %v738 = vpack.c.b16 %v646, %v642
    %v739 = vpack.c.b16 %v651, %v647
    %v740 = vpack.c.b16 %v652, %v648
    %v741 = vpack.c.b16 %v653, %v649
    %v742 = vpack.c.b16 %v654, %v650
    %v743 = vpack.c.b16 %v659, %v655
    %v744 = vpack.c.b16 %v660, %v656
    %v745 = vpack.c.b16 %v661, %v657
    %v746 = vpack.c.b16 %v662, %v658
    %v747 = vpack.c.b16 %v667, %v663
    %v748 = vpack.c.b16 %v668, %v664
    %v749 = vpack.c.b16 %v669, %v665
    %v750 = vpack.c.b16 %v670, %v666
    %v751 = vpack.c.b16 %v675, %v671
    %v752 = vpack.c.b16 %v676, %v672
    %v753 = vpack.c.b16 %v677, %v673
    %v754 = vpack.c.b16 %v678, %v674
    %v755 = vpack.c.b16 %v683, %v679
    %v756 = vpack.c.b16 %v684, %v680
    %v757 = vpack.c.b16 %v685, %v681
    %v758 = vpack.c.b16 %v686, %v682
    %v759 = vpack.c.b16 %v691, %v687
    %v760 = vpack.c.b16 %v692, %v688
    %v761 = vpack.c.b16 %v693, %v689
    %v762 = vpack.c.b16 %v694, %v690
    %v763 = vpack.c.b16 %v699, %v695
    %v764 = vpack.c.b16 %v700, %v696
    %v765 = vpack.c.b16 %v701, %v697
    %v766 = vpack.c.b16 %v702, %v698
    %831 = vmatprep.subr.bf16.mxu0 %v732
    %832 = vmatpush1.bf16.msra.mxu0 %v731
    %833 = vmatprep.subr.bf16.mxu0 %v728
    %834 = vmatpush1.bf16.msra.mxu0 %v727
    %835 = vmatprep.subr.bf16.mxu0 %v724
    %836 = vmatpush1.bf16.msra.mxu0 %v723
    %837 = vmatprep.subr.bf16.mxu0 %v720
    %838 = vmatpush1.bf16.msra.mxu0 %v719
    %839 = vmatprep.subr.bf16.mxu0 %v716
    %840 = vmatpush1.bf16.msra.mxu0 %v715
    %841 = vmatprep.subr.bf16.mxu0 %v712
    %842 = vmatpush1.bf16.msra.mxu0 %v711
    %843 = vmatprep.subr.bf16.mxu0 %v708
    %844 = vmatpush1.bf16.msra.mxu0 %v707
    %845 = vmatprep.subr.bf16.mxu0 %v704
    %846 = vmatpush1.bf16.msra.mxu0 %v703
    %847 = vmatprep.subr.bf16.mxu0 %v764
    %848 = vmatpush2.bf16.msra.mxu0 %v763
    %849 = vmatprep.subr.bf16.mxu0 %v760
    %850 = vmatpush2.bf16.msra.mxu0 %v759
    %851 = vmatprep.subr.bf16.mxu0 %v756
    %852 = vmatpush2.bf16.msra.mxu0 %v755
    %853 = vmatprep.subr.bf16.mxu0 %v752
    %854 = vmatpush2.bf16.msra.mxu0 %v751
    %855 = vmatprep.subr.bf16.mxu0 %v748
    %856 = vmatpush2.bf16.msra.mxu0 %v747
    %857 = vmatprep.subr.bf16.mxu0 %v744
    %858 = vmatpush2.bf16.msra.mxu0 %v743
    %859 = vmatprep.subr.bf16.mxu0 %v740
    %860 = vmatpush2.bf16.msra.mxu0 %v739
    %861 = vmatprep.subr.bf16.mxu0 %v736
    %862 = vmatpush2.bf16.msra.mxu0 %v735
    %863 = vmatprep.mubr.bf16.mxu0 %v446
    %864 = vmatmul.mubr.bf16.gmra.mxu0 %v445
    %v865 = vpop.f32.mrf.mxu0
    %v866 = vadd.f32 0.0, %v865
    %v867 = vpop.f32.mrf.mxu0
    %v868 = vadd.f32 0.0, %v867
    %v869 = vpop.f32.mrf.mxu0
    %v870 = vpop.f32.mrf.mxu0
    %871 = vdwg.mxu0
    %872 = vmatprep.subr.bf16.mxu0 %v734
    %873 = vmatpush1.bf16.msra.mxu0 %v733
    %874 = vmatprep.subr.bf16.mxu0 %v730
    %875 = vmatpush1.bf16.msra.mxu0 %v729
    %876 = vmatprep.subr.bf16.mxu0 %v726
    %877 = vmatpush1.bf16.msra.mxu0 %v725
    %878 = vmatprep.subr.bf16.mxu0 %v722
    %879 = vmatpush1.bf16.msra.mxu0 %v721
    %880 = vmatprep.subr.bf16.mxu0 %v718
    %881 = vmatpush1.bf16.msra.mxu0 %v717
    %882 = vmatprep.subr.bf16.mxu0 %v714
    %883 = vmatpush1.bf16.msra.mxu0 %v713
    %884 = vmatprep.subr.bf16.mxu0 %v710
    %885 = vmatpush1.bf16.msra.mxu0 %v709
    %886 = vmatprep.subr.bf16.mxu0 %v706
    %887 = vmatpush1.bf16.msra.mxu0 %v705
    %888 = vmatprep.subr.bf16.mxu0 %v766
    %889 = vmatpush2.bf16.msra.mxu0 %v765
    %890 = vmatprep.subr.bf16.mxu0 %v762
    %891 = vmatpush2.bf16.msra.mxu0 %v761
    %892 = vmatprep.subr.bf16.mxu0 %v758
    %893 = vmatpush2.bf16.msra.mxu0 %v757
    %894 = vmatprep.subr.bf16.mxu0 %v754
    %895 = vmatpush2.bf16.msra.mxu0 %v753
    %896 = vmatprep.subr.bf16.mxu0 %v750
    %897 = vmatpush2.bf16.msra.mxu0 %v749
    %898 = vmatprep.subr.bf16.mxu0 %v746
    %899 = vmatpush2.bf16.msra.mxu0 %v745
    %900 = vmatprep.subr.bf16.mxu0 %v742
    %901 = vmatpush2.bf16.msra.mxu0 %v741
    %902 = vmatprep.subr.bf16.mxu0 %v738
    %903 = vmatpush2.bf16.msra.mxu0 %v737
    %904 = vmatprep.mubr.bf16.mxu0 %v446
    %905 = vmatmul.mubr.bf16.gmra.mxu0 %v445
    %v906 = vpop.f32.mrf.mxu0
    %v907 = vadd.f32 0.0, %v906
    %v908 = vpop.f32.mrf.mxu0
    %v909 = vadd.f32 0.0, %v908
    %v910 = vpop.f32.mrf.mxu0
    %v911 = vpop.f32.mrf.mxu0
    %912 = vdwg.mxu0
    %v913 = vrot.slane %v866, 4
    %v914 = vadd.f32 %v866, %v913
    %v915 = vrot.slane %v914, 2
    %v916 = vadd.f32 %v914, %v915
    %v917 = vrot.slane %v916, 1
    %v918 = vadd.f32 %v916, %v917
    %v919 = vrot.slane %v868, 4
    %v920 = vadd.f32 %v868, %v919
    %v921 = vrot.slane %v920, 2
    %v922 = vadd.f32 %v920, %v921
    %v923 = vrot.slane %v922, 1
    %v924 = vadd.f32 %v922, %v923
    %v925 = vrot.slane %v907, 4
    %v926 = vadd.f32 %v907, %v925
    %v927 = vrot.slane %v926, 2
    %v928 = vadd.f32 %v926, %v927
    %v929 = vrot.slane %v928, 1
    %v930 = vadd.f32 %v928, %v929
    %v931 = vrot.slane %v909, 4
    %v932 = vadd.f32 %v909, %v931
    %v933 = vrot.slane %v932, 2
    %v934 = vadd.f32 %v932, %v933
    %v935 = vrot.slane %v934, 1
    %v936 = vadd.f32 %v934, %v935
    %v937 = vmul.f32 %v918, 0.125
    %v938 = vmul.f32 %v924, 0.125
    %v939 = vmul.f32 %v930, 0.125
    %v940 = vmul.f32 %v936, 0.125
    %v941 = vsub.f32 %v866, %v937
    %v942 = vsub.f32 %v868, %v938
    %v943 = vsub.f32 %v907, %v939
    %v944 = vsub.f32 %v909, %v940
    %v945 = vmul.f32 %v941, %v941
    %v946 = vmul.f32 %v942, %v942
    %v947 = vmul.f32 %v943, %v943
    %v948 = vmul.f32 %v944, %v944
    %v949 = vrot.slane %v945, 4
    %v950 = vadd.f32 %v945, %v949
    %v951 = vrot.slane %v950, 2
    %v952 = vadd.f32 %v950, %v951
    %v953 = vrot.slane %v952, 1
    %v954 = vadd.f32 %v952, %v953
    %v955 = vrot.slane %v946, 4
    %v956 = vadd.f32 %v946, %v955
    %v957 = vrot.slane %v956, 2
    %v958 = vadd.f32 %v956, %v957
    %v959 = vrot.slane %v958, 1
    %v960 = vadd.f32 %v958, %v959
    %v961 = vrot.slane %v947, 4
    %v962 = vadd.f32 %v947, %v961
    %v963 = vrot.slane %v962, 2
    %v964 = vadd.f32 %v962, %v963
    %v965 = vrot.slane %v964, 1
    %v966 = vadd.f32 %v964, %v965
    %v967 = vrot.slane %v948, 4
    %v968 = vadd.f32 %v948, %v967
    %v969 = vrot.slane %v968, 2
    %v970 = vadd.f32 %v968, %v969
    %v971 = vrot.slane %v970, 1
    %v972 = vadd.f32 %v970, %v971
    %v973 = vmul.f32 %v954, 0.125
    %v974 = vmul.f32 %v960, 0.125
    %v975 = vmul.f32 %v966, 0.125
    %v976 = vmul.f32 %v972, 0.125
    %v977 = vadd.f32 %v973, 0.8
    %v978 = vadd.f32 %v974, 0.8
    %v979 = vadd.f32 %v975, 0.8
    %v980 = vadd.f32 %v976, 0.8
    %v981 = vrsqrt.pop %v977
    %v982 = vrsqrt.pop %v978
    %v983 = vrsqrt.pop %v979
    %v984 = vrsqrt.pop %v980
    %v985 = vmul.f32 %v941, %v981
    %v986 = vmul.f32 %v942, %v982
    %v987 = vmul.f32 %v943, %v983
    %v988 = vmul.f32 %v944, %v984
    %v990 = vlaneseq
    %v991 = vshrl.u32 %v990, 7
    %v992 = vsub.s32 0, %v991
    %v993 = vrot.slane %v116, %v992
    %v994 = vlaneseq
    %v995 = vshrl.u32 %v994, 7
    %v996 = vsub.s32 1, %v995
    %v997 = vrot.slane %v116, %v996
    %v998 = vlaneseq
    %v999 = vshrl.u32 %v998, 7
    %v1000 = vsub.s32 2, %v999
    %v1001 = vrot.slane %v116, %v1000
    %v1002 = vlaneseq
    %v1003 = vshrl.u32 %v1002, 7
    %v1004 = vsub.s32 3, %v1003
    %v1005 = vrot.slane %v116, %v1004
    %v1010 = vmul.f32 %v985, %v993
    %v1011 = vmul.f32 %v986, %v997
    %v1012 = vmul.f32 %v987, %v1001
    %v1013 = vmul.f32 %v988, %v1005
    %v1015 = vlaneseq
    %v1016 = vshrl.u32 %v1015, 7
    %v1017 = vsub.s32 0, %v1016
    %v1018 = vrot.slane %v118, %v1017
    %v1019 = vlaneseq
    %v1020 = vshrl.u32 %v1019, 7
    %v1021 = vsub.s32 1, %v1020
    %v1022 = vrot.slane %v118, %v1021
    %v1023 = vlaneseq
    %v1024 = vshrl.u32 %v1023, 7
    %v1025 = vsub.s32 2, %v1024
    %v1026 = vrot.slane %v118, %v1025
    %v1027 = vlaneseq
    %v1028 = vshrl.u32 %v1027, 7
    %v1029 = vsub.s32 3, %v1028
    %v1030 = vrot.slane %v118, %v1029
    %v1035 = vadd.f32 %v1010, %v1018
    %v1036 = vadd.f32 %v1011, %v1022
    %v1037 = vadd.f32 %v1012, %v1026
    %v1038 = vadd.f32 %v1013, %v1030
    %v1039 = vmul.f32 %v1035, 0.2
    %v1040 = vmul.f32 %v1036, 0.2
    %v1041 = vmul.f32 %v1037, 0.2
    %v1042 = vmul.f32 %v1038, 0.2
    %v1043 = vmax.f32 %v1035, %v1039
    %v1044 = vmax.f32 %v1036, %v1040
    %v1045 = vmax.f32 %v1037, %v1041
    %v1046 = vmax.f32 %v1038, %v1042
    %s1047 = smul.u32 4, 64
    %s1048 = smul.u32 %s1047, 8
    %s1049 = sshll.u32 %s1048, 4
    %1050 = dma.done [#allocation4], %s1049
    %v1051 = vpack.c.bf16 %v1043, %v1043
    %v1052 = vpack.c.bf16 %v1044, %v1044
    %v1053 = vpack.c.bf16 %v1045, %v1045
    %v1054 = vpack.c.bf16 %v1046, %v1046
    %v1055 = vld [vmem:[#allocation2] sm:$0xff]
    %v1056 = vld [vmem:[#allocation2 + $0x8] sm:$0xff]
    %v1057 = vld [vmem:[#allocation2 + $0x10] sm:$0xff]
    %v1058 = vld [vmem:[#allocation2 + $0x18] sm:$0xff]
    %v1059 = vld [vmem:[#allocation2 + $0x20] sm:$0xff]
    %v1060 = vld [vmem:[#allocation2 + $0x28] sm:$0xff]
    %v1061 = vld [vmem:[#allocation2 + $0x30] sm:$0xff]
    %v1062 = vld [vmem:[#allocation2 + $0x38] sm:$0xff]
    %v1063 = vld [vmem:[#allocation2 + $0x40] sm:$0xff]
    %v1064 = vld [vmem:[#allocation2 + $0x48] sm:$0xff]
    %v1065 = vld [vmem:[#allocation2 + $0x50] sm:$0xff]
    %v1066 = vld [vmem:[#allocation2 + $0x58] sm:$0xff]
    %v1067 = vld [vmem:[#allocation2 + $0x60] sm:$0xff]
    %v1068 = vld [vmem:[#allocation2 + $0x68] sm:$0xff]
    %v1069 = vld [vmem:[#allocation2 + $0x70] sm:$0xff]
    %v1070 = vld [vmem:[#allocation2 + $0x78] sm:$0xff]
    %v1071 = vld [vmem:[#allocation2 + $0x80] sm:$0xff]
    %v1072 = vld [vmem:[#allocation2 + $0x88] sm:$0xff]
    %v1073 = vld [vmem:[#allocation2 + $0x90] sm:$0xff]
    %v1074 = vld [vmem:[#allocation2 + $0x98] sm:$0xff]
    %v1075 = vld [vmem:[#allocation2 + $0xa0] sm:$0xff]
    %v1076 = vld [vmem:[#allocation2 + $0xa8] sm:$0xff]
    %v1077 = vld [vmem:[#allocation2 + $0xb0] sm:$0xff]
    %v1078 = vld [vmem:[#allocation2 + $0xb8] sm:$0xff]
    %v1079 = vld [vmem:[#allocation2 + $0xc0] sm:$0xff]
    %v1080 = vld [vmem:[#allocation2 + $0xc8] sm:$0xff]
    %v1081 = vld [vmem:[#allocation2 + $0xd0] sm:$0xff]
    %v1082 = vld [vmem:[#allocation2 + $0xd8] sm:$0xff]
    %v1083 = vld [vmem:[#allocation2 + $0xe0] sm:$0xff]
    %v1084 = vld [vmem:[#allocation2 + $0xe8] sm:$0xff]
    %v1085 = vld [vmem:[#allocation2 + $0xf0] sm:$0xff]
    %v1086 = vld [vmem:[#allocation2 + $0xf8] sm:$0xff]
    %v1087 = vld [vmem:[#allocation2 + $0x100] sm:$0xff]
    %v1088 = vld [vmem:[#allocation2 + $0x108] sm:$0xff]
    %v1089 = vld [vmem:[#allocation2 + $0x110] sm:$0xff]
    %v1090 = vld [vmem:[#allocation2 + $0x118] sm:$0xff]
    %v1091 = vld [vmem:[#allocation2 + $0x120] sm:$0xff]
    %v1092 = vld [vmem:[#allocation2 + $0x128] sm:$0xff]
    %v1093 = vld [vmem:[#allocation2 + $0x130] sm:$0xff]
    %v1094 = vld [vmem:[#allocation2 + $0x138] sm:$0xff]
    %v1095 = vld [vmem:[#allocation2 + $0x140] sm:$0xff]
    %v1096 = vld [vmem:[#allocation2 + $0x148] sm:$0xff]
    %v1097 = vld [vmem:[#allocation2 + $0x150] sm:$0xff]
    %v1098 = vld [vmem:[#allocation2 + $0x158] sm:$0xff]
    %v1099 = vld [vmem:[#allocation2 + $0x160] sm:$0xff]
    %v1100 = vld [vmem:[#allocation2 + $0x168] sm:$0xff]
    %v1101 = vld [vmem:[#allocation2 + $0x170] sm:$0xff]
    %v1102 = vld [vmem:[#allocation2 + $0x178] sm:$0xff]
    %v1103 = vld [vmem:[#allocation2 + $0x180] sm:$0xff]
    %v1104 = vld [vmem:[#allocation2 + $0x188] sm:$0xff]
    %v1105 = vld [vmem:[#allocation2 + $0x190] sm:$0xff]
    %v1106 = vld [vmem:[#allocation2 + $0x198] sm:$0xff]
    %v1107 = vld [vmem:[#allocation2 + $0x1a0] sm:$0xff]
    %v1108 = vld [vmem:[#allocation2 + $0x1a8] sm:$0xff]
    %v1109 = vld [vmem:[#allocation2 + $0x1b0] sm:$0xff]
    %v1110 = vld [vmem:[#allocation2 + $0x1b8] sm:$0xff]
    %v1111 = vld [vmem:[#allocation2 + $0x1c0] sm:$0xff]
    %v1112 = vld [vmem:[#allocation2 + $0x1c8] sm:$0xff]
    %v1113 = vld [vmem:[#allocation2 + $0x1d0] sm:$0xff]
    %v1114 = vld [vmem:[#allocation2 + $0x1d8] sm:$0xff]
    %v1115 = vld [vmem:[#allocation2 + $0x1e0] sm:$0xff]
    %v1116 = vld [vmem:[#allocation2 + $0x1e8] sm:$0xff]
    %v1117 = vld [vmem:[#allocation2 + $0x1f0] sm:$0xff]
    %v1118 = vld [vmem:[#allocation2 + $0x1f8] sm:$0xff]
    %v1119 = vld [vmem:[#allocation2 + $0x200] sm:$0xff]
    %v1120 = vld [vmem:[#allocation2 + $0x208] sm:$0xff]
    %v1121 = vld [vmem:[#allocation2 + $0x210] sm:$0xff]
    %v1122 = vld [vmem:[#allocation2 + $0x218] sm:$0xff]
    %v1123 = vld [vmem:[#allocation2 + $0x220] sm:$0xff]
    %v1124 = vld [vmem:[#allocation2 + $0x228] sm:$0xff]
    %v1125 = vld [vmem:[#allocation2 + $0x230] sm:$0xff]
    %v1126 = vld [vmem:[#allocation2 + $0x238] sm:$0xff]
    %v1127 = vld [vmem:[#allocation2 + $0x240] sm:$0xff]
    %v1128 = vld [vmem:[#allocation2 + $0x248] sm:$0xff]
    %v1129 = vld [vmem:[#allocation2 + $0x250] sm:$0xff]
    %v1130 = vld [vmem:[#allocation2 + $0x258] sm:$0xff]
    %v1131 = vld [vmem:[#allocation2 + $0x260] sm:$0xff]
    %v1132 = vld [vmem:[#allocation2 + $0x268] sm:$0xff]
    %v1133 = vld [vmem:[#allocation2 + $0x270] sm:$0xff]
    %v1134 = vld [vmem:[#allocation2 + $0x278] sm:$0xff]
    %v1135 = vld [vmem:[#allocation2 + $0x280] sm:$0xff]
    %v1136 = vld [vmem:[#allocation2 + $0x288] sm:$0xff]
    %v1137 = vld [vmem:[#allocation2 + $0x290] sm:$0xff]
    %v1138 = vld [vmem:[#allocation2 + $0x298] sm:$0xff]
    %v1139 = vld [vmem:[#allocation2 + $0x2a0] sm:$0xff]
    %v1140 = vld [vmem:[#allocation2 + $0x2a8] sm:$0xff]
    %v1141 = vld [vmem:[#allocation2 + $0x2b0] sm:$0xff]
    %v1142 = vld [vmem:[#allocation2 + $0x2b8] sm:$0xff]
    %v1143 = vld [vmem:[#allocation2 + $0x2c0] sm:$0xff]
    %v1144 = vld [vmem:[#allocation2 + $0x2c8] sm:$0xff]
    %v1145 = vld [vmem:[#allocation2 + $0x2d0] sm:$0xff]
    %v1146 = vld [vmem:[#allocation2 + $0x2d8] sm:$0xff]
    %v1147 = vld [vmem:[#allocation2 + $0x2e0] sm:$0xff]
    %v1148 = vld [vmem:[#allocation2 + $0x2e8] sm:$0xff]
    %v1149 = vld [vmem:[#allocation2 + $0x2f0] sm:$0xff]
    %v1150 = vld [vmem:[#allocation2 + $0x2f8] sm:$0xff]
    %v1151 = vld [vmem:[#allocation2 + $0x300] sm:$0xff]
    %v1152 = vld [vmem:[#allocation2 + $0x308] sm:$0xff]
    %v1153 = vld [vmem:[#allocation2 + $0x310] sm:$0xff]
    %v1154 = vld [vmem:[#allocation2 + $0x318] sm:$0xff]
    %v1155 = vld [vmem:[#allocation2 + $0x320] sm:$0xff]
    %v1156 = vld [vmem:[#allocation2 + $0x328] sm:$0xff]
    %v1157 = vld [vmem:[#allocation2 + $0x330] sm:$0xff]
    %v1158 = vld [vmem:[#allocation2 + $0x338] sm:$0xff]
    %v1159 = vld [vmem:[#allocation2 + $0x340] sm:$0xff]
    %v1160 = vld [vmem:[#allocation2 + $0x348] sm:$0xff]
    %v1161 = vld [vmem:[#allocation2 + $0x350] sm:$0xff]
    %v1162 = vld [vmem:[#allocation2 + $0x358] sm:$0xff]
    %v1163 = vld [vmem:[#allocation2 + $0x360] sm:$0xff]
    %v1164 = vld [vmem:[#allocation2 + $0x368] sm:$0xff]
    %v1165 = vld [vmem:[#allocation2 + $0x370] sm:$0xff]
    %v1166 = vld [vmem:[#allocation2 + $0x378] sm:$0xff]
    %v1167 = vld [vmem:[#allocation2 + $0x380] sm:$0xff]
    %v1168 = vld [vmem:[#allocation2 + $0x388] sm:$0xff]
    %v1169 = vld [vmem:[#allocation2 + $0x390] sm:$0xff]
    %v1170 = vld [vmem:[#allocation2 + $0x398] sm:$0xff]
    %v1171 = vld [vmem:[#allocation2 + $0x3a0] sm:$0xff]
    %v1172 = vld [vmem:[#allocation2 + $0x3a8] sm:$0xff]
    %v1173 = vld [vmem:[#allocation2 + $0x3b0] sm:$0xff]
    %v1174 = vld [vmem:[#allocation2 + $0x3b8] sm:$0xff]
    %v1175 = vld [vmem:[#allocation2 + $0x3c0] sm:$0xff]
    %v1176 = vld [vmem:[#allocation2 + $0x3c8] sm:$0xff]
    %v1177 = vld [vmem:[#allocation2 + $0x3d0] sm:$0xff]
    %v1178 = vld [vmem:[#allocation2 + $0x3d8] sm:$0xff]
    %v1179 = vld [vmem:[#allocation2 + $0x3e0] sm:$0xff]
    %v1180 = vld [vmem:[#allocation2 + $0x3e8] sm:$0xff]
    %v1181 = vld [vmem:[#allocation2 + $0x3f0] sm:$0xff]
    %v1182 = vld [vmem:[#allocation2 + $0x3f8] sm:$0xff]
    %v1183 = vld [vmem:[#allocation2 + $0x400] sm:$0xff]
    %v1184 = vld [vmem:[#allocation2 + $0x408] sm:$0xff]
    %v1185 = vld [vmem:[#allocation2 + $0x410] sm:$0xff]
    %v1186 = vld [vmem:[#allocation2 + $0x418] sm:$0xff]
    %v1187 = vld [vmem:[#allocation2 + $0x420] sm:$0xff]
    %v1188 = vld [vmem:[#allocation2 + $0x428] sm:$0xff]
    %v1189 = vld [vmem:[#allocation2 + $0x430] sm:$0xff]
    %v1190 = vld [vmem:[#allocation2 + $0x438] sm:$0xff]
    %v1191 = vld [vmem:[#allocation2 + $0x440] sm:$0xff]
    %v1192 = vld [vmem:[#allocation2 + $0x448] sm:$0xff]
    %v1193 = vld [vmem:[#allocation2 + $0x450] sm:$0xff]
    %v1194 = vld [vmem:[#allocation2 + $0x458] sm:$0xff]
    %v1195 = vld [vmem:[#allocation2 + $0x460] sm:$0xff]
    %v1196 = vld [vmem:[#allocation2 + $0x468] sm:$0xff]
    %v1197 = vld [vmem:[#allocation2 + $0x470] sm:$0xff]
    %v1198 = vld [vmem:[#allocation2 + $0x478] sm:$0xff]
    %v1199 = vld [vmem:[#allocation2 + $0x480] sm:$0xff]
    %v1200 = vld [vmem:[#allocation2 + $0x488] sm:$0xff]
    %v1201 = vld [vmem:[#allocation2 + $0x490] sm:$0xff]
    %v1202 = vld [vmem:[#allocation2 + $0x498] sm:$0xff]
    %v1203 = vld [vmem:[#allocation2 + $0x4a0] sm:$0xff]
    %v1204 = vld [vmem:[#allocation2 + $0x4a8] sm:$0xff]
    %v1205 = vld [vmem:[#allocation2 + $0x4b0] sm:$0xff]
    %v1206 = vld [vmem:[#allocation2 + $0x4b8] sm:$0xff]
    %v1207 = vld [vmem:[#allocation2 + $0x4c0] sm:$0xff]
    %v1208 = vld [vmem:[#allocation2 + $0x4c8] sm:$0xff]
    %v1209 = vld [vmem:[#allocation2 + $0x4d0] sm:$0xff]
    %v1210 = vld [vmem:[#allocation2 + $0x4d8] sm:$0xff]
    %v1211 = vld [vmem:[#allocation2 + $0x4e0] sm:$0xff]
    %v1212 = vld [vmem:[#allocation2 + $0x4e8] sm:$0xff]
    %v1213 = vld [vmem:[#allocation2 + $0x4f0] sm:$0xff]
    %v1214 = vld [vmem:[#allocation2 + $0x4f8] sm:$0xff]
    %v1215 = vld [vmem:[#allocation2 + $0x500] sm:$0xff]
    %v1216 = vld [vmem:[#allocation2 + $0x508] sm:$0xff]
    %v1217 = vld [vmem:[#allocation2 + $0x510] sm:$0xff]
    %v1218 = vld [vmem:[#allocation2 + $0x518] sm:$0xff]
    %v1219 = vld [vmem:[#allocation2 + $0x520] sm:$0xff]
    %v1220 = vld [vmem:[#allocation2 + $0x528] sm:$0xff]
    %v1221 = vld [vmem:[#allocation2 + $0x530] sm:$0xff]
    %v1222 = vld [vmem:[#allocation2 + $0x538] sm:$0xff]
    %v1223 = vld [vmem:[#allocation2 + $0x540] sm:$0xff]
    %v1224 = vld [vmem:[#allocation2 + $0x548] sm:$0xff]
    %v1225 = vld [vmem:[#allocation2 + $0x550] sm:$0xff]
    %v1226 = vld [vmem:[#allocation2 + $0x558] sm:$0xff]
    %v1227 = vld [vmem:[#allocation2 + $0x560] sm:$0xff]
    %v1228 = vld [vmem:[#allocation2 + $0x568] sm:$0xff]
    %v1229 = vld [vmem:[#allocation2 + $0x570] sm:$0xff]
    %v1230 = vld [vmem:[#allocation2 + $0x578] sm:$0xff]
    %v1231 = vld [vmem:[#allocation2 + $0x580] sm:$0xff]
    %v1232 = vld [vmem:[#allocation2 + $0x588] sm:$0xff]
    %v1233 = vld [vmem:[#allocation2 + $0x590] sm:$0xff]
    %v1234 = vld [vmem:[#allocation2 + $0x598] sm:$0xff]
    %v1235 = vld [vmem:[#allocation2 + $0x5a0] sm:$0xff]
    %v1236 = vld [vmem:[#allocation2 + $0x5a8] sm:$0xff]
    %v1237 = vld [vmem:[#allocation2 + $0x5b0] sm:$0xff]
    %v1238 = vld [vmem:[#allocation2 + $0x5b8] sm:$0xff]
    %v1239 = vld [vmem:[#allocation2 + $0x5c0] sm:$0xff]
    %v1240 = vld [vmem:[#allocation2 + $0x5c8] sm:$0xff]
    %v1241 = vld [vmem:[#allocation2 + $0x5d0] sm:$0xff]
    %v1242 = vld [vmem:[#allocation2 + $0x5d8] sm:$0xff]
    %v1243 = vld [vmem:[#allocation2 + $0x5e0] sm:$0xff]
    %v1244 = vld [vmem:[#allocation2 + $0x5e8] sm:$0xff]
    %v1245 = vld [vmem:[#allocation2 + $0x5f0] sm:$0xff]
    %v1246 = vld [vmem:[#allocation2 + $0x5f8] sm:$0xff]
    %v1247 = vld [vmem:[#allocation2 + $0x600] sm:$0xff]
    %v1248 = vld [vmem:[#allocation2 + $0x608] sm:$0xff]
    %v1249 = vld [vmem:[#allocation2 + $0x610] sm:$0xff]
    %v1250 = vld [vmem:[#allocation2 + $0x618] sm:$0xff]
    %v1251 = vld [vmem:[#allocation2 + $0x620] sm:$0xff]
    %v1252 = vld [vmem:[#allocation2 + $0x628] sm:$0xff]
    %v1253 = vld [vmem:[#allocation2 + $0x630] sm:$0xff]
    %v1254 = vld [vmem:[#allocation2 + $0x638] sm:$0xff]
    %v1255 = vld [vmem:[#allocation2 + $0x640] sm:$0xff]
    %v1256 = vld [vmem:[#allocation2 + $0x648] sm:$0xff]
    %v1257 = vld [vmem:[#allocation2 + $0x650] sm:$0xff]
    %v1258 = vld [vmem:[#allocation2 + $0x658] sm:$0xff]
    %v1259 = vld [vmem:[#allocation2 + $0x660] sm:$0xff]
    %v1260 = vld [vmem:[#allocation2 + $0x668] sm:$0xff]
    %v1261 = vld [vmem:[#allocation2 + $0x670] sm:$0xff]
    %v1262 = vld [vmem:[#allocation2 + $0x678] sm:$0xff]
    %v1263 = vld [vmem:[#allocation2 + $0x680] sm:$0xff]
    %v1264 = vld [vmem:[#allocation2 + $0x688] sm:$0xff]
    %v1265 = vld [vmem:[#allocation2 + $0x690] sm:$0xff]
    %v1266 = vld [vmem:[#allocation2 + $0x698] sm:$0xff]
    %v1267 = vld [vmem:[#allocation2 + $0x6a0] sm:$0xff]
    %v1268 = vld [vmem:[#allocation2 + $0x6a8] sm:$0xff]
    %v1269 = vld [vmem:[#allocation2 + $0x6b0] sm:$0xff]
    %v1270 = vld [vmem:[#allocation2 + $0x6b8] sm:$0xff]
    %v1271 = vld [vmem:[#allocation2 + $0x6c0] sm:$0xff]
    %v1272 = vld [vmem:[#allocation2 + $0x6c8] sm:$0xff]
    %v1273 = vld [vmem:[#allocation2 + $0x6d0] sm:$0xff]
    %v1274 = vld [vmem:[#allocation2 + $0x6d8] sm:$0xff]
    %v1275 = vld [vmem:[#allocation2 + $0x6e0] sm:$0xff]
    %v1276 = vld [vmem:[#allocation2 + $0x6e8] sm:$0xff]
    %v1277 = vld [vmem:[#allocation2 + $0x6f0] sm:$0xff]
    %v1278 = vld [vmem:[#allocation2 + $0x6f8] sm:$0xff]
    %v1279 = vld [vmem:[#allocation2 + $0x700] sm:$0xff]
    %v1280 = vld [vmem:[#allocation2 + $0x708] sm:$0xff]
    %v1281 = vld [vmem:[#allocation2 + $0x710] sm:$0xff]
    %v1282 = vld [vmem:[#allocation2 + $0x718] sm:$0xff]
    %v1283 = vld [vmem:[#allocation2 + $0x720] sm:$0xff]
    %v1284 = vld [vmem:[#allocation2 + $0x728] sm:$0xff]
    %v1285 = vld [vmem:[#allocation2 + $0x730] sm:$0xff]
    %v1286 = vld [vmem:[#allocation2 + $0x738] sm:$0xff]
    %v1287 = vld [vmem:[#allocation2 + $0x740] sm:$0xff]
    %v1288 = vld [vmem:[#allocation2 + $0x748] sm:$0xff]
    %v1289 = vld [vmem:[#allocation2 + $0x750] sm:$0xff]
    %v1290 = vld [vmem:[#allocation2 + $0x758] sm:$0xff]
    %v1291 = vld [vmem:[#allocation2 + $0x760] sm:$0xff]
    %v1292 = vld [vmem:[#allocation2 + $0x768] sm:$0xff]
    %v1293 = vld [vmem:[#allocation2 + $0x770] sm:$0xff]
    %v1294 = vld [vmem:[#allocation2 + $0x778] sm:$0xff]
    %v1295 = vld [vmem:[#allocation2 + $0x780] sm:$0xff]
    %v1296 = vld [vmem:[#allocation2 + $0x788] sm:$0xff]
    %v1297 = vld [vmem:[#allocation2 + $0x790] sm:$0xff]
    %v1298 = vld [vmem:[#allocation2 + $0x798] sm:$0xff]
    %v1299 = vld [vmem:[#allocation2 + $0x7a0] sm:$0xff]
    %v1300 = vld [vmem:[#allocation2 + $0x7a8] sm:$0xff]
    %v1301 = vld [vmem:[#allocation2 + $0x7b0] sm:$0xff]
    %v1302 = vld [vmem:[#allocation2 + $0x7b8] sm:$0xff]
    %v1303 = vld [vmem:[#allocation2 + $0x7c0] sm:$0xff]
    %v1304 = vld [vmem:[#allocation2 + $0x7c8] sm:$0xff]
    %v1305 = vld [vmem:[#allocation2 + $0x7d0] sm:$0xff]
    %v1306 = vld [vmem:[#allocation2 + $0x7d8] sm:$0xff]
    %v1307 = vld [vmem:[#allocation2 + $0x7e0] sm:$0xff]
    %v1308 = vld [vmem:[#allocation2 + $0x7e8] sm:$0xff]
    %v1309 = vld [vmem:[#allocation2 + $0x7f0] sm:$0xff]
    %v1310 = vld [vmem:[#allocation2 + $0x7f8] sm:$0xff]
    %v1567 = vunpack.c.l.b16 %v1055
    %v1568 = vunpack.c.h.b16 %v1055
    %v1569 = vunpack.c.l.b16 %v1056
    %v1570 = vunpack.c.h.b16 %v1056
    %v1571 = vunpack.c.l.b16 %v1057
    %v1572 = vunpack.c.h.b16 %v1057
    %v1573 = vunpack.c.l.b16 %v1058
    %v1574 = vunpack.c.h.b16 %v1058
    %v1575 = vunpack.c.l.b16 %v1059
    %v1576 = vunpack.c.h.b16 %v1059
    %v1577 = vunpack.c.l.b16 %v1060
    %v1578 = vunpack.c.h.b16 %v1060
    %v1579 = vunpack.c.l.b16 %v1061
    %v1580 = vunpack.c.h.b16 %v1061
    %v1581 = vunpack.c.l.b16 %v1062
    %v1582 = vunpack.c.h.b16 %v1062
    %v1583 = vunpack.c.l.b16 %v1063
    %v1584 = vunpack.c.h.b16 %v1063
    %v1585 = vunpack.c.l.b16 %v1064
    %v1586 = vunpack.c.h.b16 %v1064
    %v1587 = vunpack.c.l.b16 %v1065
    %v1588 = vunpack.c.h.b16 %v1065
    %v1589 = vunpack.c.l.b16 %v1066
    %v1590 = vunpack.c.h.b16 %v1066
    %v1591 = vunpack.c.l.b16 %v1067
    %v1592 = vunpack.c.h.b16 %v1067
    %v1593 = vunpack.c.l.b16 %v1068
    %v1594 = vunpack.c.h.b16 %v1068
    %v1595 = vunpack.c.l.b16 %v1069
    %v1596 = vunpack.c.h.b16 %v1069
    %v1597 = vunpack.c.l.b16 %v1070
    %v1598 = vunpack.c.h.b16 %v1070
    %v1599 = vunpack.c.l.b16 %v1071
    %v1600 = vunpack.c.h.b16 %v1071
    %v1601 = vunpack.c.l.b16 %v1072
    %v1602 = vunpack.c.h.b16 %v1072
    %v1603 = vunpack.c.l.b16 %v1073
    %v1604 = vunpack.c.h.b16 %v1073
    %v1605 = vunpack.c.l.b16 %v1074
    %v1606 = vunpack.c.h.b16 %v1074
    %v1607 = vunpack.c.l.b16 %v1075
    %v1608 = vunpack.c.h.b16 %v1075
    %v1609 = vunpack.c.l.b16 %v1076
    %v1610 = vunpack.c.h.b16 %v1076
    %v1611 = vunpack.c.l.b16 %v1077
    %v1612 = vunpack.c.h.b16 %v1077
    %v1613 = vunpack.c.l.b16 %v1078
    %v1614 = vunpack.c.h.b16 %v1078
    %v1615 = vunpack.c.l.b16 %v1079
    %v1616 = vunpack.c.h.b16 %v1079
    %v1617 = vunpack.c.l.b16 %v1080
    %v1618 = vunpack.c.h.b16 %v1080
    %v1619 = vunpack.c.l.b16 %v1081
    %v1620 = vunpack.c.h.b16 %v1081
    %v1621 = vunpack.c.l.b16 %v1082
    %v1622 = vunpack.c.h.b16 %v1082
    %v1623 = vunpack.c.l.b16 %v1083
    %v1624 = vunpack.c.h.b16 %v1083
    %v1625 = vunpack.c.l.b16 %v1084
    %v1626 = vunpack.c.h.b16 %v1084
    %v1627 = vunpack.c.l.b16 %v1085
    %v1628 = vunpack.c.h.b16 %v1085
    %v1629 = vunpack.c.l.b16 %v1086
    %v1630 = vunpack.c.h.b16 %v1086
    %v1631 = vunpack.c.l.b16 %v1087
    %v1632 = vunpack.c.h.b16 %v1087
    %v1633 = vunpack.c.l.b16 %v1088
    %v1634 = vunpack.c.h.b16 %v1088
    %v1635 = vunpack.c.l.b16 %v1089
    %v1636 = vunpack.c.h.b16 %v1089
    %v1637 = vunpack.c.l.b16 %v1090
    %v1638 = vunpack.c.h.b16 %v1090
    %v1639 = vunpack.c.l.b16 %v1091
    %v1640 = vunpack.c.h.b16 %v1091
    %v1641 = vunpack.c.l.b16 %v1092
    %v1642 = vunpack.c.h.b16 %v1092
    %v1643 = vunpack.c.l.b16 %v1093
    %v1644 = vunpack.c.h.b16 %v1093
    %v1645 = vunpack.c.l.b16 %v1094
    %v1646 = vunpack.c.h.b16 %v1094
    %v1647 = vunpack.c.l.b16 %v1095
    %v1648 = vunpack.c.h.b16 %v1095
    %v1649 = vunpack.c.l.b16 %v1096
    %v1650 = vunpack.c.h.b16 %v1096
    %v1651 = vunpack.c.l.b16 %v1097
    %v1652 = vunpack.c.h.b16 %v1097
    %v1653 = vunpack.c.l.b16 %v1098
    %v1654 = vunpack.c.h.b16 %v1098
    %v1655 = vunpack.c.l.b16 %v1099
    %v1656 = vunpack.c.h.b16 %v1099
    %v1657 = vunpack.c.l.b16 %v1100
    %v1658 = vunpack.c.h.b16 %v1100
    %v1659 = vunpack.c.l.b16 %v1101
    %v1660 = vunpack.c.h.b16 %v1101
    %v1661 = vunpack.c.l.b16 %v1102
    %v1662 = vunpack.c.h.b16 %v1102
    %v1663 = vunpack.c.l.b16 %v1103
    %v1664 = vunpack.c.h.b16 %v1103
    %v1665 = vunpack.c.l.b16 %v1104
    %v1666 = vunpack.c.h.b16 %v1104
    %v1667 = vunpack.c.l.b16 %v1105
    %v1668 = vunpack.c.h.b16 %v1105
    %v1669 = vunpack.c.l.b16 %v1106
    %v1670 = vunpack.c.h.b16 %v1106
    %v1671 = vunpack.c.l.b16 %v1107
    %v1672 = vunpack.c.h.b16 %v1107
    %v1673 = vunpack.c.l.b16 %v1108
    %v1674 = vunpack.c.h.b16 %v1108
    %v1675 = vunpack.c.l.b16 %v1109
    %v1676 = vunpack.c.h.b16 %v1109
    %v1677 = vunpack.c.l.b16 %v1110
    %v1678 = vunpack.c.h.b16 %v1110
    %v1679 = vunpack.c.l.b16 %v1111
    %v1680 = vunpack.c.h.b16 %v1111
    %v1681 = vunpack.c.l.b16 %v1112
    %v1682 = vunpack.c.h.b16 %v1112
    %v1683 = vunpack.c.l.b16 %v1113
    %v1684 = vunpack.c.h.b16 %v1113
    %v1685 = vunpack.c.l.b16 %v1114
    %v1686 = vunpack.c.h.b16 %v1114
    %v1687 = vunpack.c.l.b16 %v1115
    %v1688 = vunpack.c.h.b16 %v1115
    %v1689 = vunpack.c.l.b16 %v1116
    %v1690 = vunpack.c.h.b16 %v1116
    %v1691 = vunpack.c.l.b16 %v1117
    %v1692 = vunpack.c.h.b16 %v1117
    %v1693 = vunpack.c.l.b16 %v1118
    %v1694 = vunpack.c.h.b16 %v1118
    %v1695 = vunpack.c.l.b16 %v1119
    %v1696 = vunpack.c.h.b16 %v1119
    %v1697 = vunpack.c.l.b16 %v1120
    %v1698 = vunpack.c.h.b16 %v1120
    %v1699 = vunpack.c.l.b16 %v1121
    %v1700 = vunpack.c.h.b16 %v1121
    %v1701 = vunpack.c.l.b16 %v1122
    %v1702 = vunpack.c.h.b16 %v1122
    %v1703 = vunpack.c.l.b16 %v1123
    %v1704 = vunpack.c.h.b16 %v1123
    %v1705 = vunpack.c.l.b16 %v1124
    %v1706 = vunpack.c.h.b16 %v1124
    %v1707 = vunpack.c.l.b16 %v1125
    %v1708 = vunpack.c.h.b16 %v1125
    %v1709 = vunpack.c.l.b16 %v1126
    %v1710 = vunpack.c.h.b16 %v1126
    %v1711 = vunpack.c.l.b16 %v1127
    %v1712 = vunpack.c.h.b16 %v1127
    %v1713 = vunpack.c.l.b16 %v1128
    %v1714 = vunpack.c.h.b16 %v1128
    %v1715 = vunpack.c.l.b16 %v1129
    %v1716 = vunpack.c.h.b16 %v1129
    %v1717 = vunpack.c.l.b16 %v1130
    %v1718 = vunpack.c.h.b16 %v1130
    %v1719 = vunpack.c.l.b16 %v1131
    %v1720 = vunpack.c.h.b16 %v1131
    %v1721 = vunpack.c.l.b16 %v1132
    %v1722 = vunpack.c.h.b16 %v1132
    %v1723 = vunpack.c.l.b16 %v1133
    %v1724 = vunpack.c.h.b16 %v1133
    %v1725 = vunpack.c.l.b16 %v1134
    %v1726 = vunpack.c.h.b16 %v1134
    %v1727 = vunpack.c.l.b16 %v1135
    %v1728 = vunpack.c.h.b16 %v1135
    %v1729 = vunpack.c.l.b16 %v1136
    %v1730 = vunpack.c.h.b16 %v1136
    %v1731 = vunpack.c.l.b16 %v1137
    %v1732 = vunpack.c.h.b16 %v1137
    %v1733 = vunpack.c.l.b16 %v1138
    %v1734 = vunpack.c.h.b16 %v1138
    %v1735 = vunpack.c.l.b16 %v1139
    %v1736 = vunpack.c.h.b16 %v1139
    %v1737 = vunpack.c.l.b16 %v1140
    %v1738 = vunpack.c.h.b16 %v1140
    %v1739 = vunpack.c.l.b16 %v1141
    %v1740 = vunpack.c.h.b16 %v1141
    %v1741 = vunpack.c.l.b16 %v1142
    %v1742 = vunpack.c.h.b16 %v1142
    %v1743 = vunpack.c.l.b16 %v1143
    %v1744 = vunpack.c.h.b16 %v1143
    %v1745 = vunpack.c.l.b16 %v1144
    %v1746 = vunpack.c.h.b16 %v1144
    %v1747 = vunpack.c.l.b16 %v1145
    %v1748 = vunpack.c.h.b16 %v1145
    %v1749 = vunpack.c.l.b16 %v1146
    %v1750 = vunpack.c.h.b16 %v1146
    %v1751 = vunpack.c.l.b16 %v1147
    %v1752 = vunpack.c.h.b16 %v1147
    %v1753 = vunpack.c.l.b16 %v1148
    %v1754 = vunpack.c.h.b16 %v1148
    %v1755 = vunpack.c.l.b16 %v1149
    %v1756 = vunpack.c.h.b16 %v1149
    %v1757 = vunpack.c.l.b16 %v1150
    %v1758 = vunpack.c.h.b16 %v1150
    %v1759 = vunpack.c.l.b16 %v1151
    %v1760 = vunpack.c.h.b16 %v1151
    %v1761 = vunpack.c.l.b16 %v1152
    %v1762 = vunpack.c.h.b16 %v1152
    %v1763 = vunpack.c.l.b16 %v1153
    %v1764 = vunpack.c.h.b16 %v1153
    %v1765 = vunpack.c.l.b16 %v1154
    %v1766 = vunpack.c.h.b16 %v1154
    %v1767 = vunpack.c.l.b16 %v1155
    %v1768 = vunpack.c.h.b16 %v1155
    %v1769 = vunpack.c.l.b16 %v1156
    %v1770 = vunpack.c.h.b16 %v1156
    %v1771 = vunpack.c.l.b16 %v1157
    %v1772 = vunpack.c.h.b16 %v1157
    %v1773 = vunpack.c.l.b16 %v1158
    %v1774 = vunpack.c.h.b16 %v1158
    %v1775 = vunpack.c.l.b16 %v1159
    %v1776 = vunpack.c.h.b16 %v1159
    %v1777 = vunpack.c.l.b16 %v1160
    %v1778 = vunpack.c.h.b16 %v1160
    %v1779 = vunpack.c.l.b16 %v1161
    %v1780 = vunpack.c.h.b16 %v1161
    %v1781 = vunpack.c.l.b16 %v1162
    %v1782 = vunpack.c.h.b16 %v1162
    %v1783 = vunpack.c.l.b16 %v1163
    %v1784 = vunpack.c.h.b16 %v1163
    %v1785 = vunpack.c.l.b16 %v1164
    %v1786 = vunpack.c.h.b16 %v1164
    %v1787 = vunpack.c.l.b16 %v1165
    %v1788 = vunpack.c.h.b16 %v1165
    %v1789 = vunpack.c.l.b16 %v1166
    %v1790 = vunpack.c.h.b16 %v1166
    %v1791 = vunpack.c.l.b16 %v1167
    %v1792 = vunpack.c.h.b16 %v1167
    %v1793 = vunpack.c.l.b16 %v1168
    %v1794 = vunpack.c.h.b16 %v1168
    %v1795 = vunpack.c.l.b16 %v1169
    %v1796 = vunpack.c.h.b16 %v1169
    %v1797 = vunpack.c.l.b16 %v1170
    %v1798 = vunpack.c.h.b16 %v1170
    %v1799 = vunpack.c.l.b16 %v1171
    %v1800 = vunpack.c.h.b16 %v1171
    %v1801 = vunpack.c.l.b16 %v1172
    %v1802 = vunpack.c.h.b16 %v1172
    %v1803 = vunpack.c.l.b16 %v1173
    %v1804 = vunpack.c.h.b16 %v1173
    %v1805 = vunpack.c.l.b16 %v1174
    %v1806 = vunpack.c.h.b16 %v1174
    %v1807 = vunpack.c.l.b16 %v1175
    %v1808 = vunpack.c.h.b16 %v1175
    %v1809 = vunpack.c.l.b16 %v1176
    %v1810 = vunpack.c.h.b16 %v1176
    %v1811 = vunpack.c.l.b16 %v1177
    %v1812 = vunpack.c.h.b16 %v1177
    %v1813 = vunpack.c.l.b16 %v1178
    %v1814 = vunpack.c.h.b16 %v1178
    %v1815 = vunpack.c.l.b16 %v1179
    %v1816 = vunpack.c.h.b16 %v1179
    %v1817 = vunpack.c.l.b16 %v1180
    %v1818 = vunpack.c.h.b16 %v1180
    %v1819 = vunpack.c.l.b16 %v1181
    %v1820 = vunpack.c.h.b16 %v1181
    %v1821 = vunpack.c.l.b16 %v1182
    %v1822 = vunpack.c.h.b16 %v1182
    %v1823 = vunpack.c.l.b16 %v1183
    %v1824 = vunpack.c.h.b16 %v1183
    %v1825 = vunpack.c.l.b16 %v1184
    %v1826 = vunpack.c.h.b16 %v1184
    %v1827 = vunpack.c.l.b16 %v1185
    %v1828 = vunpack.c.h.b16 %v1185
    %v1829 = vunpack.c.l.b16 %v1186
    %v1830 = vunpack.c.h.b16 %v1186
    %v1831 = vunpack.c.l.b16 %v1187
    %v1832 = vunpack.c.h.b16 %v1187
    %v1833 = vunpack.c.l.b16 %v1188
    %v1834 = vunpack.c.h.b16 %v1188
    %v1835 = vunpack.c.l.b16 %v1189
    %v1836 = vunpack.c.h.b16 %v1189
    %v1837 = vunpack.c.l.b16 %v1190
    %v1838 = vunpack.c.h.b16 %v1190
    %v1839 = vunpack.c.l.b16 %v1191
    %v1840 = vunpack.c.h.b16 %v1191
    %v1841 = vunpack.c.l.b16 %v1192
    %v1842 = vunpack.c.h.b16 %v1192
    %v1843 = vunpack.c.l.b16 %v1193
    %v1844 = vunpack.c.h.b16 %v1193
    %v1845 = vunpack.c.l.b16 %v1194
    %v1846 = vunpack.c.h.b16 %v1194
    %v1847 = vunpack.c.l.b16 %v1195
    %v1848 = vunpack.c.h.b16 %v1195
    %v1849 = vunpack.c.l.b16 %v1196
    %v1850 = vunpack.c.h.b16 %v1196
    %v1851 = vunpack.c.l.b16 %v1197
    %v1852 = vunpack.c.h.b16 %v1197
    %v1853 = vunpack.c.l.b16 %v1198
    %v1854 = vunpack.c.h.b16 %v1198
    %v1855 = vunpack.c.l.b16 %v1199
    %v1856 = vunpack.c.h.b16 %v1199
    %v1857 = vunpack.c.l.b16 %v1200
    %v1858 = vunpack.c.h.b16 %v1200
    %v1859 = vunpack.c.l.b16 %v1201
    %v1860 = vunpack.c.h.b16 %v1201
    %v1861 = vunpack.c.l.b16 %v1202
    %v1862 = vunpack.c.h.b16 %v1202
    %v1863 = vunpack.c.l.b16 %v1203
    %v1864 = vunpack.c.h.b16 %v1203
    %v1865 = vunpack.c.l.b16 %v1204
    %v1866 = vunpack.c.h.b16 %v1204
    %v1867 = vunpack.c.l.b16 %v1205
    %v1868 = vunpack.c.h.b16 %v1205
    %v1869 = vunpack.c.l.b16 %v1206
    %v1870 = vunpack.c.h.b16 %v1206
    %v1871 = vunpack.c.l.b16 %v1207
    %v1872 = vunpack.c.h.b16 %v1207
    %v1873 = vunpack.c.l.b16 %v1208
    %v1874 = vunpack.c.h.b16 %v1208
    %v1875 = vunpack.c.l.b16 %v1209
    %v1876 = vunpack.c.h.b16 %v1209
    %v1877 = vunpack.c.l.b16 %v1210
    %v1878 = vunpack.c.h.b16 %v1210
    %v1879 = vunpack.c.l.b16 %v1211
    %v1880 = vunpack.c.h.b16 %v1211
    %v1881 = vunpack.c.l.b16 %v1212
    %v1882 = vunpack.c.h.b16 %v1212
    %v1883 = vunpack.c.l.b16 %v1213
    %v1884 = vunpack.c.h.b16 %v1213
    %v1885 = vunpack.c.l.b16 %v1214
    %v1886 = vunpack.c.h.b16 %v1214
    %v1887 = vunpack.c.l.b16 %v1215
    %v1888 = vunpack.c.h.b16 %v1215
    %v1889 = vunpack.c.l.b16 %v1216
    %v1890 = vunpack.c.h.b16 %v1216
    %v1891 = vunpack.c.l.b16 %v1217
    %v1892 = vunpack.c.h.b16 %v1217
    %v1893 = vunpack.c.l.b16 %v1218
    %v1894 = vunpack.c.h.b16 %v1218
    %v1895 = vunpack.c.l.b16 %v1219
    %v1896 = vunpack.c.h.b16 %v1219
    %v1897 = vunpack.c.l.b16 %v1220
    %v1898 = vunpack.c.h.b16 %v1220
    %v1899 = vunpack.c.l.b16 %v1221
    %v1900 = vunpack.c.h.b16 %v1221
    %v1901 = vunpack.c.l.b16 %v1222
    %v1902 = vunpack.c.h.b16 %v1222
    %v1903 = vunpack.c.l.b16 %v1223
    %v1904 = vunpack.c.h.b16 %v1223
    %v1905 = vunpack.c.l.b16 %v1224
    %v1906 = vunpack.c.h.b16 %v1224
    %v1907 = vunpack.c.l.b16 %v1225
    %v1908 = vunpack.c.h.b16 %v1225
    %v1909 = vunpack.c.l.b16 %v1226
    %v1910 = vunpack.c.h.b16 %v1226
    %v1911 = vunpack.c.l.b16 %v1227
    %v1912 = vunpack.c.h.b16 %v1227
    %v1913 = vunpack.c.l.b16 %v1228
    %v1914 = vunpack.c.h.b16 %v1228
    %v1915 = vunpack.c.l.b16 %v1229
    %v1916 = vunpack.c.h.b16 %v1229
    %v1917 = vunpack.c.l.b16 %v1230
    %v1918 = vunpack.c.h.b16 %v1230
    %v1919 = vunpack.c.l.b16 %v1231
    %v1920 = vunpack.c.h.b16 %v1231
    %v1921 = vunpack.c.l.b16 %v1232
    %v1922 = vunpack.c.h.b16 %v1232
    %v1923 = vunpack.c.l.b16 %v1233
    %v1924 = vunpack.c.h.b16 %v1233
    %v1925 = vunpack.c.l.b16 %v1234
    %v1926 = vunpack.c.h.b16 %v1234
    %v1927 = vunpack.c.l.b16 %v1235
    %v1928 = vunpack.c.h.b16 %v1235
    %v1929 = vunpack.c.l.b16 %v1236
    %v1930 = vunpack.c.h.b16 %v1236
    %v1931 = vunpack.c.l.b16 %v1237
    %v1932 = vunpack.c.h.b16 %v1237
    %v1933 = vunpack.c.l.b16 %v1238
    %v1934 = vunpack.c.h.b16 %v1238
    %v1935 = vunpack.c.l.b16 %v1239
    %v1936 = vunpack.c.h.b16 %v1239
    %v1937 = vunpack.c.l.b16 %v1240
    %v1938 = vunpack.c.h.b16 %v1240
    %v1939 = vunpack.c.l.b16 %v1241
    %v1940 = vunpack.c.h.b16 %v1241
    %v1941 = vunpack.c.l.b16 %v1242
    %v1942 = vunpack.c.h.b16 %v1242
    %v1943 = vunpack.c.l.b16 %v1243
    %v1944 = vunpack.c.h.b16 %v1243
    %v1945 = vunpack.c.l.b16 %v1244
    %v1946 = vunpack.c.h.b16 %v1244
    %v1947 = vunpack.c.l.b16 %v1245
    %v1948 = vunpack.c.h.b16 %v1245
    %v1949 = vunpack.c.l.b16 %v1246
    %v1950 = vunpack.c.h.b16 %v1246
    %v1951 = vunpack.c.l.b16 %v1247
    %v1952 = vunpack.c.h.b16 %v1247
    %v1953 = vunpack.c.l.b16 %v1248
    %v1954 = vunpack.c.h.b16 %v1248
    %v1955 = vunpack.c.l.b16 %v1249
    %v1956 = vunpack.c.h.b16 %v1249
    %v1957 = vunpack.c.l.b16 %v1250
    %v1958 = vunpack.c.h.b16 %v1250
    %v1959 = vunpack.c.l.b16 %v1251
    %v1960 = vunpack.c.h.b16 %v1251
    %v1961 = vunpack.c.l.b16 %v1252
    %v1962 = vunpack.c.h.b16 %v1252
    %v1963 = vunpack.c.l.b16 %v1253
    %v1964 = vunpack.c.h.b16 %v1253
    %v1965 = vunpack.c.l.b16 %v1254
    %v1966 = vunpack.c.h.b16 %v1254
    %v1967 = vunpack.c.l.b16 %v1255
    %v1968 = vunpack.c.h.b16 %v1255
    %v1969 = vunpack.c.l.b16 %v1256
    %v1970 = vunpack.c.h.b16 %v1256
    %v1971 = vunpack.c.l.b16 %v1257
    %v1972 = vunpack.c.h.b16 %v1257
    %v1973 = vunpack.c.l.b16 %v1258
    %v1974 = vunpack.c.h.b16 %v1258
    %v1975 = vunpack.c.l.b16 %v1259
    %v1976 = vunpack.c.h.b16 %v1259
    %v1977 = vunpack.c.l.b16 %v1260
    %v1978 = vunpack.c.h.b16 %v1260
    %v1979 = vunpack.c.l.b16 %v1261
    %v1980 = vunpack.c.h.b16 %v1261
    %v1981 = vunpack.c.l.b16 %v1262
    %v1982 = vunpack.c.h.b16 %v1262
    %v1983 = vunpack.c.l.b16 %v1263
    %v1984 = vunpack.c.h.b16 %v1263
    %v1985 = vunpack.c.l.b16 %v1264
    %v1986 = vunpack.c.h.b16 %v1264
    %v1987 = vunpack.c.l.b16 %v1265
    %v1988 = vunpack.c.h.b16 %v1265
    %v1989 = vunpack.c.l.b16 %v1266
    %v1990 = vunpack.c.h.b16 %v1266
    %v1991 = vunpack.c.l.b16 %v1267
    %v1992 = vunpack.c.h.b16 %v1267
    %v1993 = vunpack.c.l.b16 %v1268
    %v1994 = vunpack.c.h.b16 %v1268
    %v1995 = vunpack.c.l.b16 %v1269
    %v1996 = vunpack.c.h.b16 %v1269
    %v1997 = vunpack.c.l.b16 %v1270
    %v1998 = vunpack.c.h.b16 %v1270
    %v1999 = vunpack.c.l.b16 %v1271
    %v2000 = vunpack.c.h.b16 %v1271
    %v2001 = vunpack.c.l.b16 %v1272
    %v2002 = vunpack.c.h.b16 %v1272
    %v2003 = vunpack.c.l.b16 %v1273
    %v2004 = vunpack.c.h.b16 %v1273
    %v2005 = vunpack.c.l.b16 %v1274
    %v2006 = vunpack.c.h.b16 %v1274
    %v2007 = vunpack.c.l.b16 %v1275
    %v2008 = vunpack.c.h.b16 %v1275
    %v2009 = vunpack.c.l.b16 %v1276
    %v2010 = vunpack.c.h.b16 %v1276
    %v2011 = vunpack.c.l.b16 %v1277
    %v2012 = vunpack.c.h.b16 %v1277
    %v2013 = vunpack.c.l.b16 %v1278
    %v2014 = vunpack.c.h.b16 %v1278
    %v2015 = vunpack.c.l.b16 %v1279
    %v2016 = vunpack.c.h.b16 %v1279
    %v2017 = vunpack.c.l.b16 %v1280
    %v2018 = vunpack.c.h.b16 %v1280
    %v2019 = vunpack.c.l.b16 %v1281
    %v2020 = vunpack.c.h.b16 %v1281
    %v2021 = vunpack.c.l.b16 %v1282
    %v2022 = vunpack.c.h.b16 %v1282
    %v2023 = vunpack.c.l.b16 %v1283
    %v2024 = vunpack.c.h.b16 %v1283
    %v2025 = vunpack.c.l.b16 %v1284
    %v2026 = vunpack.c.h.b16 %v1284
    %v2027 = vunpack.c.l.b16 %v1285
    %v2028 = vunpack.c.h.b16 %v1285
    %v2029 = vunpack.c.l.b16 %v1286
    %v2030 = vunpack.c.h.b16 %v1286
    %v2031 = vunpack.c.l.b16 %v1287
    %v2032 = vunpack.c.h.b16 %v1287
    %v2033 = vunpack.c.l.b16 %v1288
    %v2034 = vunpack.c.h.b16 %v1288
    %v2035 = vunpack.c.l.b16 %v1289
    %v2036 = vunpack.c.h.b16 %v1289
    %v2037 = vunpack.c.l.b16 %v1290
    %v2038 = vunpack.c.h.b16 %v1290
    %v2039 = vunpack.c.l.b16 %v1291
    %v2040 = vunpack.c.h.b16 %v1291
    %v2041 = vunpack.c.l.b16 %v1292
    %v2042 = vunpack.c.h.b16 %v1292
    %v2043 = vunpack.c.l.b16 %v1293
    %v2044 = vunpack.c.h.b16 %v1293
    %v2045 = vunpack.c.l.b16 %v1294
    %v2046 = vunpack.c.h.b16 %v1294
    %v2047 = vunpack.c.l.b16 %v1295
    %v2048 = vunpack.c.h.b16 %v1295
    %v2049 = vunpack.c.l.b16 %v1296
    %v2050 = vunpack.c.h.b16 %v1296
    %v2051 = vunpack.c.l.b16 %v1297
    %v2052 = vunpack.c.h.b16 %v1297
    %v2053 = vunpack.c.l.b16 %v1298
    %v2054 = vunpack.c.h.b16 %v1298
    %v2055 = vunpack.c.l.b16 %v1299
    %v2056 = vunpack.c.h.b16 %v1299
    %v2057 = vunpack.c.l.b16 %v1300
    %v2058 = vunpack.c.h.b16 %v1300
    %v2059 = vunpack.c.l.b16 %v1301
    %v2060 = vunpack.c.h.b16 %v1301
    %v2061 = vunpack.c.l.b16 %v1302
    %v2062 = vunpack.c.h.b16 %v1302
    %v2063 = vunpack.c.l.b16 %v1303
    %v2064 = vunpack.c.h.b16 %v1303
    %v2065 = vunpack.c.l.b16 %v1304
    %v2066 = vunpack.c.h.b16 %v1304
    %v2067 = vunpack.c.l.b16 %v1305
    %v2068 = vunpack.c.h.b16 %v1305
    %v2069 = vunpack.c.l.b16 %v1306
    %v2070 = vunpack.c.h.b16 %v1306
    %v2071 = vunpack.c.l.b16 %v1307
    %v2072 = vunpack.c.h.b16 %v1307
    %v2073 = vunpack.c.l.b16 %v1308
    %v2074 = vunpack.c.h.b16 %v1308
    %v2075 = vunpack.c.l.b16 %v1309
    %v2076 = vunpack.c.h.b16 %v1309
    %v2077 = vunpack.c.l.b16 %v1310
    %v2078 = vunpack.c.h.b16 %v1310
    %v2079 = vpack.c.b16 %v1575, %v1567
    %v2080 = vpack.c.b16 %v1576, %v1568
    %v2081 = vpack.c.b16 %v1577, %v1569
    %v2082 = vpack.c.b16 %v1578, %v1570
    %v2083 = vpack.c.b16 %v1579, %v1571
    %v2084 = vpack.c.b16 %v1580, %v1572
    %v2085 = vpack.c.b16 %v1581, %v1573
    %v2086 = vpack.c.b16 %v1582, %v1574
    %v2087 = vpack.c.b16 %v1591, %v1583
    %v2088 = vpack.c.b16 %v1592, %v1584
    %v2089 = vpack.c.b16 %v1593, %v1585
    %v2090 = vpack.c.b16 %v1594, %v1586
    %v2091 = vpack.c.b16 %v1595, %v1587
    %v2092 = vpack.c.b16 %v1596, %v1588
    %v2093 = vpack.c.b16 %v1597, %v1589
    %v2094 = vpack.c.b16 %v1598, %v1590
    %v2095 = vpack.c.b16 %v1607, %v1599
    %v2096 = vpack.c.b16 %v1608, %v1600
    %v2097 = vpack.c.b16 %v1609, %v1601
    %v2098 = vpack.c.b16 %v1610, %v1602
    %v2099 = vpack.c.b16 %v1611, %v1603
    %v2100 = vpack.c.b16 %v1612, %v1604
    %v2101 = vpack.c.b16 %v1613, %v1605
    %v2102 = vpack.c.b16 %v1614, %v1606
    %v2103 = vpack.c.b16 %v1623, %v1615
    %v2104 = vpack.c.b16 %v1624, %v1616
    %v2105 = vpack.c.b16 %v1625, %v1617
    %v2106 = vpack.c.b16 %v1626, %v1618
    %v2107 = vpack.c.b16 %v1627, %v1619
    %v2108 = vpack.c.b16 %v1628, %v1620
    %v2109 = vpack.c.b16 %v1629, %v1621
    %v2110 = vpack.c.b16 %v1630, %v1622
    %v2111 = vpack.c.b16 %v1639, %v1631
    %v2112 = vpack.c.b16 %v1640, %v1632
    %v2113 = vpack.c.b16 %v1641, %v1633
    %v2114 = vpack.c.b16 %v1642, %v1634
    %v2115 = vpack.c.b16 %v1643, %v1635
    %v2116 = vpack.c.b16 %v1644, %v1636
    %v2117 = vpack.c.b16 %v1645, %v1637
    %v2118 = vpack.c.b16 %v1646, %v1638
    %v2119 = vpack.c.b16 %v1655, %v1647
    %v2120 = vpack.c.b16 %v1656, %v1648
    %v2121 = vpack.c.b16 %v1657, %v1649
    %v2122 = vpack.c.b16 %v1658, %v1650
    %v2123 = vpack.c.b16 %v1659, %v1651
    %v2124 = vpack.c.b16 %v1660, %v1652
    %v2125 = vpack.c.b16 %v1661, %v1653
    %v2126 = vpack.c.b16 %v1662, %v1654
    %v2127 = vpack.c.b16 %v1671, %v1663
    %v2128 = vpack.c.b16 %v1672, %v1664
    %v2129 = vpack.c.b16 %v1673, %v1665
    %v2130 = vpack.c.b16 %v1674, %v1666
    %v2131 = vpack.c.b16 %v1675, %v1667
    %v2132 = vpack.c.b16 %v1676, %v1668
    %v2133 = vpack.c.b16 %v1677, %v1669
    %v2134 = vpack.c.b16 %v1678, %v1670
    %v2135 = vpack.c.b16 %v1687, %v1679
    %v2136 = vpack.c.b16 %v1688, %v1680
    %v2137 = vpack.c.b16 %v1689, %v1681
    %v2138 = vpack.c.b16 %v1690, %v1682
    %v2139 = vpack.c.b16 %v1691, %v1683
    %v2140 = vpack.c.b16 %v1692, %v1684
    %v2141 = vpack.c.b16 %v1693, %v1685
    %v2142 = vpack.c.b16 %v1694, %v1686
    %v2143 = vpack.c.b16 %v1703, %v1695
    %v2144 = vpack.c.b16 %v1704, %v1696
    %v2145 = vpack.c.b16 %v1705, %v1697
    %v2146 = vpack.c.b16 %v1706, %v1698
    %v2147 = vpack.c.b16 %v1707, %v1699
    %v2148 = vpack.c.b16 %v1708, %v1700
    %v2149 = vpack.c.b16 %v1709, %v1701
    %v2150 = vpack.c.b16 %v1710, %v1702
    %v2151 = vpack.c.b16 %v1719, %v1711
    %v2152 = vpack.c.b16 %v1720, %v1712
    %v2153 = vpack.c.b16 %v1721, %v1713
    %v2154 = vpack.c.b16 %v1722, %v1714
    %v2155 = vpack.c.b16 %v1723, %v1715
    %v2156 = vpack.c.b16 %v1724, %v1716
    %v2157 = vpack.c.b16 %v1725, %v1717
    %v2158 = vpack.c.b16 %v1726, %v1718
    %v2159 = vpack.c.b16 %v1735, %v1727
    %v2160 = vpack.c.b16 %v1736, %v1728
    %v2161 = vpack.c.b16 %v1737, %v1729
    %v2162 = vpack.c.b16 %v1738, %v1730
    %v2163 = vpack.c.b16 %v1739, %v1731
    %v2164 = vpack.c.b16 %v1740, %v1732
    %v2165 = vpack.c.b16 %v1741, %v1733
    %v2166 = vpack.c.b16 %v1742, %v1734
    %v2167 = vpack.c.b16 %v1751, %v1743
    %v2168 = vpack.c.b16 %v1752, %v1744
    %v2169 = vpack.c.b16 %v1753, %v1745
    %v2170 = vpack.c.b16 %v1754, %v1746
    %v2171 = vpack.c.b16 %v1755, %v1747
    %v2172 = vpack.c.b16 %v1756, %v1748
    %v2173 = vpack.c.b16 %v1757, %v1749
    %v2174 = vpack.c.b16 %v1758, %v1750
    %v2175 = vpack.c.b16 %v1767, %v1759
    %v2176 = vpack.c.b16 %v1768, %v1760
    %v2177 = vpack.c.b16 %v1769, %v1761
    %v2178 = vpack.c.b16 %v1770, %v1762
    %v2179 = vpack.c.b16 %v1771, %v1763
    %v2180 = vpack.c.b16 %v1772, %v1764
    %v2181 = vpack.c.b16 %v1773, %v1765
    %v2182 = vpack.c.b16 %v1774, %v1766
    %v2183 = vpack.c.b16 %v1783, %v1775
    %v2184 = vpack.c.b16 %v1784, %v1776
    %v2185 = vpack.c.b16 %v1785, %v1777
    %v2186 = vpack.c.b16 %v1786, %v1778
    %v2187 = vpack.c.b16 %v1787, %v1779
    %v2188 = vpack.c.b16 %v1788, %v1780
    %v2189 = vpack.c.b16 %v1789, %v1781
    %v2190 = vpack.c.b16 %v1790, %v1782
    %v2191 = vpack.c.b16 %v1799, %v1791
    %v2192 = vpack.c.b16 %v1800, %v1792
    %v2193 = vpack.c.b16 %v1801, %v1793
    %v2194 = vpack.c.b16 %v1802, %v1794
    %v2195 = vpack.c.b16 %v1803, %v1795
    %v2196 = vpack.c.b16 %v1804, %v1796
    %v2197 = vpack.c.b16 %v1805, %v1797
    %v2198 = vpack.c.b16 %v1806, %v1798
    %v2199 = vpack.c.b16 %v1815, %v1807
    %v2200 = vpack.c.b16 %v1816, %v1808
    %v2201 = vpack.c.b16 %v1817, %v1809
    %v2202 = vpack.c.b16 %v1818, %v1810
    %v2203 = vpack.c.b16 %v1819, %v1811
    %v2204 = vpack.c.b16 %v1820, %v1812
    %v2205 = vpack.c.b16 %v1821, %v1813
    %v2206 = vpack.c.b16 %v1822, %v1814
    %v2207 = vpack.c.b16 %v1831, %v1823
    %v2208 = vpack.c.b16 %v1832, %v1824
    %v2209 = vpack.c.b16 %v1833, %v1825
    %v2210 = vpack.c.b16 %v1834, %v1826
    %v2211 = vpack.c.b16 %v1835, %v1827
    %v2212 = vpack.c.b16 %v1836, %v1828
    %v2213 = vpack.c.b16 %v1837, %v1829
    %v2214 = vpack.c.b16 %v1838, %v1830
    %v2215 = vpack.c.b16 %v1847, %v1839
    %v2216 = vpack.c.b16 %v1848, %v1840
    %v2217 = vpack.c.b16 %v1849, %v1841
    %v2218 = vpack.c.b16 %v1850, %v1842
    %v2219 = vpack.c.b16 %v1851, %v1843
    %v2220 = vpack.c.b16 %v1852, %v1844
    %v2221 = vpack.c.b16 %v1853, %v1845
    %v2222 = vpack.c.b16 %v1854, %v1846
    %v2223 = vpack.c.b16 %v1863, %v1855
    %v2224 = vpack.c.b16 %v1864, %v1856
    %v2225 = vpack.c.b16 %v1865, %v1857
    %v2226 = vpack.c.b16 %v1866, %v1858
    %v2227 = vpack.c.b16 %v1867, %v1859
    %v2228 = vpack.c.b16 %v1868, %v1860
    %v2229 = vpack.c.b16 %v1869, %v1861
    %v2230 = vpack.c.b16 %v1870, %v1862
    %v2231 = vpack.c.b16 %v1879, %v1871
    %v2232 = vpack.c.b16 %v1880, %v1872
    %v2233 = vpack.c.b16 %v1881, %v1873
    %v2234 = vpack.c.b16 %v1882, %v1874
    %v2235 = vpack.c.b16 %v1883, %v1875
    %v2236 = vpack.c.b16 %v1884, %v1876
    %v2237 = vpack.c.b16 %v1885, %v1877
    %v2238 = vpack.c.b16 %v1886, %v1878
    %v2239 = vpack.c.b16 %v1895, %v1887
    %v2240 = vpack.c.b16 %v1896, %v1888
    %v2241 = vpack.c.b16 %v1897, %v1889
    %v2242 = vpack.c.b16 %v1898, %v1890
    %v2243 = vpack.c.b16 %v1899, %v1891
    %v2244 = vpack.c.b16 %v1900, %v1892
    %v2245 = vpack.c.b16 %v1901, %v1893
    %v2246 = vpack.c.b16 %v1902, %v1894
    %v2247 = vpack.c.b16 %v1911, %v1903
    %v2248 = vpack.c.b16 %v1912, %v1904
    %v2249 = vpack.c.b16 %v1913, %v1905
    %v2250 = vpack.c.b16 %v1914, %v1906
    %v2251 = vpack.c.b16 %v1915, %v1907
    %v2252 = vpack.c.b16 %v1916, %v1908
    %v2253 = vpack.c.b16 %v1917, %v1909
    %v2254 = vpack.c.b16 %v1918, %v1910
    %v2255 = vpack.c.b16 %v1927, %v1919
    %v2256 = vpack.c.b16 %v1928, %v1920
    %v2257 = vpack.c.b16 %v1929, %v1921
    %v2258 = vpack.c.b16 %v1930, %v1922
    %v2259 = vpack.c.b16 %v1931, %v1923
    %v2260 = vpack.c.b16 %v1932, %v1924
    %v2261 = vpack.c.b16 %v1933, %v1925
    %v2262 = vpack.c.b16 %v1934, %v1926
    %v2263 = vpack.c.b16 %v1943, %v1935
    %v2264 = vpack.c.b16 %v1944, %v1936
    %v2265 = vpack.c.b16 %v1945, %v1937
    %v2266 = vpack.c.b16 %v1946, %v1938
    %v2267 = vpack.c.b16 %v1947, %v1939
    %v2268 = vpack.c.b16 %v1948, %v1940
    %v2269 = vpack.c.b16 %v1949, %v1941
    %v2270 = vpack.c.b16 %v1950, %v1942
    %v2271 = vpack.c.b16 %v1959, %v1951
    %v2272 = vpack.c.b16 %v1960, %v1952
    %v2273 = vpack.c.b16 %v1961, %v1953
    %v2274 = vpack.c.b16 %v1962, %v1954
    %v2275 = vpack.c.b16 %v1963, %v1955
    %v2276 = vpack.c.b16 %v1964, %v1956
    %v2277 = vpack.c.b16 %v1965, %v1957
    %v2278 = vpack.c.b16 %v1966, %v1958
    %v2279 = vpack.c.b16 %v1975, %v1967
    %v2280 = vpack.c.b16 %v1976, %v1968
    %v2281 = vpack.c.b16 %v1977, %v1969
    %v2282 = vpack.c.b16 %v1978, %v1970
    %v2283 = vpack.c.b16 %v1979, %v1971
    %v2284 = vpack.c.b16 %v1980, %v1972
    %v2285 = vpack.c.b16 %v1981, %v1973
    %v2286 = vpack.c.b16 %v1982, %v1974
    %v2287 = vpack.c.b16 %v1991, %v1983
    %v2288 = vpack.c.b16 %v1992, %v1984
    %v2289 = vpack.c.b16 %v1993, %v1985
    %v2290 = vpack.c.b16 %v1994, %v1986
    %v2291 = vpack.c.b16 %v1995, %v1987
    %v2292 = vpack.c.b16 %v1996, %v1988
    %v2293 = vpack.c.b16 %v1997, %v1989
    %v2294 = vpack.c.b16 %v1998, %v1990
    %v2295 = vpack.c.b16 %v2007, %v1999
    %v2296 = vpack.c.b16 %v2008, %v2000
    %v2297 = vpack.c.b16 %v2009, %v2001
    %v2298 = vpack.c.b16 %v2010, %v2002
    %v2299 = vpack.c.b16 %v2011, %v2003
    %v2300 = vpack.c.b16 %v2012, %v2004
    %v2301 = vpack.c.b16 %v2013, %v2005
    %v2302 = vpack.c.b16 %v2014, %v2006
    %v2303 = vpack.c.b16 %v2023, %v2015
    %v2304 = vpack.c.b16 %v2024, %v2016
    %v2305 = vpack.c.b16 %v2025, %v2017
    %v2306 = vpack.c.b16 %v2026, %v2018
    %v2307 = vpack.c.b16 %v2027, %v2019
    %v2308 = vpack.c.b16 %v2028, %v2020
    %v2309 = vpack.c.b16 %v2029, %v2021
    %v2310 = vpack.c.b16 %v2030, %v2022
    %v2311 = vpack.c.b16 %v2039, %v2031
    %v2312 = vpack.c.b16 %v2040, %v2032
    %v2313 = vpack.c.b16 %v2041, %v2033
    %v2314 = vpack.c.b16 %v2042, %v2034
    %v2315 = vpack.c.b16 %v2043, %v2035
    %v2316 = vpack.c.b16 %v2044, %v2036
    %v2317 = vpack.c.b16 %v2045, %v2037
    %v2318 = vpack.c.b16 %v2046, %v2038
    %v2319 = vpack.c.b16 %v2055, %v2047
    %v2320 = vpack.c.b16 %v2056, %v2048
    %v2321 = vpack.c.b16 %v2057, %v2049
    %v2322 = vpack.c.b16 %v2058, %v2050
    %v2323 = vpack.c.b16 %v2059, %v2051
    %v2324 = vpack.c.b16 %v2060, %v2052
    %v2325 = vpack.c.b16 %v2061, %v2053
    %v2326 = vpack.c.b16 %v2062, %v2054
    %v2327 = vpack.c.b16 %v2071, %v2063
    %v2328 = vpack.c.b16 %v2072, %v2064
    %v2329 = vpack.c.b16 %v2073, %v2065
    %v2330 = vpack.c.b16 %v2074, %v2066
    %v2331 = vpack.c.b16 %v2075, %v2067
    %v2332 = vpack.c.b16 %v2076, %v2068
    %v2333 = vpack.c.b16 %v2077, %v2069
    %v2334 = vpack.c.b16 %v2078, %v2070
    %2591 = vmatprep.subr.bf16.mxu0 %v2136
    %2592 = vmatpush1.bf16.msra.mxu0 %v2135
    %2593 = vmatprep.subr.bf16.mxu0 %v2128
    %2594 = vmatpush1.bf16.msra.mxu0 %v2127
    %2595 = vmatprep.subr.bf16.mxu0 %v2120
    %2596 = vmatpush1.bf16.msra.mxu0 %v2119
    %2597 = vmatprep.subr.bf16.mxu0 %v2112
    %2598 = vmatpush1.bf16.msra.mxu0 %v2111
    %2599 = vmatprep.subr.bf16.mxu0 %v2104
    %2600 = vmatpush1.bf16.msra.mxu0 %v2103
    %2601 = vmatprep.subr.bf16.mxu0 %v2096
    %2602 = vmatpush1.bf16.msra.mxu0 %v2095
    %2603 = vmatprep.subr.bf16.mxu0 %v2088
    %2604 = vmatpush1.bf16.msra.mxu0 %v2087
    %2605 = vmatprep.subr.bf16.mxu0 %v2080
    %2606 = vmatpush1.bf16.msra.mxu0 %v2079
    %2607 = vmatprep.subr.bf16.mxu0 %v2200
    %2608 = vmatpush2.bf16.msra.mxu0 %v2199
    %2609 = vmatprep.subr.bf16.mxu0 %v2192
    %2610 = vmatpush2.bf16.msra.mxu0 %v2191
    %2611 = vmatprep.subr.bf16.mxu0 %v2184
    %2612 = vmatpush2.bf16.msra.mxu0 %v2183
    %2613 = vmatprep.subr.bf16.mxu0 %v2176
    %2614 = vmatpush2.bf16.msra.mxu0 %v2175
    %2615 = vmatprep.subr.bf16.mxu0 %v2168
    %2616 = vmatpush2.bf16.msra.mxu0 %v2167
    %2617 = vmatprep.subr.bf16.mxu0 %v2160
    %2618 = vmatpush2.bf16.msra.mxu0 %v2159
    %2619 = vmatprep.subr.bf16.mxu0 %v2152
    %2620 = vmatpush2.bf16.msra.mxu0 %v2151
    %2621 = vmatprep.subr.bf16.mxu0 %v2144
    %2622 = vmatpush2.bf16.msra.mxu0 %v2143
    %2623 = vmatprep.mubr.bf16.mxu0 %v1052
    %2624 = vmatmul.mubr.bf16.gmra.mxu0 %v1051
    %v2625 = vpop.f32.mrf.mxu0
    %v2626 = vadd.f32 0.0, %v2625
    %v2627 = vpop.f32.mrf.mxu0
    %v2628 = vadd.f32 0.0, %v2627
    %v2629 = vpop.f32.mrf.mxu0
    %v2630 = vpop.f32.mrf.mxu0
    %2631 = vdwg.mxu0
    %2632 = vmatprep.subr.bf16.mxu0 %v2264
    %2633 = vmatpush1.bf16.msra.mxu0 %v2263
    %2634 = vmatprep.subr.bf16.mxu0 %v2256
    %2635 = vmatpush1.bf16.msra.mxu0 %v2255
    %2636 = vmatprep.subr.bf16.mxu0 %v2248
    %2637 = vmatpush1.bf16.msra.mxu0 %v2247
    %2638 = vmatprep.subr.bf16.mxu0 %v2240
    %2639 = vmatpush1.bf16.msra.mxu0 %v2239
    %2640 = vmatprep.subr.bf16.mxu0 %v2232
    %2641 = vmatpush1.bf16.msra.mxu0 %v2231
    %2642 = vmatprep.subr.bf16.mxu0 %v2224
    %2643 = vmatpush1.bf16.msra.mxu0 %v2223
    %2644 = vmatprep.subr.bf16.mxu0 %v2216
    %2645 = vmatpush1.bf16.msra.mxu0 %v2215
    %2646 = vmatprep.subr.bf16.mxu0 %v2208
    %2647 = vmatpush1.bf16.msra.mxu0 %v2207
    %2648 = vmatprep.subr.bf16.mxu0 %v2328
    %2649 = vmatpush2.bf16.msra.mxu0 %v2327
    %2650 = vmatprep.subr.bf16.mxu0 %v2320
    %2651 = vmatpush2.bf16.msra.mxu0 %v2319
    %2652 = vmatprep.subr.bf16.mxu0 %v2312
    %2653 = vmatpush2.bf16.msra.mxu0 %v2311
    %2654 = vmatprep.subr.bf16.mxu0 %v2304
    %2655 = vmatpush2.bf16.msra.mxu0 %v2303
    %2656 = vmatprep.subr.bf16.mxu0 %v2296
    %2657 = vmatpush2.bf16.msra.mxu0 %v2295
    %2658 = vmatprep.subr.bf16.mxu0 %v2288
    %2659 = vmatpush2.bf16.msra.mxu0 %v2287
    %2660 = vmatprep.subr.bf16.mxu0 %v2280
    %2661 = vmatpush2.bf16.msra.mxu0 %v2279
    %2662 = vmatprep.subr.bf16.mxu0 %v2272
    %2663 = vmatpush2.bf16.msra.mxu0 %v2271
    %2664 = vmatprep.mubr.bf16.mxu0 %v1054
    %2665 = vmatmul.mubr.bf16.gmra.mxu0 %v1053
    %v2666 = vpop.f32.mrf.mxu0
    %v2667 = vadd.f32 %v2626, %v2666
    %v2668 = vpop.f32.mrf.mxu0
    %v2669 = vadd.f32 %v2628, %v2668
    %v2670 = vpop.f32.mrf.mxu0
    %v2671 = vpop.f32.mrf.mxu0
    %2672 = vdwg.mxu0
    %2673 = vmatprep.subr.bf16.mxu0 %v2138
    %2674 = vmatpush1.bf16.msra.mxu0 %v2137
    %2675 = vmatprep.subr.bf16.mxu0 %v2130
    %2676 = vmatpush1.bf16.msra.mxu0 %v2129
    %2677 = vmatprep.subr.bf16.mxu0 %v2122
    %2678 = vmatpush1.bf16.msra.mxu0 %v2121
    %2679 = vmatprep.subr.bf16.mxu0 %v2114
    %2680 = vmatpush1.bf16.msra.mxu0 %v2113
    %2681 = vmatprep.subr.bf16.mxu0 %v2106
    %2682 = vmatpush1.bf16.msra.mxu0 %v2105
    %2683 = vmatprep.subr.bf16.mxu0 %v2098
    %2684 = vmatpush1.bf16.msra.mxu0 %v2097
    %2685 = vmatprep.subr.bf16.mxu0 %v2090
    %2686 = vmatpush1.bf16.msra.mxu0 %v2089
    %2687 = vmatprep.subr.bf16.mxu0 %v2082
    %2688 = vmatpush1.bf16.msra.mxu0 %v2081
    %2689 = vmatprep.subr.bf16.mxu0 %v2202
    %2690 = vmatpush2.bf16.msra.mxu0 %v2201
    %2691 = vmatprep.subr.bf16.mxu0 %v2194
    %2692 = vmatpush2.bf16.msra.mxu0 %v2193
    %2693 = vmatprep.subr.bf16.mxu0 %v2186
    %2694 = vmatpush2.bf16.msra.mxu0 %v2185
    %2695 = vmatprep.subr.bf16.mxu0 %v2178
    %2696 = vmatpush2.bf16.msra.mxu0 %v2177
    %2697 = vmatprep.subr.bf16.mxu0 %v2170
    %2698 = vmatpush2.bf16.msra.mxu0 %v2169
    %2699 = vmatprep.subr.bf16.mxu0 %v2162
    %2700 = vmatpush2.bf16.msra.mxu0 %v2161
    %2701 = vmatprep.subr.bf16.mxu0 %v2154
    %2702 = vmatpush2.bf16.msra.mxu0 %v2153
    %2703 = vmatprep.subr.bf16.mxu0 %v2146
    %2704 = vmatpush2.bf16.msra.mxu0 %v2145
    %2705 = vmatprep.mubr.bf16.mxu0 %v1052
    %2706 = vmatmul.mubr.bf16.gmra.mxu0 %v1051
    %v2707 = vpop.f32.mrf.mxu0
    %v2708 = vadd.f32 0.0, %v2707
    %v2709 = vpop.f32.mrf.mxu0
    %v2710 = vadd.f32 0.0, %v2709
    %v2711 = vpop.f32.mrf.mxu0
    %v2712 = vpop.f32.mrf.mxu0
    %2713 = vdwg.mxu0
    %2714 = vmatprep.subr.bf16.mxu0 %v2266
    %2715 = vmatpush1.bf16.msra.mxu0 %v2265
    %2716 = vmatprep.subr.bf16.mxu0 %v2258
    %2717 = vmatpush1.bf16.msra.mxu0 %v2257
    %2718 = vmatprep.subr.bf16.mxu0 %v2250
    %2719 = vmatpush1.bf16.msra.mxu0 %v2249
    %2720 = vmatprep.subr.bf16.mxu0 %v2242
    %2721 = vmatpush1.bf16.msra.mxu0 %v2241
    %2722 = vmatprep.subr.bf16.mxu0 %v2234
    %2723 = vmatpush1.bf16.msra.mxu0 %v2233
    %2724 = vmatprep.subr.bf16.mxu0 %v2226
    %2725 = vmatpush1.bf16.msra.mxu0 %v2225
    %2726 = vmatprep.subr.bf16.mxu0 %v2218
    %2727 = vmatpush1.bf16.msra.mxu0 %v2217
    %2728 = vmatprep.subr.bf16.mxu0 %v2210
    %2729 = vmatpush1.bf16.msra.mxu0 %v2209
    %2730 = vmatprep.subr.bf16.mxu0 %v2330
    %2731 = vmatpush2.bf16.msra.mxu0 %v2329
    %2732 = vmatprep.subr.bf16.mxu0 %v2322
    %2733 = vmatpush2.bf16.msra.mxu0 %v2321
    %2734 = vmatprep.subr.bf16.mxu0 %v2314
    %2735 = vmatpush2.bf16.msra.mxu0 %v2313
    %2736 = vmatprep.subr.bf16.mxu0 %v2306
    %2737 = vmatpush2.bf16.msra.mxu0 %v2305
    %2738 = vmatprep.subr.bf16.mxu0 %v2298
    %2739 = vmatpush2.bf16.msra.mxu0 %v2297
    %2740 = vmatprep.subr.bf16.mxu0 %v2290
    %2741 = vmatpush2.bf16.msra.mxu0 %v2289
    %2742 = vmatprep.subr.bf16.mxu0 %v2282
    %2743 = vmatpush2.bf16.msra.mxu0 %v2281
    %2744 = vmatprep.subr.bf16.mxu0 %v2274
    %2745 = vmatpush2.bf16.msra.mxu0 %v2273
    %2746 = vmatprep.mubr.bf16.mxu0 %v1054
    %2747 = vmatmul.mubr.bf16.gmra.mxu0 %v1053
    %v2748 = vpop.f32.mrf.mxu0
    %v2749 = vadd.f32 %v2708, %v2748
    %v2750 = vpop.f32.mrf.mxu0
    %v2751 = vadd.f32 %v2710, %v2750
    %v2752 = vpop.f32.mrf.mxu0
    %v2753 = vpop.f32.mrf.mxu0
    %2754 = vdwg.mxu0
    %2755 = vmatprep.subr.bf16.mxu0 %v2140
    %2756 = vmatpush1.bf16.msra.mxu0 %v2139
    %2757 = vmatprep.subr.bf16.mxu0 %v2132
    %2758 = vmatpush1.bf16.msra.mxu0 %v2131
    %2759 = vmatprep.subr.bf16.mxu0 %v2124
    %2760 = vmatpush1.bf16.msra.mxu0 %v2123
    %2761 = vmatprep.subr.bf16.mxu0 %v2116
    %2762 = vmatpush1.bf16.msra.mxu0 %v2115
    %2763 = vmatprep.subr.bf16.mxu0 %v2108
    %2764 = vmatpush1.bf16.msra.mxu0 %v2107
    %2765 = vmatprep.subr.bf16.mxu0 %v2100
    %2766 = vmatpush1.bf16.msra.mxu0 %v2099
    %2767 = vmatprep.subr.bf16.mxu0 %v2092
    %2768 = vmatpush1.bf16.msra.mxu0 %v2091
    %2769 = vmatprep.subr.bf16.mxu0 %v2084
    %2770 = vmatpush1.bf16.msra.mxu0 %v2083
    %2771 = vmatprep.subr.bf16.mxu0 %v2204
    %2772 = vmatpush2.bf16.msra.mxu0 %v2203
    %2773 = vmatprep.subr.bf16.mxu0 %v2196
    %2774 = vmatpush2.bf16.msra.mxu0 %v2195
    %2775 = vmatprep.subr.bf16.mxu0 %v2188
    %2776 = vmatpush2.bf16.msra.mxu0 %v2187
    %2777 = vmatprep.subr.bf16.mxu0 %v2180
    %2778 = vmatpush2.bf16.msra.mxu0 %v2179
    %2779 = vmatprep.subr.bf16.mxu0 %v2172
    %2780 = vmatpush2.bf16.msra.mxu0 %v2171
    %2781 = vmatprep.subr.bf16.mxu0 %v2164
    %2782 = vmatpush2.bf16.msra.mxu0 %v2163
    %2783 = vmatprep.subr.bf16.mxu0 %v2156
    %2784 = vmatpush2.bf16.msra.mxu0 %v2155
    %2785 = vmatprep.subr.bf16.mxu0 %v2148
    %2786 = vmatpush2.bf16.msra.mxu0 %v2147
    %2787 = vmatprep.mubr.bf16.mxu0 %v1052
    %2788 = vmatmul.mubr.bf16.gmra.mxu0 %v1051
    %v2789 = vpop.f32.mrf.mxu0
    %v2790 = vadd.f32 0.0, %v2789
    %v2791 = vpop.f32.mrf.mxu0
    %v2792 = vadd.f32 0.0, %v2791
    %v2793 = vpop.f32.mrf.mxu0
    %v2794 = vpop.f32.mrf.mxu0
    %2795 = vdwg.mxu0
    %2796 = vmatprep.subr.bf16.mxu0 %v2268
    %2797 = vmatpush1.bf16.msra.mxu0 %v2267
    %2798 = vmatprep.subr.bf16.mxu0 %v2260
    %2799 = vmatpush1.bf16.msra.mxu0 %v2259
    %2800 = vmatprep.subr.bf16.mxu0 %v2252
    %2801 = vmatpush1.bf16.msra.mxu0 %v2251
    %2802 = vmatprep.subr.bf16.mxu0 %v2244
    %2803 = vmatpush1.bf16.msra.mxu0 %v2243
    %2804 = vmatprep.subr.bf16.mxu0 %v2236
    %2805 = vmatpush1.bf16.msra.mxu0 %v2235
    %2806 = vmatprep.subr.bf16.mxu0 %v2228
    %2807 = vmatpush1.bf16.msra.mxu0 %v2227
    %2808 = vmatprep.subr.bf16.mxu0 %v2220
    %2809 = vmatpush1.bf16.msra.mxu0 %v2219
    %2810 = vmatprep.subr.bf16.mxu0 %v2212
    %2811 = vmatpush1.bf16.msra.mxu0 %v2211
    %2812 = vmatprep.subr.bf16.mxu0 %v2332
    %2813 = vmatpush2.bf16.msra.mxu0 %v2331
    %2814 = vmatprep.subr.bf16.mxu0 %v2324
    %2815 = vmatpush2.bf16.msra.mxu0 %v2323
    %2816 = vmatprep.subr.bf16.mxu0 %v2316
    %2817 = vmatpush2.bf16.msra.mxu0 %v2315
    %2818 = vmatprep.subr.bf16.mxu0 %v2308
    %2819 = vmatpush2.bf16.msra.mxu0 %v2307
    %2820 = vmatprep.subr.bf16.mxu0 %v2300
    %2821 = vmatpush2.bf16.msra.mxu0 %v2299
    %2822 = vmatprep.subr.bf16.mxu0 %v2292
    %2823 = vmatpush2.bf16.msra.mxu0 %v2291
    %2824 = vmatprep.subr.bf16.mxu0 %v2284
    %2825 = vmatpush2.bf16.msra.mxu0 %v2283
    %2826 = vmatprep.subr.bf16.mxu0 %v2276
    %2827 = vmatpush2.bf16.msra.mxu0 %v2275
    %2828 = vmatprep.mubr.bf16.mxu0 %v1054
    %2829 = vmatmul.mubr.bf16.gmra.mxu0 %v1053
    %v2830 = vpop.f32.mrf.mxu0
    %v2831 = vadd.f32 %v2790, %v2830
    %v2832 = vpop.f32.mrf.mxu0
    %v2833 = vadd.f32 %v2792, %v2832
    %v2834 = vpop.f32.mrf.mxu0
    %v2835 = vpop.f32.mrf.mxu0
    %2836 = vdwg.mxu0
    %2837 = vmatprep.subr.bf16.mxu0 %v2142
    %2838 = vmatpush1.bf16.msra.mxu0 %v2141
    %2839 = vmatprep.subr.bf16.mxu0 %v2134
    %2840 = vmatpush1.bf16.msra.mxu0 %v2133
    %2841 = vmatprep.subr.bf16.mxu0 %v2126
    %2842 = vmatpush1.bf16.msra.mxu0 %v2125
    %2843 = vmatprep.subr.bf16.mxu0 %v2118
    %2844 = vmatpush1.bf16.msra.mxu0 %v2117
    %2845 = vmatprep.subr.bf16.mxu0 %v2110
    %2846 = vmatpush1.bf16.msra.mxu0 %v2109
    %2847 = vmatprep.subr.bf16.mxu0 %v2102
    %2848 = vmatpush1.bf16.msra.mxu0 %v2101
    %2849 = vmatprep.subr.bf16.mxu0 %v2094
    %2850 = vmatpush1.bf16.msra.mxu0 %v2093
    %2851 = vmatprep.subr.bf16.mxu0 %v2086
    %2852 = vmatpush1.bf16.msra.mxu0 %v2085
    %2853 = vmatprep.subr.bf16.mxu0 %v2206
    %2854 = vmatpush2.bf16.msra.mxu0 %v2205
    %2855 = vmatprep.subr.bf16.mxu0 %v2198
    %2856 = vmatpush2.bf16.msra.mxu0 %v2197
    %2857 = vmatprep.subr.bf16.mxu0 %v2190
    %2858 = vmatpush2.bf16.msra.mxu0 %v2189
    %2859 = vmatprep.subr.bf16.mxu0 %v2182
    %2860 = vmatpush2.bf16.msra.mxu0 %v2181
    %2861 = vmatprep.subr.bf16.mxu0 %v2174
    %2862 = vmatpush2.bf16.msra.mxu0 %v2173
    %2863 = vmatprep.subr.bf16.mxu0 %v2166
    %2864 = vmatpush2.bf16.msra.mxu0 %v2165
    %2865 = vmatprep.subr.bf16.mxu0 %v2158
    %2866 = vmatpush2.bf16.msra.mxu0 %v2157
    %2867 = vmatprep.subr.bf16.mxu0 %v2150
    %2868 = vmatpush2.bf16.msra.mxu0 %v2149
    %2869 = vmatprep.mubr.bf16.mxu0 %v1052
    %2870 = vmatmul.mubr.bf16.gmra.mxu0 %v1051
    %v2871 = vpop.f32.mrf.mxu0
    %v2872 = vadd.f32 0.0, %v2871
    %v2873 = vpop.f32.mrf.mxu0
    %v2874 = vadd.f32 0.0, %v2873
    %v2875 = vpop.f32.mrf.mxu0
    %v2876 = vpop.f32.mrf.mxu0
    %2877 = vdwg.mxu0
    %2878 = vmatprep.subr.bf16.mxu0 %v2270
    %2879 = vmatpush1.bf16.msra.mxu0 %v2269
    %2880 = vmatprep.subr.bf16.mxu0 %v2262
    %2881 = vmatpush1.bf16.msra.mxu0 %v2261
    %2882 = vmatprep.subr.bf16.mxu0 %v2254
    %2883 = vmatpush1.bf16.msra.mxu0 %v2253
    %2884 = vmatprep.subr.bf16.mxu0 %v2246
    %2885 = vmatpush1.bf16.msra.mxu0 %v2245
    %2886 = vmatprep.subr.bf16.mxu0 %v2238
    %2887 = vmatpush1.bf16.msra.mxu0 %v2237
    %2888 = vmatprep.subr.bf16.mxu0 %v2230
    %2889 = vmatpush1.bf16.msra.mxu0 %v2229
    %2890 = vmatprep.subr.bf16.mxu0 %v2222
    %2891 = vmatpush1.bf16.msra.mxu0 %v2221
    %2892 = vmatprep.subr.bf16.mxu0 %v2214
    %2893 = vmatpush1.bf16.msra.mxu0 %v2213
    %2894 = vmatprep.subr.bf16.mxu0 %v2334
    %2895 = vmatpush2.bf16.msra.mxu0 %v2333
    %2896 = vmatprep.subr.bf16.mxu0 %v2326
    %2897 = vmatpush2.bf16.msra.mxu0 %v2325
    %2898 = vmatprep.subr.bf16.mxu0 %v2318
    %2899 = vmatpush2.bf16.msra.mxu0 %v2317
    %2900 = vmatprep.subr.bf16.mxu0 %v2310
    %2901 = vmatpush2.bf16.msra.mxu0 %v2309
    %2902 = vmatprep.subr.bf16.mxu0 %v2302
    %2903 = vmatpush2.bf16.msra.mxu0 %v2301
    %2904 = vmatprep.subr.bf16.mxu0 %v2294
    %2905 = vmatpush2.bf16.msra.mxu0 %v2293
    %2906 = vmatprep.subr.bf16.mxu0 %v2286
    %2907 = vmatpush2.bf16.msra.mxu0 %v2285
    %2908 = vmatprep.subr.bf16.mxu0 %v2278
    %2909 = vmatpush2.bf16.msra.mxu0 %v2277
    %2910 = vmatprep.mubr.bf16.mxu0 %v1054
    %2911 = vmatmul.mubr.bf16.gmra.mxu0 %v1053
    %v2912 = vpop.f32.mrf.mxu0
    %v2913 = vadd.f32 %v2872, %v2912
    %v2914 = vpop.f32.mrf.mxu0
    %v2915 = vadd.f32 %v2874, %v2914
    %v2916 = vpop.f32.mrf.mxu0
    %v2917 = vpop.f32.mrf.mxu0
    %2918 = vdwg.mxu0
    %v2919 = vrot.slane %v2667, 4
    %v2920 = vadd.f32 %v2667, %v2919
    %v2921 = vrot.slane %v2920, 2
    %v2922 = vadd.f32 %v2920, %v2921
    %v2923 = vrot.slane %v2922, 1
    %v2924 = vadd.f32 %v2922, %v2923
    %v2925 = vrot.slane %v2669, 4
    %v2926 = vadd.f32 %v2669, %v2925
    %v2927 = vrot.slane %v2926, 2
    %v2928 = vadd.f32 %v2926, %v2927
    %v2929 = vrot.slane %v2928, 1
    %v2930 = vadd.f32 %v2928, %v2929
    %v2931 = vrot.slane %v2749, 4
    %v2932 = vadd.f32 %v2749, %v2931
    %v2933 = vrot.slane %v2932, 2
    %v2934 = vadd.f32 %v2932, %v2933
    %v2935 = vrot.slane %v2934, 1
    %v2936 = vadd.f32 %v2934, %v2935
    %v2937 = vrot.slane %v2751, 4
    %v2938 = vadd.f32 %v2751, %v2937
    %v2939 = vrot.slane %v2938, 2
    %v2940 = vadd.f32 %v2938, %v2939
    %v2941 = vrot.slane %v2940, 1
    %v2942 = vadd.f32 %v2940, %v2941
    %v2943 = vrot.slane %v2831, 4
    %v2944 = vadd.f32 %v2831, %v2943
    %v2945 = vrot.slane %v2944, 2
    %v2946 = vadd.f32 %v2944, %v2945
    %v2947 = vrot.slane %v2946, 1
    %v2948 = vadd.f32 %v2946, %v2947
    %v2949 = vrot.slane %v2833, 4
    %v2950 = vadd.f32 %v2833, %v2949
    %v2951 = vrot.slane %v2950, 2
    %v2952 = vadd.f32 %v2950, %v2951
    %v2953 = vrot.slane %v2952, 1
    %v2954 = vadd.f32 %v2952, %v2953
    %v2955 = vrot.slane %v2913, 4
    %v2956 = vadd.f32 %v2913, %v2955
    %v2957 = vrot.slane %v2956, 2
    %v2958 = vadd.f32 %v2956, %v2957
    %v2959 = vrot.slane %v2958, 1
    %v2960 = vadd.f32 %v2958, %v2959
    %v2961 = vrot.slane %v2915, 4
    %v2962 = vadd.f32 %v2915, %v2961
    %v2963 = vrot.slane %v2962, 2
    %v2964 = vadd.f32 %v2962, %v2963
    %v2965 = vrot.slane %v2964, 1
    %v2966 = vadd.f32 %v2964, %v2965
    %v2967 = vmul.f32 %v2924, 0.125
    %v2968 = vmul.f32 %v2930, 0.125
    %v2969 = vmul.f32 %v2936, 0.125
    %v2970 = vmul.f32 %v2942, 0.125
    %v2971 = vmul.f32 %v2948, 0.125
    %v2972 = vmul.f32 %v2954, 0.125
    %v2973 = vmul.f32 %v2960, 0.125
    %v2974 = vmul.f32 %v2966, 0.125
    %v2975 = vsub.f32 %v2667, %v2967
    %v2976 = vsub.f32 %v2669, %v2968
    %v2977 = vsub.f32 %v2749, %v2969
    %v2978 = vsub.f32 %v2751, %v2970
    %v2979 = vsub.f32 %v2831, %v2971
    %v2980 = vsub.f32 %v2833, %v2972
    %v2981 = vsub.f32 %v2913, %v2973
    %v2982 = vsub.f32 %v2915, %v2974
    %v2983 = vmul.f32 %v2975, %v2975
    %v2984 = vmul.f32 %v2976, %v2976
    %v2985 = vmul.f32 %v2977, %v2977
    %v2986 = vmul.f32 %v2978, %v2978
    %v2987 = vmul.f32 %v2979, %v2979
    %v2988 = vmul.f32 %v2980, %v2980
    %v2989 = vmul.f32 %v2981, %v2981
    %v2990 = vmul.f32 %v2982, %v2982
    %v2991 = vrot.slane %v2983, 4
    %v2992 = vadd.f32 %v2983, %v2991
    %v2993 = vrot.slane %v2992, 2
    %v2994 = vadd.f32 %v2992, %v2993
    %v2995 = vrot.slane %v2994, 1
    %v2996 = vadd.f32 %v2994, %v2995
    %v2997 = vrot.slane %v2984, 4
    %v2998 = vadd.f32 %v2984, %v2997
    %v2999 = vrot.slane %v2998, 2
    %v3000 = vadd.f32 %v2998, %v2999
    %v3001 = vrot.slane %v3000, 1
    %v3002 = vadd.f32 %v3000, %v3001
    %v3003 = vrot.slane %v2985, 4
    %v3004 = vadd.f32 %v2985, %v3003
    %v3005 = vrot.slane %v3004, 2
    %v3006 = vadd.f32 %v3004, %v3005
    %v3007 = vrot.slane %v3006, 1
    %v3008 = vadd.f32 %v3006, %v3007
    %v3009 = vrot.slane %v2986, 4
    %v3010 = vadd.f32 %v2986, %v3009
    %v3011 = vrot.slane %v3010, 2
    %v3012 = vadd.f32 %v3010, %v3011
    %v3013 = vrot.slane %v3012, 1
    %v3014 = vadd.f32 %v3012, %v3013
    %v3015 = vrot.slane %v2987, 4
    %v3016 = vadd.f32 %v2987, %v3015
    %v3017 = vrot.slane %v3016, 2
    %v3018 = vadd.f32 %v3016, %v3017
    %v3019 = vrot.slane %v3018, 1
    %v3020 = vadd.f32 %v3018, %v3019
    %v3021 = vrot.slane %v2988, 4
    %v3022 = vadd.f32 %v2988, %v3021
    %v3023 = vrot.slane %v3022, 2
    %v3024 = vadd.f32 %v3022, %v3023
    %v3025 = vrot.slane %v3024, 1
    %v3026 = vadd.f32 %v3024, %v3025
    %v3027 = vrot.slane %v2989, 4
    %v3028 = vadd.f32 %v2989, %v3027
    %v3029 = vrot.slane %v3028, 2
    %v3030 = vadd.f32 %v3028, %v3029
    %v3031 = vrot.slane %v3030, 1
    %v3032 = vadd.f32 %v3030, %v3031
    %v3033 = vrot.slane %v2990, 4
    %v3034 = vadd.f32 %v2990, %v3033
    %v3035 = vrot.slane %v3034, 2
    %v3036 = vadd.f32 %v3034, %v3035
    %v3037 = vrot.slane %v3036, 1
    %v3038 = vadd.f32 %v3036, %v3037
    %v3039 = vmul.f32 %v2996, 0.125
    %v3040 = vmul.f32 %v3002, 0.125
    %v3041 = vmul.f32 %v3008, 0.125
    %v3042 = vmul.f32 %v3014, 0.125
    %v3043 = vmul.f32 %v3020, 0.125
    %v3044 = vmul.f32 %v3026, 0.125
    %v3045 = vmul.f32 %v3032, 0.125
    %v3046 = vmul.f32 %v3038, 0.125
    %v3047 = vadd.f32 %v3039, 0.8
    %v3048 = vadd.f32 %v3040, 0.8
    %v3049 = vadd.f32 %v3041, 0.8
    %v3050 = vadd.f32 %v3042, 0.8
    %v3051 = vadd.f32 %v3043, 0.8
    %v3052 = vadd.f32 %v3044, 0.8
    %v3053 = vadd.f32 %v3045, 0.8
    %v3054 = vadd.f32 %v3046, 0.8
    %v3055 = vrsqrt.pop %v3047
    %v3056 = vrsqrt.pop %v3048
    %v3057 = vrsqrt.pop %v3049
    %v3058 = vrsqrt.pop %v3050
    %v3059 = vrsqrt.pop %v3051
    %v3060 = vrsqrt.pop %v3052
    %v3061 = vrsqrt.pop %v3053
    %v3062 = vrsqrt.pop %v3054
    %v3063 = vmul.f32 %v2975, %v3055
    %v3064 = vmul.f32 %v2976, %v3056
    %v3065 = vmul.f32 %v2977, %v3057
    %v3066 = vmul.f32 %v2978, %v3058
    %v3067 = vmul.f32 %v2979, %v3059
    %v3068 = vmul.f32 %v2980, %v3060
    %v3069 = vmul.f32 %v2981, %v3061
    %v3070 = vmul.f32 %v2982, %v3062
    %v3072 = vlaneseq
    %v3073 = vshrl.u32 %v3072, 7
    %v3074 = vsub.s32 0, %v3073
    %v3075 = vrot.slane %v122, %v3074
    %v3076 = vlaneseq
    %v3077 = vshrl.u32 %v3076, 7
    %v3078 = vsub.s32 1, %v3077
    %v3079 = vrot.slane %v122, %v3078
    %v3080 = vlaneseq
    %v3081 = vshrl.u32 %v3080, 7
    %v3082 = vsub.s32 2, %v3081
    %v3083 = vrot.slane %v122, %v3082
    %v3084 = vlaneseq
    %v3085 = vshrl.u32 %v3084, 7
    %v3086 = vsub.s32 3, %v3085
    %v3087 = vrot.slane %v122, %v3086
    %v3088 = vlaneseq
    %v3089 = vshrl.u32 %v3088, 7
    %v3090 = vsub.s32 4, %v3089
    %v3091 = vrot.slane %v122, %v3090
    %v3092 = vlaneseq
    %v3093 = vshrl.u32 %v3092, 7
    %v3094 = vsub.s32 5, %v3093
    %v3095 = vrot.slane %v122, %v3094
    %v3096 = vlaneseq
    %v3097 = vshrl.u32 %v3096, 7
    %v3098 = vsub.s32 6, %v3097
    %v3099 = vrot.slane %v122, %v3098
    %v3100 = vlaneseq
    %v3101 = vshrl.u32 %v3100, 7
    %v3102 = vsub.s32 7, %v3101
    %v3103 = vrot.slane %v122, %v3102
    %v3112 = vmul.f32 %v3063, %v3075
    %v3113 = vmul.f32 %v3064, %v3079
    %v3114 = vmul.f32 %v3065, %v3083
    %v3115 = vmul.f32 %v3066, %v3087
    %v3116 = vmul.f32 %v3067, %v3091
    %v3117 = vmul.f32 %v3068, %v3095
    %v3118 = vmul.f32 %v3069, %v3099
    %v3119 = vmul.f32 %v3070, %v3103
    %v3121 = vlaneseq
    %v3122 = vshrl.u32 %v3121, 7
    %v3123 = vsub.s32 0, %v3122
    %v3124 = vrot.slane %v126, %v3123
    %v3125 = vlaneseq
    %v3126 = vshrl.u32 %v3125, 7
    %v3127 = vsub.s32 1, %v3126
    %v3128 = vrot.slane %v126, %v3127
    %v3129 = vlaneseq
    %v3130 = vshrl.u32 %v3129, 7
    %v3131 = vsub.s32 2, %v3130
    %v3132 = vrot.slane %v126, %v3131
    %v3133 = vlaneseq
    %v3134 = vshrl.u32 %v3133, 7
    %v3135 = vsub.s32 3, %v3134
    %v3136 = vrot.slane %v126, %v3135
    %v3137 = vlaneseq
    %v3138 = vshrl.u32 %v3137, 7
    %v3139 = vsub.s32 4, %v3138
    %v3140 = vrot.slane %v126, %v3139
    %v3141 = vlaneseq
    %v3142 = vshrl.u32 %v3141, 7
    %v3143 = vsub.s32 5, %v3142
    %v3144 = vrot.slane %v126, %v3143
    %v3145 = vlaneseq
    %v3146 = vshrl.u32 %v3145, 7
    %v3147 = vsub.s32 6, %v3146
    %v3148 = vrot.slane %v126, %v3147
    %v3149 = vlaneseq
    %v3150 = vshrl.u32 %v3149, 7
    %v3151 = vsub.s32 7, %v3150
    %v3152 = vrot.slane %v126, %v3151
    %v3161 = vadd.f32 %v3112, %v3124
    %v3162 = vadd.f32 %v3113, %v3128
    %v3163 = vadd.f32 %v3114, %v3132
    %v3164 = vadd.f32 %v3115, %v3136
    %v3165 = vadd.f32 %v3116, %v3140
    %v3166 = vadd.f32 %v3117, %v3144
    %v3167 = vadd.f32 %v3118, %v3148
    %v3168 = vadd.f32 %v3119, %v3152
    %v3169 = vmul.f32 %v3161, 0.2
    %v3170 = vmul.f32 %v3162, 0.2
    %v3171 = vmul.f32 %v3163, 0.2
    %v3172 = vmul.f32 %v3164, 0.2
    %v3173 = vmul.f32 %v3165, 0.2
    %v3174 = vmul.f32 %v3166, 0.2
    %v3175 = vmul.f32 %v3167, 0.2
    %v3176 = vmul.f32 %v3168, 0.2
    %v3177 = vmax.f32 %v3161, %v3169
    %v3178 = vmax.f32 %v3162, %v3170
    %v3179 = vmax.f32 %v3163, %v3171
    %v3180 = vmax.f32 %v3164, %v3172
    %v3181 = vmax.f32 %v3165, %v3173
    %v3182 = vmax.f32 %v3166, %v3174
    %v3183 = vmax.f32 %v3167, %v3175
    %v3184 = vmax.f32 %v3168, %v3176
    %s3185 = smul.u32 4, 128
    %s3186 = smul.u32 %s3185, 8
    %s3187 = sshll.u32 %s3186, 4
    %3188 = dma.done %s98, %s3187
    %v3189 = vpack.c.bf16 %v3177, %v3177
    %v3190 = vpack.c.bf16 %v3178, %v3178
    %v3191 = vpack.c.bf16 %v3179, %v3179
    %v3192 = vpack.c.bf16 %v3180, %v3180
    %v3193 = vpack.c.bf16 %v3181, %v3181
    %v3194 = vpack.c.bf16 %v3182, %v3182
    %v3195 = vpack.c.bf16 %v3183, %v3183
    %v3196 = vpack.c.bf16 %v3184, %v3184
    %v3197 = vld [vmem:[#allocation3] sm:$0xff]
    %v3198 = vld [vmem:[#allocation3 + $0x8] sm:$0xff]
    %v3199 = vld [vmem:[#allocation3 + $0x10] sm:$0xff]
    %v3200 = vld [vmem:[#allocation3 + $0x18] sm:$0xff]
    %v3201 = vld [vmem:[#allocation3 + $0x20] sm:$0xff]
    %v3202 = vld [vmem:[#allocation3 + $0x28] sm:$0xff]
    %v3203 = vld [vmem:[#allocation3 + $0x30] sm:$0xff]
    %v3204 = vld [vmem:[#allocation3 + $0x38] sm:$0xff]
    %v3205 = vld [vmem:[#allocation3 + $0x40] sm:$0xff]
    %v3206 = vld [vmem:[#allocation3 + $0x48] sm:$0xff]
    %v3207 = vld [vmem:[#allocation3 + $0x50] sm:$0xff]
    %v3208 = vld [vmem:[#allocation3 + $0x58] sm:$0xff]
    %v3209 = vld [vmem:[#allocation3 + $0x60] sm:$0xff]
    %v3210 = vld [vmem:[#allocation3 + $0x68] sm:$0xff]
    %v3211 = vld [vmem:[#allocation3 + $0x70] sm:$0xff]
    %v3212 = vld [vmem:[#allocation3 + $0x78] sm:$0xff]
    %v3213 = vld [vmem:[#allocation3 + $0x80] sm:$0xff]
    %v3214 = vld [vmem:[#allocation3 + $0x88] sm:$0xff]
    %v3215 = vld [vmem:[#allocation3 + $0x90] sm:$0xff]
    %v3216 = vld [vmem:[#allocation3 + $0x98] sm:$0xff]
    %v3217 = vld [vmem:[#allocation3 + $0xa0] sm:$0xff]
    %v3218 = vld [vmem:[#allocation3 + $0xa8] sm:$0xff]
    %v3219 = vld [vmem:[#allocation3 + $0xb0] sm:$0xff]
    %v3220 = vld [vmem:[#allocation3 + $0xb8] sm:$0xff]
    %v3221 = vld [vmem:[#allocation3 + $0xc0] sm:$0xff]
    %v3222 = vld [vmem:[#allocation3 + $0xc8] sm:$0xff]
    %v3223 = vld [vmem:[#allocation3 + $0xd0] sm:$0xff]
    %v3224 = vld [vmem:[#allocation3 + $0xd8] sm:$0xff]
    %v3225 = vld [vmem:[#allocation3 + $0xe0] sm:$0xff]
    %v3226 = vld [vmem:[#allocation3 + $0xe8] sm:$0xff]
    %v3227 = vld [vmem:[#allocation3 + $0xf0] sm:$0xff]
    %v3228 = vld [vmem:[#allocation3 + $0xf8] sm:$0xff]
    %v3229 = vld [vmem:[#allocation3 + $0x100] sm:$0xff]
    %v3230 = vld [vmem:[#allocation3 + $0x108] sm:$0xff]
    %v3231 = vld [vmem:[#allocation3 + $0x110] sm:$0xff]
    %v3232 = vld [vmem:[#allocation3 + $0x118] sm:$0xff]
    %v3233 = vld [vmem:[#allocation3 + $0x120] sm:$0xff]
    %v3234 = vld [vmem:[#allocation3 + $0x128] sm:$0xff]
    %v3235 = vld [vmem:[#allocation3 + $0x130] sm:$0xff]
    %v3236 = vld [vmem:[#allocation3 + $0x138] sm:$0xff]
    %v3237 = vld [vmem:[#allocation3 + $0x140] sm:$0xff]
    %v3238 = vld [vmem:[#allocation3 + $0x148] sm:$0xff]
    %v3239 = vld [vmem:[#allocation3 + $0x150] sm:$0xff]
    %v3240 = vld [vmem:[#allocation3 + $0x158] sm:$0xff]
    %v3241 = vld [vmem:[#allocation3 + $0x160] sm:$0xff]
    %v3242 = vld [vmem:[#allocation3 + $0x168] sm:$0xff]
    %v3243 = vld [vmem:[#allocation3 + $0x170] sm:$0xff]
    %v3244 = vld [vmem:[#allocation3 + $0x178] sm:$0xff]
    %v3245 = vld [vmem:[#allocation3 + $0x180] sm:$0xff]
    %v3246 = vld [vmem:[#allocation3 + $0x188] sm:$0xff]
    %v3247 = vld [vmem:[#allocation3 + $0x190] sm:$0xff]
    %v3248 = vld [vmem:[#allocation3 + $0x198] sm:$0xff]
    %v3249 = vld [vmem:[#allocation3 + $0x1a0] sm:$0xff]
    %v3250 = vld [vmem:[#allocation3 + $0x1a8] sm:$0xff]
    %v3251 = vld [vmem:[#allocation3 + $0x1b0] sm:$0xff]
    %v3252 = vld [vmem:[#allocation3 + $0x1b8] sm:$0xff]
    %v3253 = vld [vmem:[#allocation3 + $0x1c0] sm:$0xff]
    %v3254 = vld [vmem:[#allocation3 + $0x1c8] sm:$0xff]
    %v3255 = vld [vmem:[#allocation3 + $0x1d0] sm:$0xff]
    %v3256 = vld [vmem:[#allocation3 + $0x1d8] sm:$0xff]
    %v3257 = vld [vmem:[#allocation3 + $0x1e0] sm:$0xff]
    %v3258 = vld [vmem:[#allocation3 + $0x1e8] sm:$0xff]
    %v3259 = vld [vmem:[#allocation3 + $0x1f0] sm:$0xff]
    %v3260 = vld [vmem:[#allocation3 + $0x1f8] sm:$0xff]
    %v3261 = vld [vmem:[#allocation3 + $0x200] sm:$0xff]
    %v3262 = vld [vmem:[#allocation3 + $0x208] sm:$0xff]
    %v3263 = vld [vmem:[#allocation3 + $0x210] sm:$0xff]
    %v3264 = vld [vmem:[#allocation3 + $0x218] sm:$0xff]
    %v3265 = vld [vmem:[#allocation3 + $0x220] sm:$0xff]
    %v3266 = vld [vmem:[#allocation3 + $0x228] sm:$0xff]
    %v3267 = vld [vmem:[#allocation3 + $0x230] sm:$0xff]
    %v3268 = vld [vmem:[#allocation3 + $0x238] sm:$0xff]
    %v3269 = vld [vmem:[#allocation3 + $0x240] sm:$0xff]
    %v3270 = vld [vmem:[#allocation3 + $0x248] sm:$0xff]
    %v3271 = vld [vmem:[#allocation3 + $0x250] sm:$0xff]
    %v3272 = vld [vmem:[#allocation3 + $0x258] sm:$0xff]
    %v3273 = vld [vmem:[#allocation3 + $0x260] sm:$0xff]
    %v3274 = vld [vmem:[#allocation3 + $0x268] sm:$0xff]
    %v3275 = vld [vmem:[#allocation3 + $0x270] sm:$0xff]
    %v3276 = vld [vmem:[#allocation3 + $0x278] sm:$0xff]
    %v3277 = vld [vmem:[#allocation3 + $0x280] sm:$0xff]
    %v3278 = vld [vmem:[#allocation3 + $0x288] sm:$0xff]
    %v3279 = vld [vmem:[#allocation3 + $0x290] sm:$0xff]
    %v3280 = vld [vmem:[#allocation3 + $0x298] sm:$0xff]
    %v3281 = vld [vmem:[#allocation3 + $0x2a0] sm:$0xff]
    %v3282 = vld [vmem:[#allocation3 + $0x2a8] sm:$0xff]
    %v3283 = vld [vmem:[#allocation3 + $0x2b0] sm:$0xff]
    %v3284 = vld [vmem:[#allocation3 + $0x2b8] sm:$0xff]
    %v3285 = vld [vmem:[#allocation3 + $0x2c0] sm:$0xff]
    %v3286 = vld [vmem:[#allocation3 + $0x2c8] sm:$0xff]
    %v3287 = vld [vmem:[#allocation3 + $0x2d0] sm:$0xff]
    %v3288 = vld [vmem:[#allocation3 + $0x2d8] sm:$0xff]
    %v3289 = vld [vmem:[#allocation3 + $0x2e0] sm:$0xff]
    %v3290 = vld [vmem:[#allocation3 + $0x2e8] sm:$0xff]
    %v3291 = vld [vmem:[#allocation3 + $0x2f0] sm:$0xff]
    %v3292 = vld [vmem:[#allocation3 + $0x2f8] sm:$0xff]
    %v3293 = vld [vmem:[#allocation3 + $0x300] sm:$0xff]
    %v3294 = vld [vmem:[#allocation3 + $0x308] sm:$0xff]
    %v3295 = vld [vmem:[#allocation3 + $0x310] sm:$0xff]
    %v3296 = vld [vmem:[#allocation3 + $0x318] sm:$0xff]
    %v3297 = vld [vmem:[#allocation3 + $0x320] sm:$0xff]
    %v3298 = vld [vmem:[#allocation3 + $0x328] sm:$0xff]
    %v3299 = vld [vmem:[#allocation3 + $0x330] sm:$0xff]
    %v3300 = vld [vmem:[#allocation3 + $0x338] sm:$0xff]
    %v3301 = vld [vmem:[#allocation3 + $0x340] sm:$0xff]
    %v3302 = vld [vmem:[#allocation3 + $0x348] sm:$0xff]
    %v3303 = vld [vmem:[#allocation3 + $0x350] sm:$0xff]
    %v3304 = vld [vmem:[#allocation3 + $0x358] sm:$0xff]
    %v3305 = vld [vmem:[#allocation3 + $0x360] sm:$0xff]
    %v3306 = vld [vmem:[#allocation3 + $0x368] sm:$0xff]
    %v3307 = vld [vmem:[#allocation3 + $0x370] sm:$0xff]
    %v3308 = vld [vmem:[#allocation3 + $0x378] sm:$0xff]
    %v3309 = vld [vmem:[#allocation3 + $0x380] sm:$0xff]
    %v3310 = vld [vmem:[#allocation3 + $0x388] sm:$0xff]
    %v3311 = vld [vmem:[#allocation3 + $0x390] sm:$0xff]
    %v3312 = vld [vmem:[#allocation3 + $0x398] sm:$0xff]
    %v3313 = vld [vmem:[#allocation3 + $0x3a0] sm:$0xff]
    %v3314 = vld [vmem:[#allocation3 + $0x3a8] sm:$0xff]
    %v3315 = vld [vmem:[#allocation3 + $0x3b0] sm:$0xff]
    %v3316 = vld [vmem:[#allocation3 + $0x3b8] sm:$0xff]
    %v3317 = vld [vmem:[#allocation3 + $0x3c0] sm:$0xff]
    %v3318 = vld [vmem:[#allocation3 + $0x3c8] sm:$0xff]
    %v3319 = vld [vmem:[#allocation3 + $0x3d0] sm:$0xff]
    %v3320 = vld [vmem:[#allocation3 + $0x3d8] sm:$0xff]
    %v3321 = vld [vmem:[#allocation3 + $0x3e0] sm:$0xff]
    %v3322 = vld [vmem:[#allocation3 + $0x3e8] sm:$0xff]
    %v3323 = vld [vmem:[#allocation3 + $0x3f0] sm:$0xff]
    %v3324 = vld [vmem:[#allocation3 + $0x3f8] sm:$0xff]
    %v3325 = vld [vmem:[#allocation3 + $0x400] sm:$0xff]
    %v3326 = vld [vmem:[#allocation3 + $0x408] sm:$0xff]
    %v3327 = vld [vmem:[#allocation3 + $0x410] sm:$0xff]
    %v3328 = vld [vmem:[#allocation3 + $0x418] sm:$0xff]
    %v3329 = vld [vmem:[#allocation3 + $0x420] sm:$0xff]
    %v3330 = vld [vmem:[#allocation3 + $0x428] sm:$0xff]
    %v3331 = vld [vmem:[#allocation3 + $0x430] sm:$0xff]
    %v3332 = vld [vmem:[#allocation3 + $0x438] sm:$0xff]
    %v3333 = vld [vmem:[#allocation3 + $0x440] sm:$0xff]
    %v3334 = vld [vmem:[#allocation3 + $0x448] sm:$0xff]
    %v3335 = vld [vmem:[#allocation3 + $0x450] sm:$0xff]
    %v3336 = vld [vmem:[#allocation3 + $0x458] sm:$0xff]
    %v3337 = vld [vmem:[#allocation3 + $0x460] sm:$0xff]
    %v3338 = vld [vmem:[#allocation3 + $0x468] sm:$0xff]
    %v3339 = vld [vmem:[#allocation3 + $0x470] sm:$0xff]
    %v3340 = vld [vmem:[#allocation3 + $0x478] sm:$0xff]
    %v3341 = vld [vmem:[#allocation3 + $0x480] sm:$0xff]
    %v3342 = vld [vmem:[#allocation3 + $0x488] sm:$0xff]
    %v3343 = vld [vmem:[#allocation3 + $0x490] sm:$0xff]
    %v3344 = vld [vmem:[#allocation3 + $0x498] sm:$0xff]
    %v3345 = vld [vmem:[#allocation3 + $0x4a0] sm:$0xff]
    %v3346 = vld [vmem:[#allocation3 + $0x4a8] sm:$0xff]
    %v3347 = vld [vmem:[#allocation3 + $0x4b0] sm:$0xff]
    %v3348 = vld [vmem:[#allocation3 + $0x4b8] sm:$0xff]
    %v3349 = vld [vmem:[#allocation3 + $0x4c0] sm:$0xff]
    %v3350 = vld [vmem:[#allocation3 + $0x4c8] sm:$0xff]
    %v3351 = vld [vmem:[#allocation3 + $0x4d0] sm:$0xff]
    %v3352 = vld [vmem:[#allocation3 + $0x4d8] sm:$0xff]
    %v3353 = vld [vmem:[#allocation3 + $0x4e0] sm:$0xff]
    %v3354 = vld [vmem:[#allocation3 + $0x4e8] sm:$0xff]
    %v3355 = vld [vmem:[#allocation3 + $0x4f0] sm:$0xff]
    %v3356 = vld [vmem:[#allocation3 + $0x4f8] sm:$0xff]
    %v3357 = vld [vmem:[#allocation3 + $0x500] sm:$0xff]
    %v3358 = vld [vmem:[#allocation3 + $0x508] sm:$0xff]
    %v3359 = vld [vmem:[#allocation3 + $0x510] sm:$0xff]
    %v3360 = vld [vmem:[#allocation3 + $0x518] sm:$0xff]
    %v3361 = vld [vmem:[#allocation3 + $0x520] sm:$0xff]
    %v3362 = vld [vmem:[#allocation3 + $0x528] sm:$0xff]
    %v3363 = vld [vmem:[#allocation3 + $0x530] sm:$0xff]
    %v3364 = vld [vmem:[#allocation3 + $0x538] sm:$0xff]
    %v3365 = vld [vmem:[#allocation3 + $0x540] sm:$0xff]
    %v3366 = vld [vmem:[#allocation3 + $0x548] sm:$0xff]
    %v3367 = vld [vmem:[#allocation3 + $0x550] sm:$0xff]
    %v3368 = vld [vmem:[#allocation3 + $0x558] sm:$0xff]
    %v3369 = vld [vmem:[#allocation3 + $0x560] sm:$0xff]
    %v3370 = vld [vmem:[#allocation3 + $0x568] sm:$0xff]
    %v3371 = vld [vmem:[#allocation3 + $0x570] sm:$0xff]
    %v3372 = vld [vmem:[#allocation3 + $0x578] sm:$0xff]
    %v3373 = vld [vmem:[#allocation3 + $0x580] sm:$0xff]
    %v3374 = vld [vmem:[#allocation3 + $0x588] sm:$0xff]
    %v3375 = vld [vmem:[#allocation3 + $0x590] sm:$0xff]
    %v3376 = vld [vmem:[#allocation3 + $0x598] sm:$0xff]
    %v3377 = vld [vmem:[#allocation3 + $0x5a0] sm:$0xff]
    %v3378 = vld [vmem:[#allocation3 + $0x5a8] sm:$0xff]
    %v3379 = vld [vmem:[#allocation3 + $0x5b0] sm:$0xff]
    %v3380 = vld [vmem:[#allocation3 + $0x5b8] sm:$0xff]
    %v3381 = vld [vmem:[#allocation3 + $0x5c0] sm:$0xff]
    %v3382 = vld [vmem:[#allocation3 + $0x5c8] sm:$0xff]
    %v3383 = vld [vmem:[#allocation3 + $0x5d0] sm:$0xff]
    %v3384 = vld [vmem:[#allocation3 + $0x5d8] sm:$0xff]
    %v3385 = vld [vmem:[#allocation3 + $0x5e0] sm:$0xff]
    %v3386 = vld [vmem:[#allocation3 + $0x5e8] sm:$0xff]
    %v3387 = vld [vmem:[#allocation3 + $0x5f0] sm:$0xff]
    %v3388 = vld [vmem:[#allocation3 + $0x5f8] sm:$0xff]
    %v3389 = vld [vmem:[#allocation3 + $0x600] sm:$0xff]
    %v3390 = vld [vmem:[#allocation3 + $0x608] sm:$0xff]
    %v3391 = vld [vmem:[#allocation3 + $0x610] sm:$0xff]
    %v3392 = vld [vmem:[#allocation3 + $0x618] sm:$0xff]
    %v3393 = vld [vmem:[#allocation3 + $0x620] sm:$0xff]
    %v3394 = vld [vmem:[#allocation3 + $0x628] sm:$0xff]
    %v3395 = vld [vmem:[#allocation3 + $0x630] sm:$0xff]
    %v3396 = vld [vmem:[#allocation3 + $0x638] sm:$0xff]
    %v3397 = vld [vmem:[#allocation3 + $0x640] sm:$0xff]
    %v3398 = vld [vmem:[#allocation3 + $0x648] sm:$0xff]
    %v3399 = vld [vmem:[#allocation3 + $0x650] sm:$0xff]
    %v3400 = vld [vmem:[#allocation3 + $0x658] sm:$0xff]
    %v3401 = vld [vmem:[#allocation3 + $0x660] sm:$0xff]
    %v3402 = vld [vmem:[#allocation3 + $0x668] sm:$0xff]
    %v3403 = vld [vmem:[#allocation3 + $0x670] sm:$0xff]
    %v3404 = vld [vmem:[#allocation3 + $0x678] sm:$0xff]
    %v3405 = vld [vmem:[#allocation3 + $0x680] sm:$0xff]
    %v3406 = vld [vmem:[#allocation3 + $0x688] sm:$0xff]
    %v3407 = vld [vmem:[#allocation3 + $0x690] sm:$0xff]
    %v3408 = vld [vmem:[#allocation3 + $0x698] sm:$0xff]
    %v3409 = vld [vmem:[#allocation3 + $0x6a0] sm:$0xff]
    %v3410 = vld [vmem:[#allocation3 + $0x6a8] sm:$0xff]
    %v3411 = vld [vmem:[#allocation3 + $0x6b0] sm:$0xff]
    %v3412 = vld [vmem:[#allocation3 + $0x6b8] sm:$0xff]
    %v3413 = vld [vmem:[#allocation3 + $0x6c0] sm:$0xff]
    %v3414 = vld [vmem:[#allocation3 + $0x6c8] sm:$0xff]
    %v3415 = vld [vmem:[#allocation3 + $0x6d0] sm:$0xff]
    %v3416 = vld [vmem:[#allocation3 + $0x6d8] sm:$0xff]
    %v3417 = vld [vmem:[#allocation3 + $0x6e0] sm:$0xff]
    %v3418 = vld [vmem:[#allocation3 + $0x6e8] sm:$0xff]
    %v3419 = vld [vmem:[#allocation3 + $0x6f0] sm:$0xff]
    %v3420 = vld [vmem:[#allocation3 + $0x6f8] sm:$0xff]
    %v3421 = vld [vmem:[#allocation3 + $0x700] sm:$0xff]
    %v3422 = vld [vmem:[#allocation3 + $0x708] sm:$0xff]
    %v3423 = vld [vmem:[#allocation3 + $0x710] sm:$0xff]
    %v3424 = vld [vmem:[#allocation3 + $0x718] sm:$0xff]
    %v3425 = vld [vmem:[#allocation3 + $0x720] sm:$0xff]
    %v3426 = vld [vmem:[#allocation3 + $0x728] sm:$0xff]
    %v3427 = vld [vmem:[#allocation3 + $0x730] sm:$0xff]
    %v3428 = vld [vmem:[#allocation3 + $0x738] sm:$0xff]
    %v3429 = vld [vmem:[#allocation3 + $0x740] sm:$0xff]
    %v3430 = vld [vmem:[#allocation3 + $0x748] sm:$0xff]
    %v3431 = vld [vmem:[#allocation3 + $0x750] sm:$0xff]
    %v3432 = vld [vmem:[#allocation3 + $0x758] sm:$0xff]
    %v3433 = vld [vmem:[#allocation3 + $0x760] sm:$0xff]
    %v3434 = vld [vmem:[#allocation3 + $0x768] sm:$0xff]
    %v3435 = vld [vmem:[#allocation3 + $0x770] sm:$0xff]
    %v3436 = vld [vmem:[#allocation3 + $0x778] sm:$0xff]
    %v3437 = vld [vmem:[#allocation3 + $0x780] sm:$0xff]
    %v3438 = vld [vmem:[#allocation3 + $0x788] sm:$0xff]
    %v3439 = vld [vmem:[#allocation3 + $0x790] sm:$0xff]
    %v3440 = vld [vmem:[#allocation3 + $0x798] sm:$0xff]
    %v3441 = vld [vmem:[#allocation3 + $0x7a0] sm:$0xff]
    %v3442 = vld [vmem:[#allocation3 + $0x7a8] sm:$0xff]
    %v3443 = vld [vmem:[#allocation3 + $0x7b0] sm:$0xff]
    %v3444 = vld [vmem:[#allocation3 + $0x7b8] sm:$0xff]
    %v3445 = vld [vmem:[#allocation3 + $0x7c0] sm:$0xff]
    %v3446 = vld [vmem:[#allocation3 + $0x7c8] sm:$0xff]
    %v3447 = vld [vmem:[#allocation3 + $0x7d0] sm:$0xff]
    %v3448 = vld [vmem:[#allocation3 + $0x7d8] sm:$0xff]
    %v3449 = vld [vmem:[#allocation3 + $0x7e0] sm:$0xff]
    %v3450 = vld [vmem:[#allocation3 + $0x7e8] sm:$0xff]
    %v3451 = vld [vmem:[#allocation3 + $0x7f0] sm:$0xff]
    %v3452 = vld [vmem:[#allocation3 + $0x7f8] sm:$0xff]
    %v3453 = vld [vmem:[#allocation3 + $0x800] sm:$0xff]
    %v3454 = vld [vmem:[#allocation3 + $0x808] sm:$0xff]
    %v3455 = vld [vmem:[#allocation3 + $0x810] sm:$0xff]
    %v3456 = vld [vmem:[#allocation3 + $0x818] sm:$0xff]
    %v3457 = vld [vmem:[#allocation3 + $0x820] sm:$0xff]
    %v3458 = vld [vmem:[#allocation3 + $0x828] sm:$0xff]
    %v3459 = vld [vmem:[#allocation3 + $0x830] sm:$0xff]
    %v3460 = vld [vmem:[#allocation3 + $0x838] sm:$0xff]
    %v3461 = vld [vmem:[#allocation3 + $0x840] sm:$0xff]
    %v3462 = vld [vmem:[#allocation3 + $0x848] sm:$0xff]
    %v3463 = vld [vmem:[#allocation3 + $0x850] sm:$0xff]
    %v3464 = vld [vmem:[#allocation3 + $0x858] sm:$0xff]
    %v3465 = vld [vmem:[#allocation3 + $0x860] sm:$0xff]
    %v3466 = vld [vmem:[#allocation3 + $0x868] sm:$0xff]
    %v3467 = vld [vmem:[#allocation3 + $0x870] sm:$0xff]
    %v3468 = vld [vmem:[#allocation3 + $0x878] sm:$0xff]
    %v3469 = vld [vmem:[#allocation3 + $0x880] sm:$0xff]
    %v3470 = vld [vmem:[#allocation3 + $0x888] sm:$0xff]
    %v3471 = vld [vmem:[#allocation3 + $0x890] sm:$0xff]
    %v3472 = vld [vmem:[#allocation3 + $0x898] sm:$0xff]
    %v3473 = vld [vmem:[#allocation3 + $0x8a0] sm:$0xff]
    %v3474 = vld [vmem:[#allocation3 + $0x8a8] sm:$0xff]
    %v3475 = vld [vmem:[#allocation3 + $0x8b0] sm:$0xff]
    %v3476 = vld [vmem:[#allocation3 + $0x8b8] sm:$0xff]
    %v3477 = vld [vmem:[#allocation3 + $0x8c0] sm:$0xff]
    %v3478 = vld [vmem:[#allocation3 + $0x8c8] sm:$0xff]
    %v3479 = vld [vmem:[#allocation3 + $0x8d0] sm:$0xff]
    %v3480 = vld [vmem:[#allocation3 + $0x8d8] sm:$0xff]
    %v3481 = vld [vmem:[#allocation3 + $0x8e0] sm:$0xff]
    %v3482 = vld [vmem:[#allocation3 + $0x8e8] sm:$0xff]
    %v3483 = vld [vmem:[#allocation3 + $0x8f0] sm:$0xff]
    %v3484 = vld [vmem:[#allocation3 + $0x8f8] sm:$0xff]
    %v3485 = vld [vmem:[#allocation3 + $0x900] sm:$0xff]
    %v3486 = vld [vmem:[#allocation3 + $0x908] sm:$0xff]
    %v3487 = vld [vmem:[#allocation3 + $0x910] sm:$0xff]
    %v3488 = vld [vmem:[#allocation3 + $0x918] sm:$0xff]
    %v3489 = vld [vmem:[#allocation3 + $0x920] sm:$0xff]
    %v3490 = vld [vmem:[#allocation3 + $0x928] sm:$0xff]
    %v3491 = vld [vmem:[#allocation3 + $0x930] sm:$0xff]
    %v3492 = vld [vmem:[#allocation3 + $0x938] sm:$0xff]
    %v3493 = vld [vmem:[#allocation3 + $0x940] sm:$0xff]
    %v3494 = vld [vmem:[#allocation3 + $0x948] sm:$0xff]
    %v3495 = vld [vmem:[#allocation3 + $0x950] sm:$0xff]
    %v3496 = vld [vmem:[#allocation3 + $0x958] sm:$0xff]
    %v3497 = vld [vmem:[#allocation3 + $0x960] sm:$0xff]
    %v3498 = vld [vmem:[#allocation3 + $0x968] sm:$0xff]
    %v3499 = vld [vmem:[#allocation3 + $0x970] sm:$0xff]
    %v3500 = vld [vmem:[#allocation3 + $0x978] sm:$0xff]
    %v3501 = vld [vmem:[#allocation3 + $0x980] sm:$0xff]
    %v3502 = vld [vmem:[#allocation3 + $0x988] sm:$0xff]
    %v3503 = vld [vmem:[#allocation3 + $0x990] sm:$0xff]
    %v3504 = vld [vmem:[#allocation3 + $0x998] sm:$0xff]
    %v3505 = vld [vmem:[#allocation3 + $0x9a0] sm:$0xff]
    %v3506 = vld [vmem:[#allocation3 + $0x9a8] sm:$0xff]
    %v3507 = vld [vmem:[#allocation3 + $0x9b0] sm:$0xff]
    %v3508 = vld [vmem:[#allocation3 + $0x9b8] sm:$0xff]
    %v3509 = vld [vmem:[#allocation3 + $0x9c0] sm:$0xff]
    %v3510 = vld [vmem:[#allocation3 + $0x9c8] sm:$0xff]
    %v3511 = vld [vmem:[#allocation3 + $0x9d0] sm:$0xff]
    %v3512 = vld [vmem:[#allocation3 + $0x9d8] sm:$0xff]
    %v3513 = vld [vmem:[#allocation3 + $0x9e0] sm:$0xff]
    %v3514 = vld [vmem:[#allocation3 + $0x9e8] sm:$0xff]
    %v3515 = vld [vmem:[#allocation3 + $0x9f0] sm:$0xff]
    %v3516 = vld [vmem:[#allocation3 + $0x9f8] sm:$0xff]
    %v3517 = vld [vmem:[#allocation3 + $0xa00] sm:$0xff]
    %v3518 = vld [vmem:[#allocation3 + $0xa08] sm:$0xff]
    %v3519 = vld [vmem:[#allocation3 + $0xa10] sm:$0xff]
    %v3520 = vld [vmem:[#allocation3 + $0xa18] sm:$0xff]
    %v3521 = vld [vmem:[#allocation3 + $0xa20] sm:$0xff]
    %v3522 = vld [vmem:[#allocation3 + $0xa28] sm:$0xff]
    %v3523 = vld [vmem:[#allocation3 + $0xa30] sm:$0xff]
    %v3524 = vld [vmem:[#allocation3 + $0xa38] sm:$0xff]
    %v3525 = vld [vmem:[#allocation3 + $0xa40] sm:$0xff]
    %v3526 = vld [vmem:[#allocation3 + $0xa48] sm:$0xff]
    %v3527 = vld [vmem:[#allocation3 + $0xa50] sm:$0xff]
    %v3528 = vld [vmem:[#allocation3 + $0xa58] sm:$0xff]
    %v3529 = vld [vmem:[#allocation3 + $0xa60] sm:$0xff]
    %v3530 = vld [vmem:[#allocation3 + $0xa68] sm:$0xff]
    %v3531 = vld [vmem:[#allocation3 + $0xa70] sm:$0xff]
    %v3532 = vld [vmem:[#allocation3 + $0xa78] sm:$0xff]
    %v3533 = vld [vmem:[#allocation3 + $0xa80] sm:$0xff]
    %v3534 = vld [vmem:[#allocation3 + $0xa88] sm:$0xff]
    %v3535 = vld [vmem:[#allocation3 + $0xa90] sm:$0xff]
    %v3536 = vld [vmem:[#allocation3 + $0xa98] sm:$0xff]
    %v3537 = vld [vmem:[#allocation3 + $0xaa0] sm:$0xff]
    %v3538 = vld [vmem:[#allocation3 + $0xaa8] sm:$0xff]
    %v3539 = vld [vmem:[#allocation3 + $0xab0] sm:$0xff]
    %v3540 = vld [vmem:[#allocation3 + $0xab8] sm:$0xff]
    %v3541 = vld [vmem:[#allocation3 + $0xac0] sm:$0xff]
    %v3542 = vld [vmem:[#allocation3 + $0xac8] sm:$0xff]
    %v3543 = vld [vmem:[#allocation3 + $0xad0] sm:$0xff]
    %v3544 = vld [vmem:[#allocation3 + $0xad8] sm:$0xff]
    %v3545 = vld [vmem:[#allocation3 + $0xae0] sm:$0xff]
    %v3546 = vld [vmem:[#allocation3 + $0xae8] sm:$0xff]
    %v3547 = vld [vmem:[#allocation3 + $0xaf0] sm:$0xff]
    %v3548 = vld [vmem:[#allocation3 + $0xaf8] sm:$0xff]
    %v3549 = vld [vmem:[#allocation3 + $0xb00] sm:$0xff]
    %v3550 = vld [vmem:[#allocation3 + $0xb08] sm:$0xff]
    %v3551 = vld [vmem:[#allocation3 + $0xb10] sm:$0xff]
    %v3552 = vld [vmem:[#allocation3 + $0xb18] sm:$0xff]
    %v3553 = vld [vmem:[#allocation3 + $0xb20] sm:$0xff]
    %v3554 = vld [vmem:[#allocation3 + $0xb28] sm:$0xff]
    %v3555 = vld [vmem:[#allocation3 + $0xb30] sm:$0xff]
    %v3556 = vld [vmem:[#allocation3 + $0xb38] sm:$0xff]
    %v3557 = vld [vmem:[#allocation3 + $0xb40] sm:$0xff]
    %v3558 = vld [vmem:[#allocation3 + $0xb48] sm:$0xff]
    %v3559 = vld [vmem:[#allocation3 + $0xb50] sm:$0xff]
    %v3560 = vld [vmem:[#allocation3 + $0xb58] sm:$0xff]
    %v3561 = vld [vmem:[#allocation3 + $0xb60] sm:$0xff]
    %v3562 = vld [vmem:[#allocation3 + $0xb68] sm:$0xff]
    %v3563 = vld [vmem:[#allocation3 + $0xb70] sm:$0xff]
    %v3564 = vld [vmem:[#allocation3 + $0xb78] sm:$0xff]
    %v3565 = vld [vmem:[#allocation3 + $0xb80] sm:$0xff]
    %v3566 = vld [vmem:[#allocation3 + $0xb88] sm:$0xff]
    %v3567 = vld [vmem:[#allocation3 + $0xb90] sm:$0xff]
    %v3568 = vld [vmem:[#allocation3 + $0xb98] sm:$0xff]
    %v3569 = vld [vmem:[#allocation3 + $0xba0] sm:$0xff]
    %v3570 = vld [vmem:[#allocation3 + $0xba8] sm:$0xff]
    %v3571 = vld [vmem:[#allocation3 + $0xbb0] sm:$0xff]
    %v3572 = vld [vmem:[#allocation3 + $0xbb8] sm:$0xff]
    %v3573 = vld [vmem:[#allocation3 + $0xbc0] sm:$0xff]
    %v3574 = vld [vmem:[#allocation3 + $0xbc8] sm:$0xff]
    %v3575 = vld [vmem:[#allocation3 + $0xbd0] sm:$0xff]
    %v3576 = vld [vmem:[#allocation3 + $0xbd8] sm:$0xff]
    %v3577 = vld [vmem:[#allocation3 + $0xbe0] sm:$0xff]
    %v3578 = vld [vmem:[#allocation3 + $0xbe8] sm:$0xff]
    %v3579 = vld [vmem:[#allocation3 + $0xbf0] sm:$0xff]
    %v3580 = vld [vmem:[#allocation3 + $0xbf8] sm:$0xff]
    %v3581 = vld [vmem:[#allocation3 + $0xc00] sm:$0xff]
    %v3582 = vld [vmem:[#allocation3 + $0xc08] sm:$0xff]
    %v3583 = vld [vmem:[#allocation3 + $0xc10] sm:$0xff]
    %v3584 = vld [vmem:[#allocation3 + $0xc18] sm:$0xff]
    %v3585 = vld [vmem:[#allocation3 + $0xc20] sm:$0xff]
    %v3586 = vld [vmem:[#allocation3 + $0xc28] sm:$0xff]
    %v3587 = vld [vmem:[#allocation3 + $0xc30] sm:$0xff]
    %v3588 = vld [vmem:[#allocation3 + $0xc38] sm:$0xff]
    %v3589 = vld [vmem:[#allocation3 + $0xc40] sm:$0xff]
    %v3590 = vld [vmem:[#allocation3 + $0xc48] sm:$0xff]
    %v3591 = vld [vmem:[#allocation3 + $0xc50] sm:$0xff]
    %v3592 = vld [vmem:[#allocation3 + $0xc58] sm:$0xff]
    %v3593 = vld [vmem:[#allocation3 + $0xc60] sm:$0xff]
    %v3594 = vld [vmem:[#allocation3 + $0xc68] sm:$0xff]
    %v3595 = vld [vmem:[#allocation3 + $0xc70] sm:$0xff]
    %v3596 = vld [vmem:[#allocation3 + $0xc78] sm:$0xff]
    %v3597 = vld [vmem:[#allocation3 + $0xc80] sm:$0xff]
    %v3598 = vld [vmem:[#allocation3 + $0xc88] sm:$0xff]
    %v3599 = vld [vmem:[#allocation3 + $0xc90] sm:$0xff]
    %v3600 = vld [vmem:[#allocation3 + $0xc98] sm:$0xff]
    %v3601 = vld [vmem:[#allocation3 + $0xca0] sm:$0xff]
    %v3602 = vld [vmem:[#allocation3 + $0xca8] sm:$0xff]
    %v3603 = vld [vmem:[#allocation3 + $0xcb0] sm:$0xff]
    %v3604 = vld [vmem:[#allocation3 + $0xcb8] sm:$0xff]
    %v3605 = vld [vmem:[#allocation3 + $0xcc0] sm:$0xff]
    %v3606 = vld [vmem:[#allocation3 + $0xcc8] sm:$0xff]
    %v3607 = vld [vmem:[#allocation3 + $0xcd0] sm:$0xff]
    %v3608 = vld [vmem:[#allocation3 + $0xcd8] sm:$0xff]
    %v3609 = vld [vmem:[#allocation3 + $0xce0] sm:$0xff]
    %v3610 = vld [vmem:[#allocation3 + $0xce8] sm:$0xff]
    %v3611 = vld [vmem:[#allocation3 + $0xcf0] sm:$0xff]
    %v3612 = vld [vmem:[#allocation3 + $0xcf8] sm:$0xff]
    %v3613 = vld [vmem:[#allocation3 + $0xd00] sm:$0xff]
    %v3614 = vld [vmem:[#allocation3 + $0xd08] sm:$0xff]
    %v3615 = vld [vmem:[#allocation3 + $0xd10] sm:$0xff]
    %v3616 = vld [vmem:[#allocation3 + $0xd18] sm:$0xff]
    %v3617 = vld [vmem:[#allocation3 + $0xd20] sm:$0xff]
    %v3618 = vld [vmem:[#allocation3 + $0xd28] sm:$0xff]
    %v3619 = vld [vmem:[#allocation3 + $0xd30] sm:$0xff]
    %v3620 = vld [vmem:[#allocation3 + $0xd38] sm:$0xff]
    %v3621 = vld [vmem:[#allocation3 + $0xd40] sm:$0xff]
    %v3622 = vld [vmem:[#allocation3 + $0xd48] sm:$0xff]
    %v3623 = vld [vmem:[#allocation3 + $0xd50] sm:$0xff]
    %v3624 = vld [vmem:[#allocation3 + $0xd58] sm:$0xff]
    %v3625 = vld [vmem:[#allocation3 + $0xd60] sm:$0xff]
    %v3626 = vld [vmem:[#allocation3 + $0xd68] sm:$0xff]
    %v3627 = vld [vmem:[#allocation3 + $0xd70] sm:$0xff]
    %v3628 = vld [vmem:[#allocation3 + $0xd78] sm:$0xff]
    %v3629 = vld [vmem:[#allocation3 + $0xd80] sm:$0xff]
    %v3630 = vld [vmem:[#allocation3 + $0xd88] sm:$0xff]
    %v3631 = vld [vmem:[#allocation3 + $0xd90] sm:$0xff]
    %v3632 = vld [vmem:[#allocation3 + $0xd98] sm:$0xff]
    %v3633 = vld [vmem:[#allocation3 + $0xda0] sm:$0xff]
    %v3634 = vld [vmem:[#allocation3 + $0xda8] sm:$0xff]
    %v3635 = vld [vmem:[#allocation3 + $0xdb0] sm:$0xff]
    %v3636 = vld [vmem:[#allocation3 + $0xdb8] sm:$0xff]
    %v3637 = vld [vmem:[#allocation3 + $0xdc0] sm:$0xff]
    %v3638 = vld [vmem:[#allocation3 + $0xdc8] sm:$0xff]
    %v3639 = vld [vmem:[#allocation3 + $0xdd0] sm:$0xff]
    %v3640 = vld [vmem:[#allocation3 + $0xdd8] sm:$0xff]
    %v3641 = vld [vmem:[#allocation3 + $0xde0] sm:$0xff]
    %v3642 = vld [vmem:[#allocation3 + $0xde8] sm:$0xff]
    %v3643 = vld [vmem:[#allocation3 + $0xdf0] sm:$0xff]
    %v3644 = vld [vmem:[#allocation3 + $0xdf8] sm:$0xff]
    %v3645 = vld [vmem:[#allocation3 + $0xe00] sm:$0xff]
    %v3646 = vld [vmem:[#allocation3 + $0xe08] sm:$0xff]
    %v3647 = vld [vmem:[#allocation3 + $0xe10] sm:$0xff]
    %v3648 = vld [vmem:[#allocation3 + $0xe18] sm:$0xff]
    %v3649 = vld [vmem:[#allocation3 + $0xe20] sm:$0xff]
    %v3650 = vld [vmem:[#allocation3 + $0xe28] sm:$0xff]
    %v3651 = vld [vmem:[#allocation3 + $0xe30] sm:$0xff]
    %v3652 = vld [vmem:[#allocation3 + $0xe38] sm:$0xff]
    %v3653 = vld [vmem:[#allocation3 + $0xe40] sm:$0xff]
    %v3654 = vld [vmem:[#allocation3 + $0xe48] sm:$0xff]
    %v3655 = vld [vmem:[#allocation3 + $0xe50] sm:$0xff]
    %v3656 = vld [vmem:[#allocation3 + $0xe58] sm:$0xff]
    %v3657 = vld [vmem:[#allocation3 + $0xe60] sm:$0xff]
    %v3658 = vld [vmem:[#allocation3 + $0xe68] sm:$0xff]
    %v3659 = vld [vmem:[#allocation3 + $0xe70] sm:$0xff]
    %v3660 = vld [vmem:[#allocation3 + $0xe78] sm:$0xff]
    %v3661 = vld [vmem:[#allocation3 + $0xe80] sm:$0xff]
    %v3662 = vld [vmem:[#allocation3 + $0xe88] sm:$0xff]
    %v3663 = vld [vmem:[#allocation3 + $0xe90] sm:$0xff]
    %v3664 = vld [vmem:[#allocation3 + $0xe98] sm:$0xff]
    %v3665 = vld [vmem:[#allocation3 + $0xea0] sm:$0xff]
    %v3666 = vld [vmem:[#allocation3 + $0xea8] sm:$0xff]
    %v3667 = vld [vmem:[#allocation3 + $0xeb0] sm:$0xff]
    %v3668 = vld [vmem:[#allocation3 + $0xeb8] sm:$0xff]
    %v3669 = vld [vmem:[#allocation3 + $0xec0] sm:$0xff]
    %v3670 = vld [vmem:[#allocation3 + $0xec8] sm:$0xff]
    %v3671 = vld [vmem:[#allocation3 + $0xed0] sm:$0xff]
    %v3672 = vld [vmem:[#allocation3 + $0xed8] sm:$0xff]
    %v3673 = vld [vmem:[#allocation3 + $0xee0] sm:$0xff]
    %v3674 = vld [vmem:[#allocation3 + $0xee8] sm:$0xff]
    %v3675 = vld [vmem:[#allocation3 + $0xef0] sm:$0xff]
    %v3676 = vld [vmem:[#allocation3 + $0xef8] sm:$0xff]
    %v3677 = vld [vmem:[#allocation3 + $0xf00] sm:$0xff]
    %v3678 = vld [vmem:[#allocation3 + $0xf08] sm:$0xff]
    %v3679 = vld [vmem:[#allocation3 + $0xf10] sm:$0xff]
    %v3680 = vld [vmem:[#allocation3 + $0xf18] sm:$0xff]
    %v3681 = vld [vmem:[#allocation3 + $0xf20] sm:$0xff]
    %v3682 = vld [vmem:[#allocation3 + $0xf28] sm:$0xff]
    %v3683 = vld [vmem:[#allocation3 + $0xf30] sm:$0xff]
    %v3684 = vld [vmem:[#allocation3 + $0xf38] sm:$0xff]
    %v3685 = vld [vmem:[#allocation3 + $0xf40] sm:$0xff]
    %v3686 = vld [vmem:[#allocation3 + $0xf48] sm:$0xff]
    %v3687 = vld [vmem:[#allocation3 + $0xf50] sm:$0xff]
    %v3688 = vld [vmem:[#allocation3 + $0xf58] sm:$0xff]
    %v3689 = vld [vmem:[#allocation3 + $0xf60] sm:$0xff]
    %v3690 = vld [vmem:[#allocation3 + $0xf68] sm:$0xff]
    %v3691 = vld [vmem:[#allocation3 + $0xf70] sm:$0xff]
    %v3692 = vld [vmem:[#allocation3 + $0xf78] sm:$0xff]
    %v3693 = vld [vmem:[#allocation3 + $0xf80] sm:$0xff]
    %v3694 = vld [vmem:[#allocation3 + $0xf88] sm:$0xff]
    %v3695 = vld [vmem:[#allocation3 + $0xf90] sm:$0xff]
    %v3696 = vld [vmem:[#allocation3 + $0xf98] sm:$0xff]
    %v3697 = vld [vmem:[#allocation3 + $0xfa0] sm:$0xff]
    %v3698 = vld [vmem:[#allocation3 + $0xfa8] sm:$0xff]
    %v3699 = vld [vmem:[#allocation3 + $0xfb0] sm:$0xff]
    %v3700 = vld [vmem:[#allocation3 + $0xfb8] sm:$0xff]
    %v3701 = vld [vmem:[#allocation3 + $0xfc0] sm:$0xff]
    %v3702 = vld [vmem:[#allocation3 + $0xfc8] sm:$0xff]
    %v3703 = vld [vmem:[#allocation3 + $0xfd0] sm:$0xff]
    %v3704 = vld [vmem:[#allocation3 + $0xfd8] sm:$0xff]
    %v3705 = vld [vmem:[#allocation3 + $0xfe0] sm:$0xff]
    %v3706 = vld [vmem:[#allocation3 + $0xfe8] sm:$0xff]
    %v3707 = vld [vmem:[#allocation3 + $0xff0] sm:$0xff]
    %v3708 = vld [vmem:[#allocation3 + $0xff8] sm:$0xff]
    %v3710 = vlaneseq
    %v3711 = vshrl.u32 %v3710, 7
    %v3712 = vsub.s32 0, %v3711
    %v3713 = vrot.slane %v130, %v3712
    %v3714 = vlaneseq
    %v3715 = vshrl.u32 %v3714, 7
    %v3716 = vsub.s32 1, %v3715
    %v3717 = vrot.slane %v130, %v3716
    %v3718 = vlaneseq
    %v3719 = vshrl.u32 %v3718, 7
    %v3720 = vsub.s32 2, %v3719
    %v3721 = vrot.slane %v130, %v3720
    %v3722 = vlaneseq
    %v3723 = vshrl.u32 %v3722, 7
    %v3724 = vsub.s32 3, %v3723
    %v3725 = vrot.slane %v130, %v3724
    %v3726 = vlaneseq
    %v3727 = vshrl.u32 %v3726, 7
    %v3728 = vsub.s32 4, %v3727
    %v3729 = vrot.slane %v130, %v3728
    %v3730 = vlaneseq
    %v3731 = vshrl.u32 %v3730, 7
    %v3732 = vsub.s32 5, %v3731
    %v3733 = vrot.slane %v130, %v3732
    %v3734 = vlaneseq
    %v3735 = vshrl.u32 %v3734, 7
    %v3736 = vsub.s32 6, %v3735
    %v3737 = vrot.slane %v130, %v3736
    %v3738 = vlaneseq
    %v3739 = vshrl.u32 %v3738, 7
    %v3740 = vsub.s32 7, %v3739
    %v3741 = vrot.slane %v130, %v3740
    %v4262 = vunpack.c.l.b16 %v3197
    %v4263 = vunpack.c.h.b16 %v3197
    %v4264 = vunpack.c.l.b16 %v3198
    %v4265 = vunpack.c.h.b16 %v3198
    %v4266 = vunpack.c.l.b16 %v3199
    %v4267 = vunpack.c.h.b16 %v3199
    %v4268 = vunpack.c.l.b16 %v3200
    %v4269 = vunpack.c.h.b16 %v3200
    %v4270 = vunpack.c.l.b16 %v3201
    %v4271 = vunpack.c.h.b16 %v3201
    %v4272 = vunpack.c.l.b16 %v3202
    %v4273 = vunpack.c.h.b16 %v3202
    %v4274 = vunpack.c.l.b16 %v3203
    %v4275 = vunpack.c.h.b16 %v3203
    %v4276 = vunpack.c.l.b16 %v3204
    %v4277 = vunpack.c.h.b16 %v3204
    %v4278 = vunpack.c.l.b16 %v3205
    %v4279 = vunpack.c.h.b16 %v3205
    %v4280 = vunpack.c.l.b16 %v3206
    %v4281 = vunpack.c.h.b16 %v3206
    %v4282 = vunpack.c.l.b16 %v3207
    %v4283 = vunpack.c.h.b16 %v3207
    %v4284 = vunpack.c.l.b16 %v3208
    %v4285 = vunpack.c.h.b16 %v3208
    %v4286 = vunpack.c.l.b16 %v3209
    %v4287 = vunpack.c.h.b16 %v3209
    %v4288 = vunpack.c.l.b16 %v3210
    %v4289 = vunpack.c.h.b16 %v3210
    %v4290 = vunpack.c.l.b16 %v3211
    %v4291 = vunpack.c.h.b16 %v3211
    %v4292 = vunpack.c.l.b16 %v3212
    %v4293 = vunpack.c.h.b16 %v3212
    %v4294 = vunpack.c.l.b16 %v3213
    %v4295 = vunpack.c.h.b16 %v3213
    %v4296 = vunpack.c.l.b16 %v3214
    %v4297 = vunpack.c.h.b16 %v3214
    %v4298 = vunpack.c.l.b16 %v3215
    %v4299 = vunpack.c.h.b16 %v3215
    %v4300 = vunpack.c.l.b16 %v3216
    %v4301 = vunpack.c.h.b16 %v3216
    %v4302 = vunpack.c.l.b16 %v3217
    %v4303 = vunpack.c.h.b16 %v3217
    %v4304 = vunpack.c.l.b16 %v3218
    %v4305 = vunpack.c.h.b16 %v3218
    %v4306 = vunpack.c.l.b16 %v3219
    %v4307 = vunpack.c.h.b16 %v3219
    %v4308 = vunpack.c.l.b16 %v3220
    %v4309 = vunpack.c.h.b16 %v3220
    %v4310 = vunpack.c.l.b16 %v3221
    %v4311 = vunpack.c.h.b16 %v3221
    %v4312 = vunpack.c.l.b16 %v3222
    %v4313 = vunpack.c.h.b16 %v3222
    %v4314 = vunpack.c.l.b16 %v3223
    %v4315 = vunpack.c.h.b16 %v3223
    %v4316 = vunpack.c.l.b16 %v3224
    %v4317 = vunpack.c.h.b16 %v3224
    %v4318 = vunpack.c.l.b16 %v3225
    %v4319 = vunpack.c.h.b16 %v3225
    %v4320 = vunpack.c.l.b16 %v3226
    %v4321 = vunpack.c.h.b16 %v3226
    %v4322 = vunpack.c.l.b16 %v3227
    %v4323 = vunpack.c.h.b16 %v3227
    %v4324 = vunpack.c.l.b16 %v3228
    %v4325 = vunpack.c.h.b16 %v3228
    %v4326 = vunpack.c.l.b16 %v3229
    %v4327 = vunpack.c.h.b16 %v3229
    %v4328 = vunpack.c.l.b16 %v3230
    %v4329 = vunpack.c.h.b16 %v3230
    %v4330 = vunpack.c.l.b16 %v3231
    %v4331 = vunpack.c.h.b16 %v3231
    %v4332 = vunpack.c.l.b16 %v3232
    %v4333 = vunpack.c.h.b16 %v3232
    %v4334 = vunpack.c.l.b16 %v3233
    %v4335 = vunpack.c.h.b16 %v3233
    %v4336 = vunpack.c.l.b16 %v3234
    %v4337 = vunpack.c.h.b16 %v3234
    %v4338 = vunpack.c.l.b16 %v3235
    %v4339 = vunpack.c.h.b16 %v3235
    %v4340 = vunpack.c.l.b16 %v3236
    %v4341 = vunpack.c.h.b16 %v3236
    %v4342 = vunpack.c.l.b16 %v3237
    %v4343 = vunpack.c.h.b16 %v3237
    %v4344 = vunpack.c.l.b16 %v3238
    %v4345 = vunpack.c.h.b16 %v3238
    %v4346 = vunpack.c.l.b16 %v3239
    %v4347 = vunpack.c.h.b16 %v3239
    %v4348 = vunpack.c.l.b16 %v3240
    %v4349 = vunpack.c.h.b16 %v3240
    %v4350 = vunpack.c.l.b16 %v3241
    %v4351 = vunpack.c.h.b16 %v3241
    %v4352 = vunpack.c.l.b16 %v3242
    %v4353 = vunpack.c.h.b16 %v3242
    %v4354 = vunpack.c.l.b16 %v3243
    %v4355 = vunpack.c.h.b16 %v3243
    %v4356 = vunpack.c.l.b16 %v3244
    %v4357 = vunpack.c.h.b16 %v3244
    %v4358 = vunpack.c.l.b16 %v3245
    %v4359 = vunpack.c.h.b16 %v3245
    %v4360 = vunpack.c.l.b16 %v3246
    %v4361 = vunpack.c.h.b16 %v3246
    %v4362 = vunpack.c.l.b16 %v3247
    %v4363 = vunpack.c.h.b16 %v3247
    %v4364 = vunpack.c.l.b16 %v3248
    %v4365 = vunpack.c.h.b16 %v3248
    %v4366 = vunpack.c.l.b16 %v3249
    %v4367 = vunpack.c.h.b16 %v3249
    %v4368 = vunpack.c.l.b16 %v3250
    %v4369 = vunpack.c.h.b16 %v3250
    %v4370 = vunpack.c.l.b16 %v3251
    %v4371 = vunpack.c.h.b16 %v3251
    %v4372 = vunpack.c.l.b16 %v3252
    %v4373 = vunpack.c.h.b16 %v3252
    %v4374 = vunpack.c.l.b16 %v3253
    %v4375 = vunpack.c.h.b16 %v3253
    %v4376 = vunpack.c.l.b16 %v3254
    %v4377 = vunpack.c.h.b16 %v3254
    %v4378 = vunpack.c.l.b16 %v3255
    %v4379 = vunpack.c.h.b16 %v3255
    %v4380 = vunpack.c.l.b16 %v3256
    %v4381 = vunpack.c.h.b16 %v3256
    %v4382 = vunpack.c.l.b16 %v3257
    %v4383 = vunpack.c.h.b16 %v3257
    %v4384 = vunpack.c.l.b16 %v3258
    %v4385 = vunpack.c.h.b16 %v3258
    %v4386 = vunpack.c.l.b16 %v3259
    %v4387 = vunpack.c.h.b16 %v3259
    %v4388 = vunpack.c.l.b16 %v3260
    %v4389 = vunpack.c.h.b16 %v3260
    %v4390 = vunpack.c.l.b16 %v3261
    %v4391 = vunpack.c.h.b16 %v3261
    %v4392 = vunpack.c.l.b16 %v3262
    %v4393 = vunpack.c.h.b16 %v3262
    %v4394 = vunpack.c.l.b16 %v3263
    %v4395 = vunpack.c.h.b16 %v3263
    %v4396 = vunpack.c.l.b16 %v3264
    %v4397 = vunpack.c.h.b16 %v3264
    %v4398 = vunpack.c.l.b16 %v3265
    %v4399 = vunpack.c.h.b16 %v3265
    %v4400 = vunpack.c.l.b16 %v3266
    %v4401 = vunpack.c.h.b16 %v3266
    %v4402 = vunpack.c.l.b16 %v3267
    %v4403 = vunpack.c.h.b16 %v3267
    %v4404 = vunpack.c.l.b16 %v3268
    %v4405 = vunpack.c.h.b16 %v3268
    %v4406 = vunpack.c.l.b16 %v3269
    %v4407 = vunpack.c.h.b16 %v3269
    %v4408 = vunpack.c.l.b16 %v3270
    %v4409 = vunpack.c.h.b16 %v3270
    %v4410 = vunpack.c.l.b16 %v3271
    %v4411 = vunpack.c.h.b16 %v3271
    %v4412 = vunpack.c.l.b16 %v3272
    %v4413 = vunpack.c.h.b16 %v3272
    %v4414 = vunpack.c.l.b16 %v3273
    %v4415 = vunpack.c.h.b16 %v3273
    %v4416 = vunpack.c.l.b16 %v3274
    %v4417 = vunpack.c.h.b16 %v3274
    %v4418 = vunpack.c.l.b16 %v3275
    %v4419 = vunpack.c.h.b16 %v3275
    %v4420 = vunpack.c.l.b16 %v3276
    %v4421 = vunpack.c.h.b16 %v3276
    %v4422 = vunpack.c.l.b16 %v3277
    %v4423 = vunpack.c.h.b16 %v3277
    %v4424 = vunpack.c.l.b16 %v3278
    %v4425 = vunpack.c.h.b16 %v3278
    %v4426 = vunpack.c.l.b16 %v3279
    %v4427 = vunpack.c.h.b16 %v3279
    %v4428 = vunpack.c.l.b16 %v3280
    %v4429 = vunpack.c.h.b16 %v3280
    %v4430 = vunpack.c.l.b16 %v3281
    %v4431 = vunpack.c.h.b16 %v3281
    %v4432 = vunpack.c.l.b16 %v3282
    %v4433 = vunpack.c.h.b16 %v3282
    %v4434 = vunpack.c.l.b16 %v3283
    %v4435 = vunpack.c.h.b16 %v3283
    %v4436 = vunpack.c.l.b16 %v3284
    %v4437 = vunpack.c.h.b16 %v3284
    %v4438 = vunpack.c.l.b16 %v3285
    %v4439 = vunpack.c.h.b16 %v3285
    %v4440 = vunpack.c.l.b16 %v3286
    %v4441 = vunpack.c.h.b16 %v3286
    %v4442 = vunpack.c.l.b16 %v3287
    %v4443 = vunpack.c.h.b16 %v3287
    %v4444 = vunpack.c.l.b16 %v3288
    %v4445 = vunpack.c.h.b16 %v3288
    %v4446 = vunpack.c.l.b16 %v3289
    %v4447 = vunpack.c.h.b16 %v3289
    %v4448 = vunpack.c.l.b16 %v3290
    %v4449 = vunpack.c.h.b16 %v3290
    %v4450 = vunpack.c.l.b16 %v3291
    %v4451 = vunpack.c.h.b16 %v3291
    %v4452 = vunpack.c.l.b16 %v3292
    %v4453 = vunpack.c.h.b16 %v3292
    %v4454 = vunpack.c.l.b16 %v3293
    %v4455 = vunpack.c.h.b16 %v3293
    %v4456 = vunpack.c.l.b16 %v3294
    %v4457 = vunpack.c.h.b16 %v3294
    %v4458 = vunpack.c.l.b16 %v3295
    %v4459 = vunpack.c.h.b16 %v3295
    %v4460 = vunpack.c.l.b16 %v3296
    %v4461 = vunpack.c.h.b16 %v3296
    %v4462 = vunpack.c.l.b16 %v3297
    %v4463 = vunpack.c.h.b16 %v3297
    %v4464 = vunpack.c.l.b16 %v3298
    %v4465 = vunpack.c.h.b16 %v3298
    %v4466 = vunpack.c.l.b16 %v3299
    %v4467 = vunpack.c.h.b16 %v3299
    %v4468 = vunpack.c.l.b16 %v3300
    %v4469 = vunpack.c.h.b16 %v3300
    %v4470 = vunpack.c.l.b16 %v3301
    %v4471 = vunpack.c.h.b16 %v3301
    %v4472 = vunpack.c.l.b16 %v3302
    %v4473 = vunpack.c.h.b16 %v3302
    %v4474 = vunpack.c.l.b16 %v3303
    %v4475 = vunpack.c.h.b16 %v3303
    %v4476 = vunpack.c.l.b16 %v3304
    %v4477 = vunpack.c.h.b16 %v3304
    %v4478 = vunpack.c.l.b16 %v3305
    %v4479 = vunpack.c.h.b16 %v3305
    %v4480 = vunpack.c.l.b16 %v3306
    %v4481 = vunpack.c.h.b16 %v3306
    %v4482 = vunpack.c.l.b16 %v3307
    %v4483 = vunpack.c.h.b16 %v3307
    %v4484 = vunpack.c.l.b16 %v3308
    %v4485 = vunpack.c.h.b16 %v3308
    %v4486 = vunpack.c.l.b16 %v3309
    %v4487 = vunpack.c.h.b16 %v3309
    %v4488 = vunpack.c.l.b16 %v3310
    %v4489 = vunpack.c.h.b16 %v3310
    %v4490 = vunpack.c.l.b16 %v3311
    %v4491 = vunpack.c.h.b16 %v3311
    %v4492 = vunpack.c.l.b16 %v3312
    %v4493 = vunpack.c.h.b16 %v3312
    %v4494 = vunpack.c.l.b16 %v3313
    %v4495 = vunpack.c.h.b16 %v3313
    %v4496 = vunpack.c.l.b16 %v3314
    %v4497 = vunpack.c.h.b16 %v3314
    %v4498 = vunpack.c.l.b16 %v3315
    %v4499 = vunpack.c.h.b16 %v3315
    %v4500 = vunpack.c.l.b16 %v3316
    %v4501 = vunpack.c.h.b16 %v3316
    %v4502 = vunpack.c.l.b16 %v3317
    %v4503 = vunpack.c.h.b16 %v3317
    %v4504 = vunpack.c.l.b16 %v3318
    %v4505 = vunpack.c.h.b16 %v3318
    %v4506 = vunpack.c.l.b16 %v3319
    %v4507 = vunpack.c.h.b16 %v3319
    %v4508 = vunpack.c.l.b16 %v3320
    %v4509 = vunpack.c.h.b16 %v3320
    %v4510 = vunpack.c.l.b16 %v3321
    %v4511 = vunpack.c.h.b16 %v3321
    %v4512 = vunpack.c.l.b16 %v3322
    %v4513 = vunpack.c.h.b16 %v3322
    %v4514 = vunpack.c.l.b16 %v3323
    %v4515 = vunpack.c.h.b16 %v3323
    %v4516 = vunpack.c.l.b16 %v3324
    %v4517 = vunpack.c.h.b16 %v3324
    %v4518 = vunpack.c.l.b16 %v3325
    %v4519 = vunpack.c.h.b16 %v3325
    %v4520 = vunpack.c.l.b16 %v3326
    %v4521 = vunpack.c.h.b16 %v3326
    %v4522 = vunpack.c.l.b16 %v3327
    %v4523 = vunpack.c.h.b16 %v3327
    %v4524 = vunpack.c.l.b16 %v3328
    %v4525 = vunpack.c.h.b16 %v3328
    %v4526 = vunpack.c.l.b16 %v3329
    %v4527 = vunpack.c.h.b16 %v3329
    %v4528 = vunpack.c.l.b16 %v3330
    %v4529 = vunpack.c.h.b16 %v3330
    %v4530 = vunpack.c.l.b16 %v3331
    %v4531 = vunpack.c.h.b16 %v3331
    %v4532 = vunpack.c.l.b16 %v3332
    %v4533 = vunpack.c.h.b16 %v3332
    %v4534 = vunpack.c.l.b16 %v3333
    %v4535 = vunpack.c.h.b16 %v3333
    %v4536 = vunpack.c.l.b16 %v3334
    %v4537 = vunpack.c.h.b16 %v3334
    %v4538 = vunpack.c.l.b16 %v3335
    %v4539 = vunpack.c.h.b16 %v3335
    %v4540 = vunpack.c.l.b16 %v3336
    %v4541 = vunpack.c.h.b16 %v3336
    %v4542 = vunpack.c.l.b16 %v3337
    %v4543 = vunpack.c.h.b16 %v3337
    %v4544 = vunpack.c.l.b16 %v3338
    %v4545 = vunpack.c.h.b16 %v3338
    %v4546 = vunpack.c.l.b16 %v3339
    %v4547 = vunpack.c.h.b16 %v3339
    %v4548 = vunpack.c.l.b16 %v3340
    %v4549 = vunpack.c.h.b16 %v3340
    %v4550 = vunpack.c.l.b16 %v3341
    %v4551 = vunpack.c.h.b16 %v3341
    %v4552 = vunpack.c.l.b16 %v3342
    %v4553 = vunpack.c.h.b16 %v3342
    %v4554 = vunpack.c.l.b16 %v3343
    %v4555 = vunpack.c.h.b16 %v3343
    %v4556 = vunpack.c.l.b16 %v3344
    %v4557 = vunpack.c.h.b16 %v3344
    %v4558 = vunpack.c.l.b16 %v3345
    %v4559 = vunpack.c.h.b16 %v3345
    %v4560 = vunpack.c.l.b16 %v3346
    %v4561 = vunpack.c.h.b16 %v3346
    %v4562 = vunpack.c.l.b16 %v3347
    %v4563 = vunpack.c.h.b16 %v3347
    %v4564 = vunpack.c.l.b16 %v3348
    %v4565 = vunpack.c.h.b16 %v3348
    %v4566 = vunpack.c.l.b16 %v3349
    %v4567 = vunpack.c.h.b16 %v3349
    %v4568 = vunpack.c.l.b16 %v3350
    %v4569 = vunpack.c.h.b16 %v3350
    %v4570 = vunpack.c.l.b16 %v3351
    %v4571 = vunpack.c.h.b16 %v3351
    %v4572 = vunpack.c.l.b16 %v3352
    %v4573 = vunpack.c.h.b16 %v3352
    %v4574 = vunpack.c.l.b16 %v3353
    %v4575 = vunpack.c.h.b16 %v3353
    %v4576 = vunpack.c.l.b16 %v3354
    %v4577 = vunpack.c.h.b16 %v3354
    %v4578 = vunpack.c.l.b16 %v3355
    %v4579 = vunpack.c.h.b16 %v3355
    %v4580 = vunpack.c.l.b16 %v3356
    %v4581 = vunpack.c.h.b16 %v3356
    %v4582 = vunpack.c.l.b16 %v3357
    %v4583 = vunpack.c.h.b16 %v3357
    %v4584 = vunpack.c.l.b16 %v3358
    %v4585 = vunpack.c.h.b16 %v3358
    %v4586 = vunpack.c.l.b16 %v3359
    %v4587 = vunpack.c.h.b16 %v3359
    %v4588 = vunpack.c.l.b16 %v3360
    %v4589 = vunpack.c.h.b16 %v3360
    %v4590 = vunpack.c.l.b16 %v3361
    %v4591 = vunpack.c.h.b16 %v3361
    %v4592 = vunpack.c.l.b16 %v3362
    %v4593 = vunpack.c.h.b16 %v3362
    %v4594 = vunpack.c.l.b16 %v3363
    %v4595 = vunpack.c.h.b16 %v3363
    %v4596 = vunpack.c.l.b16 %v3364
    %v4597 = vunpack.c.h.b16 %v3364
    %v4598 = vunpack.c.l.b16 %v3365
    %v4599 = vunpack.c.h.b16 %v3365
    %v4600 = vunpack.c.l.b16 %v3366
    %v4601 = vunpack.c.h.b16 %v3366
    %v4602 = vunpack.c.l.b16 %v3367
    %v4603 = vunpack.c.h.b16 %v3367
    %v4604 = vunpack.c.l.b16 %v3368
    %v4605 = vunpack.c.h.b16 %v3368
    %v4606 = vunpack.c.l.b16 %v3369
    %v4607 = vunpack.c.h.b16 %v3369
    %v4608 = vunpack.c.l.b16 %v3370
    %v4609 = vunpack.c.h.b16 %v3370
    %v4610 = vunpack.c.l.b16 %v3371
    %v4611 = vunpack.c.h.b16 %v3371
    %v4612 = vunpack.c.l.b16 %v3372
    %v4613 = vunpack.c.h.b16 %v3372
    %v4614 = vunpack.c.l.b16 %v3373
    %v4615 = vunpack.c.h.b16 %v3373
    %v4616 = vunpack.c.l.b16 %v3374
    %v4617 = vunpack.c.h.b16 %v3374
    %v4618 = vunpack.c.l.b16 %v3375
    %v4619 = vunpack.c.h.b16 %v3375
    %v4620 = vunpack.c.l.b16 %v3376
    %v4621 = vunpack.c.h.b16 %v3376
    %v4622 = vunpack.c.l.b16 %v3377
    %v4623 = vunpack.c.h.b16 %v3377
    %v4624 = vunpack.c.l.b16 %v3378
    %v4625 = vunpack.c.h.b16 %v3378
    %v4626 = vunpack.c.l.b16 %v3379
    %v4627 = vunpack.c.h.b16 %v3379
    %v4628 = vunpack.c.l.b16 %v3380
    %v4629 = vunpack.c.h.b16 %v3380
    %v4630 = vunpack.c.l.b16 %v3381
    %v4631 = vunpack.c.h.b16 %v3381
    %v4632 = vunpack.c.l.b16 %v3382
    %v4633 = vunpack.c.h.b16 %v3382
    %v4634 = vunpack.c.l.b16 %v3383
    %v4635 = vunpack.c.h.b16 %v3383
    %v4636 = vunpack.c.l.b16 %v3384
    %v4637 = vunpack.c.h.b16 %v3384
    %v4638 = vunpack.c.l.b16 %v3385
    %v4639 = vunpack.c.h.b16 %v3385
    %v4640 = vunpack.c.l.b16 %v3386
    %v4641 = vunpack.c.h.b16 %v3386
    %v4642 = vunpack.c.l.b16 %v3387
    %v4643 = vunpack.c.h.b16 %v3387
    %v4644 = vunpack.c.l.b16 %v3388
    %v4645 = vunpack.c.h.b16 %v3388
    %v4646 = vunpack.c.l.b16 %v3389
    %v4647 = vunpack.c.h.b16 %v3389
    %v4648 = vunpack.c.l.b16 %v3390
    %v4649 = vunpack.c.h.b16 %v3390
    %v4650 = vunpack.c.l.b16 %v3391
    %v4651 = vunpack.c.h.b16 %v3391
    %v4652 = vunpack.c.l.b16 %v3392
    %v4653 = vunpack.c.h.b16 %v3392
    %v4654 = vunpack.c.l.b16 %v3393
    %v4655 = vunpack.c.h.b16 %v3393
    %v4656 = vunpack.c.l.b16 %v3394
    %v4657 = vunpack.c.h.b16 %v3394
    %v4658 = vunpack.c.l.b16 %v3395
    %v4659 = vunpack.c.h.b16 %v3395
    %v4660 = vunpack.c.l.b16 %v3396
    %v4661 = vunpack.c.h.b16 %v3396
    %v4662 = vunpack.c.l.b16 %v3397
    %v4663 = vunpack.c.h.b16 %v3397
    %v4664 = vunpack.c.l.b16 %v3398
    %v4665 = vunpack.c.h.b16 %v3398
    %v4666 = vunpack.c.l.b16 %v3399
    %v4667 = vunpack.c.h.b16 %v3399
    %v4668 = vunpack.c.l.b16 %v3400
    %v4669 = vunpack.c.h.b16 %v3400
    %v4670 = vunpack.c.l.b16 %v3401
    %v4671 = vunpack.c.h.b16 %v3401
    %v4672 = vunpack.c.l.b16 %v3402
    %v4673 = vunpack.c.h.b16 %v3402
    %v4674 = vunpack.c.l.b16 %v3403
    %v4675 = vunpack.c.h.b16 %v3403
    %v4676 = vunpack.c.l.b16 %v3404
    %v4677 = vunpack.c.h.b16 %v3404
    %v4678 = vunpack.c.l.b16 %v3405
    %v4679 = vunpack.c.h.b16 %v3405
    %v4680 = vunpack.c.l.b16 %v3406
    %v4681 = vunpack.c.h.b16 %v3406
    %v4682 = vunpack.c.l.b16 %v3407
    %v4683 = vunpack.c.h.b16 %v3407
    %v4684 = vunpack.c.l.b16 %v3408
    %v4685 = vunpack.c.h.b16 %v3408
    %v4686 = vunpack.c.l.b16 %v3409
    %v4687 = vunpack.c.h.b16 %v3409
    %v4688 = vunpack.c.l.b16 %v3410
    %v4689 = vunpack.c.h.b16 %v3410
    %v4690 = vunpack.c.l.b16 %v3411
    %v4691 = vunpack.c.h.b16 %v3411
    %v4692 = vunpack.c.l.b16 %v3412
    %v4693 = vunpack.c.h.b16 %v3412
    %v4694 = vunpack.c.l.b16 %v3413
    %v4695 = vunpack.c.h.b16 %v3413
    %v4696 = vunpack.c.l.b16 %v3414
    %v4697 = vunpack.c.h.b16 %v3414
    %v4698 = vunpack.c.l.b16 %v3415
    %v4699 = vunpack.c.h.b16 %v3415
    %v4700 = vunpack.c.l.b16 %v3416
    %v4701 = vunpack.c.h.b16 %v3416
    %v4702 = vunpack.c.l.b16 %v3417
    %v4703 = vunpack.c.h.b16 %v3417
    %v4704 = vunpack.c.l.b16 %v3418
    %v4705 = vunpack.c.h.b16 %v3418
    %v4706 = vunpack.c.l.b16 %v3419
    %v4707 = vunpack.c.h.b16 %v3419
    %v4708 = vunpack.c.l.b16 %v3420
    %v4709 = vunpack.c.h.b16 %v3420
    %v4710 = vunpack.c.l.b16 %v3421
    %v4711 = vunpack.c.h.b16 %v3421
    %v4712 = vunpack.c.l.b16 %v3422
    %v4713 = vunpack.c.h.b16 %v3422
    %v4714 = vunpack.c.l.b16 %v3423
    %v4715 = vunpack.c.h.b16 %v3423
    %v4716 = vunpack.c.l.b16 %v3424
    %v4717 = vunpack.c.h.b16 %v3424
    %v4718 = vunpack.c.l.b16 %v3425
    %v4719 = vunpack.c.h.b16 %v3425
    %v4720 = vunpack.c.l.b16 %v3426
    %v4721 = vunpack.c.h.b16 %v3426
    %v4722 = vunpack.c.l.b16 %v3427
    %v4723 = vunpack.c.h.b16 %v3427
    %v4724 = vunpack.c.l.b16 %v3428
    %v4725 = vunpack.c.h.b16 %v3428
    %v4726 = vunpack.c.l.b16 %v3429
    %v4727 = vunpack.c.h.b16 %v3429
    %v4728 = vunpack.c.l.b16 %v3430
    %v4729 = vunpack.c.h.b16 %v3430
    %v4730 = vunpack.c.l.b16 %v3431
    %v4731 = vunpack.c.h.b16 %v3431
    %v4732 = vunpack.c.l.b16 %v3432
    %v4733 = vunpack.c.h.b16 %v3432
    %v4734 = vunpack.c.l.b16 %v3433
    %v4735 = vunpack.c.h.b16 %v3433
    %v4736 = vunpack.c.l.b16 %v3434
    %v4737 = vunpack.c.h.b16 %v3434
    %v4738 = vunpack.c.l.b16 %v3435
    %v4739 = vunpack.c.h.b16 %v3435
    %v4740 = vunpack.c.l.b16 %v3436
    %v4741 = vunpack.c.h.b16 %v3436
    %v4742 = vunpack.c.l.b16 %v3437
    %v4743 = vunpack.c.h.b16 %v3437
    %v4744 = vunpack.c.l.b16 %v3438
    %v4745 = vunpack.c.h.b16 %v3438
    %v4746 = vunpack.c.l.b16 %v3439
    %v4747 = vunpack.c.h.b16 %v3439
    %v4748 = vunpack.c.l.b16 %v3440
    %v4749 = vunpack.c.h.b16 %v3440
    %v4750 = vunpack.c.l.b16 %v3441
    %v4751 = vunpack.c.h.b16 %v3441
    %v4752 = vunpack.c.l.b16 %v3442
    %v4753 = vunpack.c.h.b16 %v3442
    %v4754 = vunpack.c.l.b16 %v3443
    %v4755 = vunpack.c.h.b16 %v3443
    %v4756 = vunpack.c.l.b16 %v3444
    %v4757 = vunpack.c.h.b16 %v3444
    %v4758 = vunpack.c.l.b16 %v3445
    %v4759 = vunpack.c.h.b16 %v3445
    %v4760 = vunpack.c.l.b16 %v3446
    %v4761 = vunpack.c.h.b16 %v3446
    %v4762 = vunpack.c.l.b16 %v3447
    %v4763 = vunpack.c.h.b16 %v3447
    %v4764 = vunpack.c.l.b16 %v3448
    %v4765 = vunpack.c.h.b16 %v3448
    %v4766 = vunpack.c.l.b16 %v3449
    %v4767 = vunpack.c.h.b16 %v3449
    %v4768 = vunpack.c.l.b16 %v3450
    %v4769 = vunpack.c.h.b16 %v3450
    %v4770 = vunpack.c.l.b16 %v3451
    %v4771 = vunpack.c.h.b16 %v3451
    %v4772 = vunpack.c.l.b16 %v3452
    %v4773 = vunpack.c.h.b16 %v3452
    %v4774 = vunpack.c.l.b16 %v3453
    %v4775 = vunpack.c.h.b16 %v3453
    %v4776 = vunpack.c.l.b16 %v3454
    %v4777 = vunpack.c.h.b16 %v3454
    %v4778 = vunpack.c.l.b16 %v3455
    %v4779 = vunpack.c.h.b16 %v3455
    %v4780 = vunpack.c.l.b16 %v3456
    %v4781 = vunpack.c.h.b16 %v3456
    %v4782 = vunpack.c.l.b16 %v3457
    %v4783 = vunpack.c.h.b16 %v3457
    %v4784 = vunpack.c.l.b16 %v3458
    %v4785 = vunpack.c.h.b16 %v3458
    %v4786 = vunpack.c.l.b16 %v3459
    %v4787 = vunpack.c.h.b16 %v3459
    %v4788 = vunpack.c.l.b16 %v3460
    %v4789 = vunpack.c.h.b16 %v3460
    %v4790 = vunpack.c.l.b16 %v3461
    %v4791 = vunpack.c.h.b16 %v3461
    %v4792 = vunpack.c.l.b16 %v3462
    %v4793 = vunpack.c.h.b16 %v3462
    %v4794 = vunpack.c.l.b16 %v3463
    %v4795 = vunpack.c.h.b16 %v3463
    %v4796 = vunpack.c.l.b16 %v3464
    %v4797 = vunpack.c.h.b16 %v3464
    %v4798 = vunpack.c.l.b16 %v3465
    %v4799 = vunpack.c.h.b16 %v3465
    %v4800 = vunpack.c.l.b16 %v3466
    %v4801 = vunpack.c.h.b16 %v3466
    %v4802 = vunpack.c.l.b16 %v3467
    %v4803 = vunpack.c.h.b16 %v3467
    %v4804 = vunpack.c.l.b16 %v3468
    %v4805 = vunpack.c.h.b16 %v3468
    %v4806 = vunpack.c.l.b16 %v3469
    %v4807 = vunpack.c.h.b16 %v3469
    %v4808 = vunpack.c.l.b16 %v3470
    %v4809 = vunpack.c.h.b16 %v3470
    %v4810 = vunpack.c.l.b16 %v3471
    %v4811 = vunpack.c.h.b16 %v3471
    %v4812 = vunpack.c.l.b16 %v3472
    %v4813 = vunpack.c.h.b16 %v3472
    %v4814 = vunpack.c.l.b16 %v3473
    %v4815 = vunpack.c.h.b16 %v3473
    %v4816 = vunpack.c.l.b16 %v3474
    %v4817 = vunpack.c.h.b16 %v3474
    %v4818 = vunpack.c.l.b16 %v3475
    %v4819 = vunpack.c.h.b16 %v3475
    %v4820 = vunpack.c.l.b16 %v3476
    %v4821 = vunpack.c.h.b16 %v3476
    %v4822 = vunpack.c.l.b16 %v3477
    %v4823 = vunpack.c.h.b16 %v3477
    %v4824 = vunpack.c.l.b16 %v3478
    %v4825 = vunpack.c.h.b16 %v3478
    %v4826 = vunpack.c.l.b16 %v3479
    %v4827 = vunpack.c.h.b16 %v3479
    %v4828 = vunpack.c.l.b16 %v3480
    %v4829 = vunpack.c.h.b16 %v3480
    %v4830 = vunpack.c.l.b16 %v3481
    %v4831 = vunpack.c.h.b16 %v3481
    %v4832 = vunpack.c.l.b16 %v3482
    %v4833 = vunpack.c.h.b16 %v3482
    %v4834 = vunpack.c.l.b16 %v3483
    %v4835 = vunpack.c.h.b16 %v3483
    %v4836 = vunpack.c.l.b16 %v3484
    %v4837 = vunpack.c.h.b16 %v3484
    %v4838 = vunpack.c.l.b16 %v3485
    %v4839 = vunpack.c.h.b16 %v3485
    %v4840 = vunpack.c.l.b16 %v3486
    %v4841 = vunpack.c.h.b16 %v3486
    %v4842 = vunpack.c.l.b16 %v3487
    %v4843 = vunpack.c.h.b16 %v3487
    %v4844 = vunpack.c.l.b16 %v3488
    %v4845 = vunpack.c.h.b16 %v3488
    %v4846 = vunpack.c.l.b16 %v3489
    %v4847 = vunpack.c.h.b16 %v3489
    %v4848 = vunpack.c.l.b16 %v3490
    %v4849 = vunpack.c.h.b16 %v3490
    %v4850 = vunpack.c.l.b16 %v3491
    %v4851 = vunpack.c.h.b16 %v3491
    %v4852 = vunpack.c.l.b16 %v3492
    %v4853 = vunpack.c.h.b16 %v3492
    %v4854 = vunpack.c.l.b16 %v3493
    %v4855 = vunpack.c.h.b16 %v3493
    %v4856 = vunpack.c.l.b16 %v3494
    %v4857 = vunpack.c.h.b16 %v3494
    %v4858 = vunpack.c.l.b16 %v3495
    %v4859 = vunpack.c.h.b16 %v3495
    %v4860 = vunpack.c.l.b16 %v3496
    %v4861 = vunpack.c.h.b16 %v3496
    %v4862 = vunpack.c.l.b16 %v3497
    %v4863 = vunpack.c.h.b16 %v3497
    %v4864 = vunpack.c.l.b16 %v3498
    %v4865 = vunpack.c.h.b16 %v3498
    %v4866 = vunpack.c.l.b16 %v3499
    %v4867 = vunpack.c.h.b16 %v3499
    %v4868 = vunpack.c.l.b16 %v3500
    %v4869 = vunpack.c.h.b16 %v3500
    %v4870 = vunpack.c.l.b16 %v3501
    %v4871 = vunpack.c.h.b16 %v3501
    %v4872 = vunpack.c.l.b16 %v3502
    %v4873 = vunpack.c.h.b16 %v3502
    %v4874 = vunpack.c.l.b16 %v3503
    %v4875 = vunpack.c.h.b16 %v3503
    %v4876 = vunpack.c.l.b16 %v3504
    %v4877 = vunpack.c.h.b16 %v3504
    %v4878 = vunpack.c.l.b16 %v3505
    %v4879 = vunpack.c.h.b16 %v3505
    %v4880 = vunpack.c.l.b16 %v3506
    %v4881 = vunpack.c.h.b16 %v3506
    %v4882 = vunpack.c.l.b16 %v3507
    %v4883 = vunpack.c.h.b16 %v3507
    %v4884 = vunpack.c.l.b16 %v3508
    %v4885 = vunpack.c.h.b16 %v3508
    %v4886 = vunpack.c.l.b16 %v3509
    %v4887 = vunpack.c.h.b16 %v3509
    %v4888 = vunpack.c.l.b16 %v3510
    %v4889 = vunpack.c.h.b16 %v3510
    %v4890 = vunpack.c.l.b16 %v3511
    %v4891 = vunpack.c.h.b16 %v3511
    %v4892 = vunpack.c.l.b16 %v3512
    %v4893 = vunpack.c.h.b16 %v3512
    %v4894 = vunpack.c.l.b16 %v3513
    %v4895 = vunpack.c.h.b16 %v3513
    %v4896 = vunpack.c.l.b16 %v3514
    %v4897 = vunpack.c.h.b16 %v3514
    %v4898 = vunpack.c.l.b16 %v3515
    %v4899 = vunpack.c.h.b16 %v3515
    %v4900 = vunpack.c.l.b16 %v3516
    %v4901 = vunpack.c.h.b16 %v3516
    %v4902 = vunpack.c.l.b16 %v3517
    %v4903 = vunpack.c.h.b16 %v3517
    %v4904 = vunpack.c.l.b16 %v3518
    %v4905 = vunpack.c.h.b16 %v3518
    %v4906 = vunpack.c.l.b16 %v3519
    %v4907 = vunpack.c.h.b16 %v3519
    %v4908 = vunpack.c.l.b16 %v3520
    %v4909 = vunpack.c.h.b16 %v3520
    %v4910 = vunpack.c.l.b16 %v3521
    %v4911 = vunpack.c.h.b16 %v3521
    %v4912 = vunpack.c.l.b16 %v3522
    %v4913 = vunpack.c.h.b16 %v3522
    %v4914 = vunpack.c.l.b16 %v3523
    %v4915 = vunpack.c.h.b16 %v3523
    %v4916 = vunpack.c.l.b16 %v3524
    %v4917 = vunpack.c.h.b16 %v3524
    %v4918 = vunpack.c.l.b16 %v3525
    %v4919 = vunpack.c.h.b16 %v3525
    %v4920 = vunpack.c.l.b16 %v3526
    %v4921 = vunpack.c.h.b16 %v3526
    %v4922 = vunpack.c.l.b16 %v3527
    %v4923 = vunpack.c.h.b16 %v3527
    %v4924 = vunpack.c.l.b16 %v3528
    %v4925 = vunpack.c.h.b16 %v3528
    %v4926 = vunpack.c.l.b16 %v3529
    %v4927 = vunpack.c.h.b16 %v3529
    %v4928 = vunpack.c.l.b16 %v3530
    %v4929 = vunpack.c.h.b16 %v3530
    %v4930 = vunpack.c.l.b16 %v3531
    %v4931 = vunpack.c.h.b16 %v3531
    %v4932 = vunpack.c.l.b16 %v3532
    %v4933 = vunpack.c.h.b16 %v3532
    %v4934 = vunpack.c.l.b16 %v3533
    %v4935 = vunpack.c.h.b16 %v3533
    %v4936 = vunpack.c.l.b16 %v3534
    %v4937 = vunpack.c.h.b16 %v3534
    %v4938 = vunpack.c.l.b16 %v3535
    %v4939 = vunpack.c.h.b16 %v3535
    %v4940 = vunpack.c.l.b16 %v3536
    %v4941 = vunpack.c.h.b16 %v3536
    %v4942 = vunpack.c.l.b16 %v3537
    %v4943 = vunpack.c.h.b16 %v3537
    %v4944 = vunpack.c.l.b16 %v3538
    %v4945 = vunpack.c.h.b16 %v3538
    %v4946 = vunpack.c.l.b16 %v3539
    %v4947 = vunpack.c.h.b16 %v3539
    %v4948 = vunpack.c.l.b16 %v3540
    %v4949 = vunpack.c.h.b16 %v3540
    %v4950 = vunpack.c.l.b16 %v3541
    %v4951 = vunpack.c.h.b16 %v3541
    %v4952 = vunpack.c.l.b16 %v3542
    %v4953 = vunpack.c.h.b16 %v3542
    %v4954 = vunpack.c.l.b16 %v3543
    %v4955 = vunpack.c.h.b16 %v3543
    %v4956 = vunpack.c.l.b16 %v3544
    %v4957 = vunpack.c.h.b16 %v3544
    %v4958 = vunpack.c.l.b16 %v3545
    %v4959 = vunpack.c.h.b16 %v3545
    %v4960 = vunpack.c.l.b16 %v3546
    %v4961 = vunpack.c.h.b16 %v3546
    %v4962 = vunpack.c.l.b16 %v3547
    %v4963 = vunpack.c.h.b16 %v3547
    %v4964 = vunpack.c.l.b16 %v3548
    %v4965 = vunpack.c.h.b16 %v3548
    %v4966 = vunpack.c.l.b16 %v3549
    %v4967 = vunpack.c.h.b16 %v3549
    %v4968 = vunpack.c.l.b16 %v3550
    %v4969 = vunpack.c.h.b16 %v3550
    %v4970 = vunpack.c.l.b16 %v3551
    %v4971 = vunpack.c.h.b16 %v3551
    %v4972 = vunpack.c.l.b16 %v3552
    %v4973 = vunpack.c.h.b16 %v3552
    %v4974 = vunpack.c.l.b16 %v3553
    %v4975 = vunpack.c.h.b16 %v3553
    %v4976 = vunpack.c.l.b16 %v3554
    %v4977 = vunpack.c.h.b16 %v3554
    %v4978 = vunpack.c.l.b16 %v3555
    %v4979 = vunpack.c.h.b16 %v3555
    %v4980 = vunpack.c.l.b16 %v3556
    %v4981 = vunpack.c.h.b16 %v3556
    %v4982 = vunpack.c.l.b16 %v3557
    %v4983 = vunpack.c.h.b16 %v3557
    %v4984 = vunpack.c.l.b16 %v3558
    %v4985 = vunpack.c.h.b16 %v3558
    %v4986 = vunpack.c.l.b16 %v3559
    %v4987 = vunpack.c.h.b16 %v3559
    %v4988 = vunpack.c.l.b16 %v3560
    %v4989 = vunpack.c.h.b16 %v3560
    %v4990 = vunpack.c.l.b16 %v3561
    %v4991 = vunpack.c.h.b16 %v3561
    %v4992 = vunpack.c.l.b16 %v3562
    %v4993 = vunpack.c.h.b16 %v3562
    %v4994 = vunpack.c.l.b16 %v3563
    %v4995 = vunpack.c.h.b16 %v3563
    %v4996 = vunpack.c.l.b16 %v3564
    %v4997 = vunpack.c.h.b16 %v3564
    %v4998 = vunpack.c.l.b16 %v3565
    %v4999 = vunpack.c.h.b16 %v3565
    %v5000 = vunpack.c.l.b16 %v3566
    %v5001 = vunpack.c.h.b16 %v3566
    %v5002 = vunpack.c.l.b16 %v3567
    %v5003 = vunpack.c.h.b16 %v3567
    %v5004 = vunpack.c.l.b16 %v3568
    %v5005 = vunpack.c.h.b16 %v3568
    %v5006 = vunpack.c.l.b16 %v3569
    %v5007 = vunpack.c.h.b16 %v3569
    %v5008 = vunpack.c.l.b16 %v3570
    %v5009 = vunpack.c.h.b16 %v3570
    %v5010 = vunpack.c.l.b16 %v3571
    %v5011 = vunpack.c.h.b16 %v3571
    %v5012 = vunpack.c.l.b16 %v3572
    %v5013 = vunpack.c.h.b16 %v3572
    %v5014 = vunpack.c.l.b16 %v3573
    %v5015 = vunpack.c.h.b16 %v3573
    %v5016 = vunpack.c.l.b16 %v3574
    %v5017 = vunpack.c.h.b16 %v3574
    %v5018 = vunpack.c.l.b16 %v3575
    %v5019 = vunpack.c.h.b16 %v3575
    %v5020 = vunpack.c.l.b16 %v3576
    %v5021 = vunpack.c.h.b16 %v3576
    %v5022 = vunpack.c.l.b16 %v3577
    %v5023 = vunpack.c.h.b16 %v3577
    %v5024 = vunpack.c.l.b16 %v3578
    %v5025 = vunpack.c.h.b16 %v3578
    %v5026 = vunpack.c.l.b16 %v3579
    %v5027 = vunpack.c.h.b16 %v3579
    %v5028 = vunpack.c.l.b16 %v3580
    %v5029 = vunpack.c.h.b16 %v3580
    %v5030 = vunpack.c.l.b16 %v3581
    %v5031 = vunpack.c.h.b16 %v3581
    %v5032 = vunpack.c.l.b16 %v3582
    %v5033 = vunpack.c.h.b16 %v3582
    %v5034 = vunpack.c.l.b16 %v3583
    %v5035 = vunpack.c.h.b16 %v3583
    %v5036 = vunpack.c.l.b16 %v3584
    %v5037 = vunpack.c.h.b16 %v3584
    %v5038 = vunpack.c.l.b16 %v3585
    %v5039 = vunpack.c.h.b16 %v3585
    %v5040 = vunpack.c.l.b16 %v3586
    %v5041 = vunpack.c.h.b16 %v3586
    %v5042 = vunpack.c.l.b16 %v3587
    %v5043 = vunpack.c.h.b16 %v3587
    %v5044 = vunpack.c.l.b16 %v3588
    %v5045 = vunpack.c.h.b16 %v3588
    %v5046 = vunpack.c.l.b16 %v3589
    %v5047 = vunpack.c.h.b16 %v3589
    %v5048 = vunpack.c.l.b16 %v3590
    %v5049 = vunpack.c.h.b16 %v3590
    %v5050 = vunpack.c.l.b16 %v3591
    %v5051 = vunpack.c.h.b16 %v3591
    %v5052 = vunpack.c.l.b16 %v3592
    %v5053 = vunpack.c.h.b16 %v3592
    %v5054 = vunpack.c.l.b16 %v3593
    %v5055 = vunpack.c.h.b16 %v3593
    %v5056 = vunpack.c.l.b16 %v3594
    %v5057 = vunpack.c.h.b16 %v3594
    %v5058 = vunpack.c.l.b16 %v3595
    %v5059 = vunpack.c.h.b16 %v3595
    %v5060 = vunpack.c.l.b16 %v3596
    %v5061 = vunpack.c.h.b16 %v3596
    %v5062 = vunpack.c.l.b16 %v3597
    %v5063 = vunpack.c.h.b16 %v3597
    %v5064 = vunpack.c.l.b16 %v3598
    %v5065 = vunpack.c.h.b16 %v3598
    %v5066 = vunpack.c.l.b16 %v3599
    %v5067 = vunpack.c.h.b16 %v3599
    %v5068 = vunpack.c.l.b16 %v3600
    %v5069 = vunpack.c.h.b16 %v3600
    %v5070 = vunpack.c.l.b16 %v3601
    %v5071 = vunpack.c.h.b16 %v3601
    %v5072 = vunpack.c.l.b16 %v3602
    %v5073 = vunpack.c.h.b16 %v3602
    %v5074 = vunpack.c.l.b16 %v3603
    %v5075 = vunpack.c.h.b16 %v3603
    %v5076 = vunpack.c.l.b16 %v3604
    %v5077 = vunpack.c.h.b16 %v3604
    %v5078 = vunpack.c.l.b16 %v3605
    %v5079 = vunpack.c.h.b16 %v3605
    %v5080 = vunpack.c.l.b16 %v3606
    %v5081 = vunpack.c.h.b16 %v3606
    %v5082 = vunpack.c.l.b16 %v3607
    %v5083 = vunpack.c.h.b16 %v3607
    %v5084 = vunpack.c.l.b16 %v3608
    %v5085 = vunpack.c.h.b16 %v3608
    %v5086 = vunpack.c.l.b16 %v3609
    %v5087 = vunpack.c.h.b16 %v3609
    %v5088 = vunpack.c.l.b16 %v3610
    %v5089 = vunpack.c.h.b16 %v3610
    %v5090 = vunpack.c.l.b16 %v3611
    %v5091 = vunpack.c.h.b16 %v3611
    %v5092 = vunpack.c.l.b16 %v3612
    %v5093 = vunpack.c.h.b16 %v3612
    %v5094 = vunpack.c.l.b16 %v3613
    %v5095 = vunpack.c.h.b16 %v3613
    %v5096 = vunpack.c.l.b16 %v3614
    %v5097 = vunpack.c.h.b16 %v3614
    %v5098 = vunpack.c.l.b16 %v3615
    %v5099 = vunpack.c.h.b16 %v3615
    %v5100 = vunpack.c.l.b16 %v3616
    %v5101 = vunpack.c.h.b16 %v3616
    %v5102 = vunpack.c.l.b16 %v3617
    %v5103 = vunpack.c.h.b16 %v3617
    %v5104 = vunpack.c.l.b16 %v3618
    %v5105 = vunpack.c.h.b16 %v3618
    %v5106 = vunpack.c.l.b16 %v3619
    %v5107 = vunpack.c.h.b16 %v3619
    %v5108 = vunpack.c.l.b16 %v3620
    %v5109 = vunpack.c.h.b16 %v3620
    %v5110 = vunpack.c.l.b16 %v3621
    %v5111 = vunpack.c.h.b16 %v3621
    %v5112 = vunpack.c.l.b16 %v3622
    %v5113 = vunpack.c.h.b16 %v3622
    %v5114 = vunpack.c.l.b16 %v3623
    %v5115 = vunpack.c.h.b16 %v3623
    %v5116 = vunpack.c.l.b16 %v3624
    %v5117 = vunpack.c.h.b16 %v3624
    %v5118 = vunpack.c.l.b16 %v3625
    %v5119 = vunpack.c.h.b16 %v3625
    %v5120 = vunpack.c.l.b16 %v3626
    %v5121 = vunpack.c.h.b16 %v3626
    %v5122 = vunpack.c.l.b16 %v3627
    %v5123 = vunpack.c.h.b16 %v3627
    %v5124 = vunpack.c.l.b16 %v3628
    %v5125 = vunpack.c.h.b16 %v3628
    %v5126 = vunpack.c.l.b16 %v3629
    %v5127 = vunpack.c.h.b16 %v3629
    %v5128 = vunpack.c.l.b16 %v3630
    %v5129 = vunpack.c.h.b16 %v3630
    %v5130 = vunpack.c.l.b16 %v3631
    %v5131 = vunpack.c.h.b16 %v3631
    %v5132 = vunpack.c.l.b16 %v3632
    %v5133 = vunpack.c.h.b16 %v3632
    %v5134 = vunpack.c.l.b16 %v3633
    %v5135 = vunpack.c.h.b16 %v3633
    %v5136 = vunpack.c.l.b16 %v3634
    %v5137 = vunpack.c.h.b16 %v3634
    %v5138 = vunpack.c.l.b16 %v3635
    %v5139 = vunpack.c.h.b16 %v3635
    %v5140 = vunpack.c.l.b16 %v3636
    %v5141 = vunpack.c.h.b16 %v3636
    %v5142 = vunpack.c.l.b16 %v3637
    %v5143 = vunpack.c.h.b16 %v3637
    %v5144 = vunpack.c.l.b16 %v3638
    %v5145 = vunpack.c.h.b16 %v3638
    %v5146 = vunpack.c.l.b16 %v3639
    %v5147 = vunpack.c.h.b16 %v3639
    %v5148 = vunpack.c.l.b16 %v3640
    %v5149 = vunpack.c.h.b16 %v3640
    %v5150 = vunpack.c.l.b16 %v3641
    %v5151 = vunpack.c.h.b16 %v3641
    %v5152 = vunpack.c.l.b16 %v3642
    %v5153 = vunpack.c.h.b16 %v3642
    %v5154 = vunpack.c.l.b16 %v3643
    %v5155 = vunpack.c.h.b16 %v3643
    %v5156 = vunpack.c.l.b16 %v3644
    %v5157 = vunpack.c.h.b16 %v3644
    %v5158 = vunpack.c.l.b16 %v3645
    %v5159 = vunpack.c.h.b16 %v3645
    %v5160 = vunpack.c.l.b16 %v3646
    %v5161 = vunpack.c.h.b16 %v3646
    %v5162 = vunpack.c.l.b16 %v3647
    %v5163 = vunpack.c.h.b16 %v3647
    %v5164 = vunpack.c.l.b16 %v3648
    %v5165 = vunpack.c.h.b16 %v3648
    %v5166 = vunpack.c.l.b16 %v3649
    %v5167 = vunpack.c.h.b16 %v3649
    %v5168 = vunpack.c.l.b16 %v3650
    %v5169 = vunpack.c.h.b16 %v3650
    %v5170 = vunpack.c.l.b16 %v3651
    %v5171 = vunpack.c.h.b16 %v3651
    %v5172 = vunpack.c.l.b16 %v3652
    %v5173 = vunpack.c.h.b16 %v3652
    %v5174 = vunpack.c.l.b16 %v3653
    %v5175 = vunpack.c.h.b16 %v3653
    %v5176 = vunpack.c.l.b16 %v3654
    %v5177 = vunpack.c.h.b16 %v3654
    %v5178 = vunpack.c.l.b16 %v3655
    %v5179 = vunpack.c.h.b16 %v3655
    %v5180 = vunpack.c.l.b16 %v3656
    %v5181 = vunpack.c.h.b16 %v3656
    %v5182 = vunpack.c.l.b16 %v3657
    %v5183 = vunpack.c.h.b16 %v3657
    %v5184 = vunpack.c.l.b16 %v3658
    %v5185 = vunpack.c.h.b16 %v3658
    %v5186 = vunpack.c.l.b16 %v3659
    %v5187 = vunpack.c.h.b16 %v3659
    %v5188 = vunpack.c.l.b16 %v3660
    %v5189 = vunpack.c.h.b16 %v3660
    %v5190 = vunpack.c.l.b16 %v3661
    %v5191 = vunpack.c.h.b16 %v3661
    %v5192 = vunpack.c.l.b16 %v3662
    %v5193 = vunpack.c.h.b16 %v3662
    %v5194 = vunpack.c.l.b16 %v3663
    %v5195 = vunpack.c.h.b16 %v3663
    %v5196 = vunpack.c.l.b16 %v3664
    %v5197 = vunpack.c.h.b16 %v3664
    %v5198 = vunpack.c.l.b16 %v3665
    %v5199 = vunpack.c.h.b16 %v3665
    %v5200 = vunpack.c.l.b16 %v3666
    %v5201 = vunpack.c.h.b16 %v3666
    %v5202 = vunpack.c.l.b16 %v3667
    %v5203 = vunpack.c.h.b16 %v3667
    %v5204 = vunpack.c.l.b16 %v3668
    %v5205 = vunpack.c.h.b16 %v3668
    %v5206 = vunpack.c.l.b16 %v3669
    %v5207 = vunpack.c.h.b16 %v3669
    %v5208 = vunpack.c.l.b16 %v3670
    %v5209 = vunpack.c.h.b16 %v3670
    %v5210 = vunpack.c.l.b16 %v3671
    %v5211 = vunpack.c.h.b16 %v3671
    %v5212 = vunpack.c.l.b16 %v3672
    %v5213 = vunpack.c.h.b16 %v3672
    %v5214 = vunpack.c.l.b16 %v3673
    %v5215 = vunpack.c.h.b16 %v3673
    %v5216 = vunpack.c.l.b16 %v3674
    %v5217 = vunpack.c.h.b16 %v3674
    %v5218 = vunpack.c.l.b16 %v3675
    %v5219 = vunpack.c.h.b16 %v3675
    %v5220 = vunpack.c.l.b16 %v3676
    %v5221 = vunpack.c.h.b16 %v3676
    %v5222 = vunpack.c.l.b16 %v3677
    %v5223 = vunpack.c.h.b16 %v3677
    %v5224 = vunpack.c.l.b16 %v3678
    %v5225 = vunpack.c.h.b16 %v3678
    %v5226 = vunpack.c.l.b16 %v3679
    %v5227 = vunpack.c.h.b16 %v3679
    %v5228 = vunpack.c.l.b16 %v3680
    %v5229 = vunpack.c.h.b16 %v3680
    %v5230 = vunpack.c.l.b16 %v3681
    %v5231 = vunpack.c.h.b16 %v3681
    %v5232 = vunpack.c.l.b16 %v3682
    %v5233 = vunpack.c.h.b16 %v3682
    %v5234 = vunpack.c.l.b16 %v3683
    %v5235 = vunpack.c.h.b16 %v3683
    %v5236 = vunpack.c.l.b16 %v3684
    %v5237 = vunpack.c.h.b16 %v3684
    %v5238 = vunpack.c.l.b16 %v3685
    %v5239 = vunpack.c.h.b16 %v3685
    %v5240 = vunpack.c.l.b16 %v3686
    %v5241 = vunpack.c.h.b16 %v3686
    %v5242 = vunpack.c.l.b16 %v3687
    %v5243 = vunpack.c.h.b16 %v3687
    %v5244 = vunpack.c.l.b16 %v3688
    %v5245 = vunpack.c.h.b16 %v3688
    %v5246 = vunpack.c.l.b16 %v3689
    %v5247 = vunpack.c.h.b16 %v3689
    %v5248 = vunpack.c.l.b16 %v3690
    %v5249 = vunpack.c.h.b16 %v3690
    %v5250 = vunpack.c.l.b16 %v3691
    %v5251 = vunpack.c.h.b16 %v3691
    %v5252 = vunpack.c.l.b16 %v3692
    %v5253 = vunpack.c.h.b16 %v3692
    %v5254 = vunpack.c.l.b16 %v3693
    %v5255 = vunpack.c.h.b16 %v3693
    %v5256 = vunpack.c.l.b16 %v3694
    %v5257 = vunpack.c.h.b16 %v3694
    %v5258 = vunpack.c.l.b16 %v3695
    %v5259 = vunpack.c.h.b16 %v3695
    %v5260 = vunpack.c.l.b16 %v3696
    %v5261 = vunpack.c.h.b16 %v3696
    %v5262 = vunpack.c.l.b16 %v3697
    %v5263 = vunpack.c.h.b16 %v3697
    %v5264 = vunpack.c.l.b16 %v3698
    %v5265 = vunpack.c.h.b16 %v3698
    %v5266 = vunpack.c.l.b16 %v3699
    %v5267 = vunpack.c.h.b16 %v3699
    %v5268 = vunpack.c.l.b16 %v3700
    %v5269 = vunpack.c.h.b16 %v3700
    %v5270 = vunpack.c.l.b16 %v3701
    %v5271 = vunpack.c.h.b16 %v3701
    %v5272 = vunpack.c.l.b16 %v3702
    %v5273 = vunpack.c.h.b16 %v3702
    %v5274 = vunpack.c.l.b16 %v3703
    %v5275 = vunpack.c.h.b16 %v3703
    %v5276 = vunpack.c.l.b16 %v3704
    %v5277 = vunpack.c.h.b16 %v3704
    %v5278 = vunpack.c.l.b16 %v3705
    %v5279 = vunpack.c.h.b16 %v3705
    %v5280 = vunpack.c.l.b16 %v3706
    %v5281 = vunpack.c.h.b16 %v3706
    %v5282 = vunpack.c.l.b16 %v3707
    %v5283 = vunpack.c.h.b16 %v3707
    %v5284 = vunpack.c.l.b16 %v3708
    %v5285 = vunpack.c.h.b16 %v3708
    %v5286 = vpack.c.b16 %v4270, %v4262
    %v5287 = vpack.c.b16 %v4271, %v4263
    %v5288 = vpack.c.b16 %v4272, %v4264
    %v5289 = vpack.c.b16 %v4273, %v4265
    %v5290 = vpack.c.b16 %v4274, %v4266
    %v5291 = vpack.c.b16 %v4275, %v4267
    %v5292 = vpack.c.b16 %v4276, %v4268
    %v5293 = vpack.c.b16 %v4277, %v4269
    %v5294 = vpack.c.b16 %v4286, %v4278
    %v5295 = vpack.c.b16 %v4287, %v4279
    %v5296 = vpack.c.b16 %v4288, %v4280
    %v5297 = vpack.c.b16 %v4289, %v4281
    %v5298 = vpack.c.b16 %v4290, %v4282
    %v5299 = vpack.c.b16 %v4291, %v4283
    %v5300 = vpack.c.b16 %v4292, %v4284
    %v5301 = vpack.c.b16 %v4293, %v4285
    %v5302 = vpack.c.b16 %v4302, %v4294
    %v5303 = vpack.c.b16 %v4303, %v4295
    %v5304 = vpack.c.b16 %v4304, %v4296
    %v5305 = vpack.c.b16 %v4305, %v4297
    %v5306 = vpack.c.b16 %v4306, %v4298
    %v5307 = vpack.c.b16 %v4307, %v4299
    %v5308 = vpack.c.b16 %v4308, %v4300
    %v5309 = vpack.c.b16 %v4309, %v4301
    %v5310 = vpack.c.b16 %v4318, %v4310
    %v5311 = vpack.c.b16 %v4319, %v4311
    %v5312 = vpack.c.b16 %v4320, %v4312
    %v5313 = vpack.c.b16 %v4321, %v4313
    %v5314 = vpack.c.b16 %v4322, %v4314
    %v5315 = vpack.c.b16 %v4323, %v4315
    %v5316 = vpack.c.b16 %v4324, %v4316
    %v5317 = vpack.c.b16 %v4325, %v4317
    %v5318 = vpack.c.b16 %v4334, %v4326
    %v5319 = vpack.c.b16 %v4335, %v4327
    %v5320 = vpack.c.b16 %v4336, %v4328
    %v5321 = vpack.c.b16 %v4337, %v4329
    %v5322 = vpack.c.b16 %v4338, %v4330
    %v5323 = vpack.c.b16 %v4339, %v4331
    %v5324 = vpack.c.b16 %v4340, %v4332
    %v5325 = vpack.c.b16 %v4341, %v4333
    %v5326 = vpack.c.b16 %v4350, %v4342
    %v5327 = vpack.c.b16 %v4351, %v4343
    %v5328 = vpack.c.b16 %v4352, %v4344
    %v5329 = vpack.c.b16 %v4353, %v4345
    %v5330 = vpack.c.b16 %v4354, %v4346
    %v5331 = vpack.c.b16 %v4355, %v4347
    %v5332 = vpack.c.b16 %v4356, %v4348
    %v5333 = vpack.c.b16 %v4357, %v4349
    %v5334 = vpack.c.b16 %v4366, %v4358
    %v5335 = vpack.c.b16 %v4367, %v4359
    %v5336 = vpack.c.b16 %v4368, %v4360
    %v5337 = vpack.c.b16 %v4369, %v4361
    %v5338 = vpack.c.b16 %v4370, %v4362
    %v5339 = vpack.c.b16 %v4371, %v4363
    %v5340 = vpack.c.b16 %v4372, %v4364
    %v5341 = vpack.c.b16 %v4373, %v4365
    %v5342 = vpack.c.b16 %v4382, %v4374
    %v5343 = vpack.c.b16 %v4383, %v4375
    %v5344 = vpack.c.b16 %v4384, %v4376
    %v5345 = vpack.c.b16 %v4385, %v4377
    %v5346 = vpack.c.b16 %v4386, %v4378
    %v5347 = vpack.c.b16 %v4387, %v4379
    %v5348 = vpack.c.b16 %v4388, %v4380
    %v5349 = vpack.c.b16 %v4389, %v4381
    %v5350 = vpack.c.b16 %v4398, %v4390
    %v5351 = vpack.c.b16 %v4399, %v4391
    %v5352 = vpack.c.b16 %v4400, %v4392
    %v5353 = vpack.c.b16 %v4401, %v4393
    %v5354 = vpack.c.b16 %v4402, %v4394
    %v5355 = vpack.c.b16 %v4403, %v4395
    %v5356 = vpack.c.b16 %v4404, %v4396
    %v5357 = vpack.c.b16 %v4405, %v4397
    %v5358 = vpack.c.b16 %v4414, %v4406
    %v5359 = vpack.c.b16 %v4415, %v4407
    %v5360 = vpack.c.b16 %v4416, %v4408
    %v5361 = vpack.c.b16 %v4417, %v4409
    %v5362 = vpack.c.b16 %v4418, %v4410
    %v5363 = vpack.c.b16 %v4419, %v4411
    %v5364 = vpack.c.b16 %v4420, %v4412
    %v5365 = vpack.c.b16 %v4421, %v4413
    %v5366 = vpack.c.b16 %v4430, %v4422
    %v5367 = vpack.c.b16 %v4431, %v4423
    %v5368 = vpack.c.b16 %v4432, %v4424
    %v5369 = vpack.c.b16 %v4433, %v4425
    %v5370 = vpack.c.b16 %v4434, %v4426
    %v5371 = vpack.c.b16 %v4435, %v4427
    %v5372 = vpack.c.b16 %v4436, %v4428
    %v5373 = vpack.c.b16 %v4437, %v4429
    %v5374 = vpack.c.b16 %v4446, %v4438
    %v5375 = vpack.c.b16 %v4447, %v4439
    %v5376 = vpack.c.b16 %v4448, %v4440
    %v5377 = vpack.c.b16 %v4449, %v4441
    %v5378 = vpack.c.b16 %v4450, %v4442
    %v5379 = vpack.c.b16 %v4451, %v4443
    %v5380 = vpack.c.b16 %v4452, %v4444
    %v5381 = vpack.c.b16 %v4453, %v4445
    %v5382 = vpack.c.b16 %v4462, %v4454
    %v5383 = vpack.c.b16 %v4463, %v4455
    %v5384 = vpack.c.b16 %v4464, %v4456
    %v5385 = vpack.c.b16 %v4465, %v4457
    %v5386 = vpack.c.b16 %v4466, %v4458
    %v5387 = vpack.c.b16 %v4467, %v4459
    %v5388 = vpack.c.b16 %v4468, %v4460
    %v5389 = vpack.c.b16 %v4469, %v4461
    %v5390 = vpack.c.b16 %v4478, %v4470
    %v5391 = vpack.c.b16 %v4479, %v4471
    %v5392 = vpack.c.b16 %v4480, %v4472
    %v5393 = vpack.c.b16 %v4481, %v4473
    %v5394 = vpack.c.b16 %v4482, %v4474
    %v5395 = vpack.c.b16 %v4483, %v4475
    %v5396 = vpack.c.b16 %v4484, %v4476
    %v5397 = vpack.c.b16 %v4485, %v4477
    %v5398 = vpack.c.b16 %v4494, %v4486
    %v5399 = vpack.c.b16 %v4495, %v4487
    %v5400 = vpack.c.b16 %v4496, %v4488
    %v5401 = vpack.c.b16 %v4497, %v4489
    %v5402 = vpack.c.b16 %v4498, %v4490
    %v5403 = vpack.c.b16 %v4499, %v4491
    %v5404 = vpack.c.b16 %v4500, %v4492
    %v5405 = vpack.c.b16 %v4501, %v4493
    %v5406 = vpack.c.b16 %v4510, %v4502
    %v5407 = vpack.c.b16 %v4511, %v4503
    %v5408 = vpack.c.b16 %v4512, %v4504
    %v5409 = vpack.c.b16 %v4513, %v4505
    %v5410 = vpack.c.b16 %v4514, %v4506
    %v5411 = vpack.c.b16 %v4515, %v4507
    %v5412 = vpack.c.b16 %v4516, %v4508
    %v5413 = vpack.c.b16 %v4517, %v4509
    %v5414 = vpack.c.b16 %v4526, %v4518
    %v5415 = vpack.c.b16 %v4527, %v4519
    %v5416 = vpack.c.b16 %v4528, %v4520
    %v5417 = vpack.c.b16 %v4529, %v4521
    %v5418 = vpack.c.b16 %v4530, %v4522
    %v5419 = vpack.c.b16 %v4531, %v4523
    %v5420 = vpack.c.b16 %v4532, %v4524
    %v5421 = vpack.c.b16 %v4533, %v4525
    %v5422 = vpack.c.b16 %v4542, %v4534
    %v5423 = vpack.c.b16 %v4543, %v4535
    %v5424 = vpack.c.b16 %v4544, %v4536
    %v5425 = vpack.c.b16 %v4545, %v4537
    %v5426 = vpack.c.b16 %v4546, %v4538
    %v5427 = vpack.c.b16 %v4547, %v4539
    %v5428 = vpack.c.b16 %v4548, %v4540
    %v5429 = vpack.c.b16 %v4549, %v4541
    %v5430 = vpack.c.b16 %v4558, %v4550
    %v5431 = vpack.c.b16 %v4559, %v4551
    %v5432 = vpack.c.b16 %v4560, %v4552
    %v5433 = vpack.c.b16 %v4561, %v4553
    %v5434 = vpack.c.b16 %v4562, %v4554
    %v5435 = vpack.c.b16 %v4563, %v4555
    %v5436 = vpack.c.b16 %v4564, %v4556
    %v5437 = vpack.c.b16 %v4565, %v4557
    %v5438 = vpack.c.b16 %v4574, %v4566
    %v5439 = vpack.c.b16 %v4575, %v4567
    %v5440 = vpack.c.b16 %v4576, %v4568
    %v5441 = vpack.c.b16 %v4577, %v4569
    %v5442 = vpack.c.b16 %v4578, %v4570
    %v5443 = vpack.c.b16 %v4579, %v4571
    %v5444 = vpack.c.b16 %v4580, %v4572
    %v5445 = vpack.c.b16 %v4581, %v4573
    %v5446 = vpack.c.b16 %v4590, %v4582
    %v5447 = vpack.c.b16 %v4591, %v4583
    %v5448 = vpack.c.b16 %v4592, %v4584
    %v5449 = vpack.c.b16 %v4593, %v4585
    %v5450 = vpack.c.b16 %v4594, %v4586
    %v5451 = vpack.c.b16 %v4595, %v4587
    %v5452 = vpack.c.b16 %v4596, %v4588
    %v5453 = vpack.c.b16 %v4597, %v4589
    %v5454 = vpack.c.b16 %v4606, %v4598
    %v5455 = vpack.c.b16 %v4607, %v4599
    %v5456 = vpack.c.b16 %v4608, %v4600
    %v5457 = vpack.c.b16 %v4609, %v4601
    %v5458 = vpack.c.b16 %v4610, %v4602
    %v5459 = vpack.c.b16 %v4611, %v4603
    %v5460 = vpack.c.b16 %v4612, %v4604
    %v5461 = vpack.c.b16 %v4613, %v4605
    %v5462 = vpack.c.b16 %v4622, %v4614
    %v5463 = vpack.c.b16 %v4623, %v4615
    %v5464 = vpack.c.b16 %v4624, %v4616
    %v5465 = vpack.c.b16 %v4625, %v4617
    %v5466 = vpack.c.b16 %v4626, %v4618
    %v5467 = vpack.c.b16 %v4627, %v4619
    %v5468 = vpack.c.b16 %v4628, %v4620
    %v5469 = vpack.c.b16 %v4629, %v4621
    %v5470 = vpack.c.b16 %v4638, %v4630
    %v5471 = vpack.c.b16 %v4639, %v4631
    %v5472 = vpack.c.b16 %v4640, %v4632
    %v5473 = vpack.c.b16 %v4641, %v4633
    %v5474 = vpack.c.b16 %v4642, %v4634
    %v5475 = vpack.c.b16 %v4643, %v4635
    %v5476 = vpack.c.b16 %v4644, %v4636
    %v5477 = vpack.c.b16 %v4645, %v4637
    %v5478 = vpack.c.b16 %v4654, %v4646
    %v5479 = vpack.c.b16 %v4655, %v4647
    %v5480 = vpack.c.b16 %v4656, %v4648
    %v5481 = vpack.c.b16 %v4657, %v4649
    %v5482 = vpack.c.b16 %v4658, %v4650
    %v5483 = vpack.c.b16 %v4659, %v4651
    %v5484 = vpack.c.b16 %v4660, %v4652
    %v5485 = vpack.c.b16 %v4661, %v4653
    %v5486 = vpack.c.b16 %v4670, %v4662
    %v5487 = vpack.c.b16 %v4671, %v4663
    %v5488 = vpack.c.b16 %v4672, %v4664
    %v5489 = vpack.c.b16 %v4673, %v4665
    %v5490 = vpack.c.b16 %v4674, %v4666
    %v5491 = vpack.c.b16 %v4675, %v4667
    %v5492 = vpack.c.b16 %v4676, %v4668
    %v5493 = vpack.c.b16 %v4677, %v4669
    %v5494 = vpack.c.b16 %v4686, %v4678
    %v5495 = vpack.c.b16 %v4687, %v4679
    %v5496 = vpack.c.b16 %v4688, %v4680
    %v5497 = vpack.c.b16 %v4689, %v4681
    %v5498 = vpack.c.b16 %v4690, %v4682
    %v5499 = vpack.c.b16 %v4691, %v4683
    %v5500 = vpack.c.b16 %v4692, %v4684
    %v5501 = vpack.c.b16 %v4693, %v4685
    %v5502 = vpack.c.b16 %v4702, %v4694
    %v5503 = vpack.c.b16 %v4703, %v4695
    %v5504 = vpack.c.b16 %v4704, %v4696
    %v5505 = vpack.c.b16 %v4705, %v4697
    %v5506 = vpack.c.b16 %v4706, %v4698
    %v5507 = vpack.c.b16 %v4707, %v4699
    %v5508 = vpack.c.b16 %v4708, %v4700
    %v5509 = vpack.c.b16 %v4709, %v4701
    %v5510 = vpack.c.b16 %v4718, %v4710
    %v5511 = vpack.c.b16 %v4719, %v4711
    %v5512 = vpack.c.b16 %v4720, %v4712
    %v5513 = vpack.c.b16 %v4721, %v4713
    %v5514 = vpack.c.b16 %v4722, %v4714
    %v5515 = vpack.c.b16 %v4723, %v4715
    %v5516 = vpack.c.b16 %v4724, %v4716
    %v5517 = vpack.c.b16 %v4725, %v4717
    %v5518 = vpack.c.b16 %v4734, %v4726
    %v5519 = vpack.c.b16 %v4735, %v4727
    %v5520 = vpack.c.b16 %v4736, %v4728
    %v5521 = vpack.c.b16 %v4737, %v4729
    %v5522 = vpack.c.b16 %v4738, %v4730
    %v5523 = vpack.c.b16 %v4739, %v4731
    %v5524 = vpack.c.b16 %v4740, %v4732
    %v5525 = vpack.c.b16 %v4741, %v4733
    %v5526 = vpack.c.b16 %v4750, %v4742
    %v5527 = vpack.c.b16 %v4751, %v4743
    %v5528 = vpack.c.b16 %v4752, %v4744
    %v5529 = vpack.c.b16 %v4753, %v4745
    %v5530 = vpack.c.b16 %v4754, %v4746
    %v5531 = vpack.c.b16 %v4755, %v4747
    %v5532 = vpack.c.b16 %v4756, %v4748
    %v5533 = vpack.c.b16 %v4757, %v4749
    %v5534 = vpack.c.b16 %v4766, %v4758
    %v5535 = vpack.c.b16 %v4767, %v4759
    %v5536 = vpack.c.b16 %v4768, %v4760
    %v5537 = vpack.c.b16 %v4769, %v4761
    %v5538 = vpack.c.b16 %v4770, %v4762
    %v5539 = vpack.c.b16 %v4771, %v4763
    %v5540 = vpack.c.b16 %v4772, %v4764
    %v5541 = vpack.c.b16 %v4773, %v4765
    %v5542 = vpack.c.b16 %v4782, %v4774
    %v5543 = vpack.c.b16 %v4783, %v4775
    %v5544 = vpack.c.b16 %v4784, %v4776
    %v5545 = vpack.c.b16 %v4785, %v4777
    %v5546 = vpack.c.b16 %v4786, %v4778
    %v5547 = vpack.c.b16 %v4787, %v4779
    %v5548 = vpack.c.b16 %v4788, %v4780
    %v5549 = vpack.c.b16 %v4789, %v4781
    %v5550 = vpack.c.b16 %v4798, %v4790
    %v5551 = vpack.c.b16 %v4799, %v4791
    %v5552 = vpack.c.b16 %v4800, %v4792
    %v5553 = vpack.c.b16 %v4801, %v4793
    %v5554 = vpack.c.b16 %v4802, %v4794
    %v5555 = vpack.c.b16 %v4803, %v4795
    %v5556 = vpack.c.b16 %v4804, %v4796
    %v5557 = vpack.c.b16 %v4805, %v4797
    %v5558 = vpack.c.b16 %v4814, %v4806
    %v5559 = vpack.c.b16 %v4815, %v4807
    %v5560 = vpack.c.b16 %v4816, %v4808
    %v5561 = vpack.c.b16 %v4817, %v4809
    %v5562 = vpack.c.b16 %v4818, %v4810
    %v5563 = vpack.c.b16 %v4819, %v4811
    %v5564 = vpack.c.b16 %v4820, %v4812
    %v5565 = vpack.c.b16 %v4821, %v4813
    %v5566 = vpack.c.b16 %v4830, %v4822
    %v5567 = vpack.c.b16 %v4831, %v4823
    %v5568 = vpack.c.b16 %v4832, %v4824
    %v5569 = vpack.c.b16 %v4833, %v4825
    %v5570 = vpack.c.b16 %v4834, %v4826
    %v5571 = vpack.c.b16 %v4835, %v4827
    %v5572 = vpack.c.b16 %v4836, %v4828
    %v5573 = vpack.c.b16 %v4837, %v4829
    %v5574 = vpack.c.b16 %v4846, %v4838
    %v5575 = vpack.c.b16 %v4847, %v4839
    %v5576 = vpack.c.b16 %v4848, %v4840
    %v5577 = vpack.c.b16 %v4849, %v4841
    %v5578 = vpack.c.b16 %v4850, %v4842
    %v5579 = vpack.c.b16 %v4851, %v4843
    %v5580 = vpack.c.b16 %v4852, %v4844
    %v5581 = vpack.c.b16 %v4853, %v4845
    %v5582 = vpack.c.b16 %v4862, %v4854
    %v5583 = vpack.c.b16 %v4863, %v4855
    %v5584 = vpack.c.b16 %v4864, %v4856
    %v5585 = vpack.c.b16 %v4865, %v4857
    %v5586 = vpack.c.b16 %v4866, %v4858
    %v5587 = vpack.c.b16 %v4867, %v4859
    %v5588 = vpack.c.b16 %v4868, %v4860
    %v5589 = vpack.c.b16 %v4869, %v4861
    %v5590 = vpack.c.b16 %v4878, %v4870
    %v5591 = vpack.c.b16 %v4879, %v4871
    %v5592 = vpack.c.b16 %v4880, %v4872
    %v5593 = vpack.c.b16 %v4881, %v4873
    %v5594 = vpack.c.b16 %v4882, %v4874
    %v5595 = vpack.c.b16 %v4883, %v4875
    %v5596 = vpack.c.b16 %v4884, %v4876
    %v5597 = vpack.c.b16 %v4885, %v4877
    %v5598 = vpack.c.b16 %v4894, %v4886
    %v5599 = vpack.c.b16 %v4895, %v4887
    %v5600 = vpack.c.b16 %v4896, %v4888
    %v5601 = vpack.c.b16 %v4897, %v4889
    %v5602 = vpack.c.b16 %v4898, %v4890
    %v5603 = vpack.c.b16 %v4899, %v4891
    %v5604 = vpack.c.b16 %v4900, %v4892
    %v5605 = vpack.c.b16 %v4901, %v4893
    %v5606 = vpack.c.b16 %v4910, %v4902
    %v5607 = vpack.c.b16 %v4911, %v4903
    %v5608 = vpack.c.b16 %v4912, %v4904
    %v5609 = vpack.c.b16 %v4913, %v4905
    %v5610 = vpack.c.b16 %v4914, %v4906
    %v5611 = vpack.c.b16 %v4915, %v4907
    %v5612 = vpack.c.b16 %v4916, %v4908
    %v5613 = vpack.c.b16 %v4917, %v4909
    %v5614 = vpack.c.b16 %v4926, %v4918
    %v5615 = vpack.c.b16 %v4927, %v4919
    %v5616 = vpack.c.b16 %v4928, %v4920
    %v5617 = vpack.c.b16 %v4929, %v4921
    %v5618 = vpack.c.b16 %v4930, %v4922
    %v5619 = vpack.c.b16 %v4931, %v4923
    %v5620 = vpack.c.b16 %v4932, %v4924
    %v5621 = vpack.c.b16 %v4933, %v4925
    %v5622 = vpack.c.b16 %v4942, %v4934
    %v5623 = vpack.c.b16 %v4943, %v4935
    %v5624 = vpack.c.b16 %v4944, %v4936
    %v5625 = vpack.c.b16 %v4945, %v4937
    %v5626 = vpack.c.b16 %v4946, %v4938
    %v5627 = vpack.c.b16 %v4947, %v4939
    %v5628 = vpack.c.b16 %v4948, %v4940
    %v5629 = vpack.c.b16 %v4949, %v4941
    %v5630 = vpack.c.b16 %v4958, %v4950
    %v5631 = vpack.c.b16 %v4959, %v4951
    %v5632 = vpack.c.b16 %v4960, %v4952
    %v5633 = vpack.c.b16 %v4961, %v4953
    %v5634 = vpack.c.b16 %v4962, %v4954
    %v5635 = vpack.c.b16 %v4963, %v4955
    %v5636 = vpack.c.b16 %v4964, %v4956
    %v5637 = vpack.c.b16 %v4965, %v4957
    %v5638 = vpack.c.b16 %v4974, %v4966
    %v5639 = vpack.c.b16 %v4975, %v4967
    %v5640 = vpack.c.b16 %v4976, %v4968
    %v5641 = vpack.c.b16 %v4977, %v4969
    %v5642 = vpack.c.b16 %v4978, %v4970
    %v5643 = vpack.c.b16 %v4979, %v4971
    %v5644 = vpack.c.b16 %v4980, %v4972
    %v5645 = vpack.c.b16 %v4981, %v4973
    %v5646 = vpack.c.b16 %v4990, %v4982
    %v5647 = vpack.c.b16 %v4991, %v4983
    %v5648 = vpack.c.b16 %v4992, %v4984
    %v5649 = vpack.c.b16 %v4993, %v4985
    %v5650 = vpack.c.b16 %v4994, %v4986
    %v5651 = vpack.c.b16 %v4995, %v4987
    %v5652 = vpack.c.b16 %v4996, %v4988
    %v5653 = vpack.c.b16 %v4997, %v4989
    %v5654 = vpack.c.b16 %v5006, %v4998
    %v5655 = vpack.c.b16 %v5007, %v4999
    %v5656 = vpack.c.b16 %v5008, %v5000
    %v5657 = vpack.c.b16 %v5009, %v5001
    %v5658 = vpack.c.b16 %v5010, %v5002
    %v5659 = vpack.c.b16 %v5011, %v5003
    %v5660 = vpack.c.b16 %v5012, %v5004
    %v5661 = vpack.c.b16 %v5013, %v5005
    %v5662 = vpack.c.b16 %v5022, %v5014
    %v5663 = vpack.c.b16 %v5023, %v5015
    %v5664 = vpack.c.b16 %v5024, %v5016
    %v5665 = vpack.c.b16 %v5025, %v5017
    %v5666 = vpack.c.b16 %v5026, %v5018
    %v5667 = vpack.c.b16 %v5027, %v5019
    %v5668 = vpack.c.b16 %v5028, %v5020
    %v5669 = vpack.c.b16 %v5029, %v5021
    %v5670 = vpack.c.b16 %v5038, %v5030
    %v5671 = vpack.c.b16 %v5039, %v5031
    %v5672 = vpack.c.b16 %v5040, %v5032
    %v5673 = vpack.c.b16 %v5041, %v5033
    %v5674 = vpack.c.b16 %v5042, %v5034
    %v5675 = vpack.c.b16 %v5043, %v5035
    %v5676 = vpack.c.b16 %v5044, %v5036
    %v5677 = vpack.c.b16 %v5045, %v5037
    %v5678 = vpack.c.b16 %v5054, %v5046
    %v5679 = vpack.c.b16 %v5055, %v5047
    %v5680 = vpack.c.b16 %v5056, %v5048
    %v5681 = vpack.c.b16 %v5057, %v5049
    %v5682 = vpack.c.b16 %v5058, %v5050
    %v5683 = vpack.c.b16 %v5059, %v5051
    %v5684 = vpack.c.b16 %v5060, %v5052
    %v5685 = vpack.c.b16 %v5061, %v5053
    %v5686 = vpack.c.b16 %v5070, %v5062
    %v5687 = vpack.c.b16 %v5071, %v5063
    %v5688 = vpack.c.b16 %v5072, %v5064
    %v5689 = vpack.c.b16 %v5073, %v5065
    %v5690 = vpack.c.b16 %v5074, %v5066
    %v5691 = vpack.c.b16 %v5075, %v5067
    %v5692 = vpack.c.b16 %v5076, %v5068
    %v5693 = vpack.c.b16 %v5077, %v5069
    %v5694 = vpack.c.b16 %v5086, %v5078
    %v5695 = vpack.c.b16 %v5087, %v5079
    %v5696 = vpack.c.b16 %v5088, %v5080
    %v5697 = vpack.c.b16 %v5089, %v5081
    %v5698 = vpack.c.b16 %v5090, %v5082
    %v5699 = vpack.c.b16 %v5091, %v5083
    %v5700 = vpack.c.b16 %v5092, %v5084
    %v5701 = vpack.c.b16 %v5093, %v5085
    %v5702 = vpack.c.b16 %v5102, %v5094
    %v5703 = vpack.c.b16 %v5103, %v5095
    %v5704 = vpack.c.b16 %v5104, %v5096
    %v5705 = vpack.c.b16 %v5105, %v5097
    %v5706 = vpack.c.b16 %v5106, %v5098
    %v5707 = vpack.c.b16 %v5107, %v5099
    %v5708 = vpack.c.b16 %v5108, %v5100
    %v5709 = vpack.c.b16 %v5109, %v5101
    %v5710 = vpack.c.b16 %v5118, %v5110
    %v5711 = vpack.c.b16 %v5119, %v5111
    %v5712 = vpack.c.b16 %v5120, %v5112
    %v5713 = vpack.c.b16 %v5121, %v5113
    %v5714 = vpack.c.b16 %v5122, %v5114
    %v5715 = vpack.c.b16 %v5123, %v5115
    %v5716 = vpack.c.b16 %v5124, %v5116
    %v5717 = vpack.c.b16 %v5125, %v5117
    %v5718 = vpack.c.b16 %v5134, %v5126
    %v5719 = vpack.c.b16 %v5135, %v5127
    %v5720 = vpack.c.b16 %v5136, %v5128
    %v5721 = vpack.c.b16 %v5137, %v5129
    %v5722 = vpack.c.b16 %v5138, %v5130
    %v5723 = vpack.c.b16 %v5139, %v5131
    %v5724 = vpack.c.b16 %v5140, %v5132
    %v5725 = vpack.c.b16 %v5141, %v5133
    %v5726 = vpack.c.b16 %v5150, %v5142
    %v5727 = vpack.c.b16 %v5151, %v5143
    %v5728 = vpack.c.b16 %v5152, %v5144
    %v5729 = vpack.c.b16 %v5153, %v5145
    %v5730 = vpack.c.b16 %v5154, %v5146
    %v5731 = vpack.c.b16 %v5155, %v5147
    %v5732 = vpack.c.b16 %v5156, %v5148
    %v5733 = vpack.c.b16 %v5157, %v5149
    %v5734 = vpack.c.b16 %v5166, %v5158
    %v5735 = vpack.c.b16 %v5167, %v5159
    %v5736 = vpack.c.b16 %v5168, %v5160
    %v5737 = vpack.c.b16 %v5169, %v5161
    %v5738 = vpack.c.b16 %v5170, %v5162
    %v5739 = vpack.c.b16 %v5171, %v5163
    %v5740 = vpack.c.b16 %v5172, %v5164
    %v5741 = vpack.c.b16 %v5173, %v5165
    %v5742 = vpack.c.b16 %v5182, %v5174
    %v5743 = vpack.c.b16 %v5183, %v5175
    %v5744 = vpack.c.b16 %v5184, %v5176
    %v5745 = vpack.c.b16 %v5185, %v5177
    %v5746 = vpack.c.b16 %v5186, %v5178
    %v5747 = vpack.c.b16 %v5187, %v5179
    %v5748 = vpack.c.b16 %v5188, %v5180
    %v5749 = vpack.c.b16 %v5189, %v5181
    %v5750 = vpack.c.b16 %v5198, %v5190
    %v5751 = vpack.c.b16 %v5199, %v5191
    %v5752 = vpack.c.b16 %v5200, %v5192
    %v5753 = vpack.c.b16 %v5201, %v5193
    %v5754 = vpack.c.b16 %v5202, %v5194
    %v5755 = vpack.c.b16 %v5203, %v5195
    %v5756 = vpack.c.b16 %v5204, %v5196
    %v5757 = vpack.c.b16 %v5205, %v5197
    %v5758 = vpack.c.b16 %v5214, %v5206
    %v5759 = vpack.c.b16 %v5215, %v5207
    %v5760 = vpack.c.b16 %v5216, %v5208
    %v5761 = vpack.c.b16 %v5217, %v5209
    %v5762 = vpack.c.b16 %v5218, %v5210
    %v5763 = vpack.c.b16 %v5219, %v5211
    %v5764 = vpack.c.b16 %v5220, %v5212
    %v5765 = vpack.c.b16 %v5221, %v5213
    %v5766 = vpack.c.b16 %v5230, %v5222
    %v5767 = vpack.c.b16 %v5231, %v5223
    %v5768 = vpack.c.b16 %v5232, %v5224
    %v5769 = vpack.c.b16 %v5233, %v5225
    %v5770 = vpack.c.b16 %v5234, %v5226
    %v5771 = vpack.c.b16 %v5235, %v5227
    %v5772 = vpack.c.b16 %v5236, %v5228
    %v5773 = vpack.c.b16 %v5237, %v5229
    %v5774 = vpack.c.b16 %v5246, %v5238
    %v5775 = vpack.c.b16 %v5247, %v5239
    %v5776 = vpack.c.b16 %v5248, %v5240
    %v5777 = vpack.c.b16 %v5249, %v5241
    %v5778 = vpack.c.b16 %v5250, %v5242
    %v5779 = vpack.c.b16 %v5251, %v5243
    %v5780 = vpack.c.b16 %v5252, %v5244
    %v5781 = vpack.c.b16 %v5253, %v5245
    %v5782 = vpack.c.b16 %v5262, %v5254
    %v5783 = vpack.c.b16 %v5263, %v5255
    %v5784 = vpack.c.b16 %v5264, %v5256
    %v5785 = vpack.c.b16 %v5265, %v5257
    %v5786 = vpack.c.b16 %v5266, %v5258
    %v5787 = vpack.c.b16 %v5267, %v5259
    %v5788 = vpack.c.b16 %v5268, %v5260
    %v5789 = vpack.c.b16 %v5269, %v5261
    %v5790 = vpack.c.b16 %v5278, %v5270
    %v5791 = vpack.c.b16 %v5279, %v5271
    %v5792 = vpack.c.b16 %v5280, %v5272
    %v5793 = vpack.c.b16 %v5281, %v5273
    %v5794 = vpack.c.b16 %v5282, %v5274
    %v5795 = vpack.c.b16 %v5283, %v5275
    %v5796 = vpack.c.b16 %v5284, %v5276
    %v5797 = vpack.c.b16 %v5285, %v5277
    %6310 = vmatprep.subr.bf16.mxu0 %v5343
    %6311 = vmatpush1.bf16.msra.mxu0 %v5342
    %6312 = vmatprep.subr.bf16.mxu0 %v5335
    %6313 = vmatpush1.bf16.msra.mxu0 %v5334
    %6314 = vmatprep.subr.bf16.mxu0 %v5327
    %6315 = vmatpush1.bf16.msra.mxu0 %v5326
    %6316 = vmatprep.subr.bf16.mxu0 %v5319
    %6317 = vmatpush1.bf16.msra.mxu0 %v5318
    %6318 = vmatprep.subr.bf16.mxu0 %v5311
    %6319 = vmatpush1.bf16.msra.mxu0 %v5310
    %6320 = vmatprep.subr.bf16.mxu0 %v5303
    %6321 = vmatpush1.bf16.msra.mxu0 %v5302
    %6322 = vmatprep.subr.bf16.mxu0 %v5295
    %6323 = vmatpush1.bf16.msra.mxu0 %v5294
    %6324 = vmatprep.subr.bf16.mxu0 %v5287
    %6325 = vmatpush1.bf16.msra.mxu0 %v5286
    %6326 = vmatprep.subr.bf16.mxu0 %v5407
    %6327 = vmatpush2.bf16.msra.mxu0 %v5406
    %6328 = vmatprep.subr.bf16.mxu0 %v5399
    %6329 = vmatpush2.bf16.msra.mxu0 %v5398
    %6330 = vmatprep.subr.bf16.mxu0 %v5391
    %6331 = vmatpush2.bf16.msra.mxu0 %v5390
    %6332 = vmatprep.subr.bf16.mxu0 %v5383
    %6333 = vmatpush2.bf16.msra.mxu0 %v5382
    %6334 = vmatprep.subr.bf16.mxu0 %v5375
    %6335 = vmatpush2.bf16.msra.mxu0 %v5374
    %6336 = vmatprep.subr.bf16.mxu0 %v5367
    %6337 = vmatpush2.bf16.msra.mxu0 %v5366
    %6338 = vmatprep.subr.bf16.mxu0 %v5359
    %6339 = vmatpush2.bf16.msra.mxu0 %v5358
    %6340 = vmatprep.subr.bf16.mxu0 %v5351
    %6341 = vmatpush2.bf16.msra.mxu0 %v5350
    %6342 = vmatprep.mubr.bf16.mxu0 %v3190
    %6343 = vmatmul.mubr.bf16.gmra.mxu0 %v3189
    %v6344 = vpop.f32.mrf.mxu0
    %v6345 = vadd.f32 %v3713, %v6344
    %v6346 = vpop.f32.mrf.mxu0
    %v6347 = vadd.f32 %v3717, %v6346
    %v6348 = vpop.f32.mrf.mxu0
    %v6349 = vpop.f32.mrf.mxu0
    %6350 = vdwg.mxu0
    %6351 = vmatprep.subr.bf16.mxu0 %v5471
    %6352 = vmatpush1.bf16.msra.mxu0 %v5470
    %6353 = vmatprep.subr.bf16.mxu0 %v5463
    %6354 = vmatpush1.bf16.msra.mxu0 %v5462
    %6355 = vmatprep.subr.bf16.mxu0 %v5455
    %6356 = vmatpush1.bf16.msra.mxu0 %v5454
    %6357 = vmatprep.subr.bf16.mxu0 %v5447
    %6358 = vmatpush1.bf16.msra.mxu0 %v5446
    %6359 = vmatprep.subr.bf16.mxu0 %v5439
    %6360 = vmatpush1.bf16.msra.mxu0 %v5438
    %6361 = vmatprep.subr.bf16.mxu0 %v5431
    %6362 = vmatpush1.bf16.msra.mxu0 %v5430
    %6363 = vmatprep.subr.bf16.mxu0 %v5423
    %6364 = vmatpush1.bf16.msra.mxu0 %v5422
    %6365 = vmatprep.subr.bf16.mxu0 %v5415
    %6366 = vmatpush1.bf16.msra.mxu0 %v5414
    %6367 = vmatprep.subr.bf16.mxu0 %v5535
    %6368 = vmatpush2.bf16.msra.mxu0 %v5534
    %6369 = vmatprep.subr.bf16.mxu0 %v5527
    %6370 = vmatpush2.bf16.msra.mxu0 %v5526
    %6371 = vmatprep.subr.bf16.mxu0 %v5519
    %6372 = vmatpush2.bf16.msra.mxu0 %v5518
    %6373 = vmatprep.subr.bf16.mxu0 %v5511
    %6374 = vmatpush2.bf16.msra.mxu0 %v5510
    %6375 = vmatprep.subr.bf16.mxu0 %v5503
    %6376 = vmatpush2.bf16.msra.mxu0 %v5502
    %6377 = vmatprep.subr.bf16.mxu0 %v5495
    %6378 = vmatpush2.bf16.msra.mxu0 %v5494
    %6379 = vmatprep.subr.bf16.mxu0 %v5487
    %6380 = vmatpush2.bf16.msra.mxu0 %v5486
    %6381 = vmatprep.subr.bf16.mxu0 %v5479
    %6382 = vmatpush2.bf16.msra.mxu0 %v5478
    %6383 = vmatprep.mubr.bf16.mxu0 %v3192
    %6384 = vmatmul.mubr.bf16.gmra.mxu0 %v3191
    %v6385 = vpop.f32.mrf.mxu0
    %v6386 = vadd.f32 %v6345, %v6385
    %v6387 = vpop.f32.mrf.mxu0
    %v6388 = vadd.f32 %v6347, %v6387
    %v6389 = vpop.f32.mrf.mxu0
    %v6390 = vpop.f32.mrf.mxu0
    %6391 = vdwg.mxu0
    %6392 = vmatprep.subr.bf16.mxu0 %v5599
    %6393 = vmatpush1.bf16.msra.mxu0 %v5598
    %6394 = vmatprep.subr.bf16.mxu0 %v5591
    %6395 = vmatpush1.bf16.msra.mxu0 %v5590
    %6396 = vmatprep.subr.bf16.mxu0 %v5583
    %6397 = vmatpush1.bf16.msra.mxu0 %v5582
    %6398 = vmatprep.subr.bf16.mxu0 %v5575
    %6399 = vmatpush1.bf16.msra.mxu0 %v5574
    %6400 = vmatprep.subr.bf16.mxu0 %v5567
    %6401 = vmatpush1.bf16.msra.mxu0 %v5566
    %6402 = vmatprep.subr.bf16.mxu0 %v5559
    %6403 = vmatpush1.bf16.msra.mxu0 %v5558
    %6404 = vmatprep.subr.bf16.mxu0 %v5551
    %6405 = vmatpush1.bf16.msra.mxu0 %v5550
    %6406 = vmatprep.subr.bf16.mxu0 %v5543
    %6407 = vmatpush1.bf16.msra.mxu0 %v5542
    %6408 = vmatprep.subr.bf16.mxu0 %v5663
    %6409 = vmatpush2.bf16.msra.mxu0 %v5662
    %6410 = vmatprep.subr.bf16.mxu0 %v5655
    %6411 = vmatpush2.bf16.msra.mxu0 %v5654
    %6412 = vmatprep.subr.bf16.mxu0 %v5647
    %6413 = vmatpush2.bf16.msra.mxu0 %v5646
    %6414 = vmatprep.subr.bf16.mxu0 %v5639
    %6415 = vmatpush2.bf16.msra.mxu0 %v5638
    %6416 = vmatprep.subr.bf16.mxu0 %v5631
    %6417 = vmatpush2.bf16.msra.mxu0 %v5630
    %6418 = vmatprep.subr.bf16.mxu0 %v5623
    %6419 = vmatpush2.bf16.msra.mxu0 %v5622
    %6420 = vmatprep.subr.bf16.mxu0 %v5615
    %6421 = vmatpush2.bf16.msra.mxu0 %v5614
    %6422 = vmatprep.subr.bf16.mxu0 %v5607
    %6423 = vmatpush2.bf16.msra.mxu0 %v5606
    %6424 = vmatprep.mubr.bf16.mxu0 %v3194
    %6425 = vmatmul.mubr.bf16.gmra.mxu0 %v3193
    %v6426 = vpop.f32.mrf.mxu0
    %v6427 = vadd.f32 %v6386, %v6426
    %v6428 = vpop.f32.mrf.mxu0
    %v6429 = vadd.f32 %v6388, %v6428
    %v6430 = vpop.f32.mrf.mxu0
    %v6431 = vpop.f32.mrf.mxu0
    %6432 = vdwg.mxu0
    %6433 = vmatprep.subr.bf16.mxu0 %v5727
    %6434 = vmatpush1.bf16.msra.mxu0 %v5726
    %6435 = vmatprep.subr.bf16.mxu0 %v5719
    %6436 = vmatpush1.bf16.msra.mxu0 %v5718
    %6437 = vmatprep.subr.bf16.mxu0 %v5711
    %6438 = vmatpush1.bf16.msra.mxu0 %v5710
    %6439 = vmatprep.subr.bf16.mxu0 %v5703
    %6440 = vmatpush1.bf16.msra.mxu0 %v5702
    %6441 = vmatprep.subr.bf16.mxu0 %v5695
    %6442 = vmatpush1.bf16.msra.mxu0 %v5694
    %6443 = vmatprep.subr.bf16.mxu0 %v5687
    %6444 = vmatpush1.bf16.msra.mxu0 %v5686
    %6445 = vmatprep.subr.bf16.mxu0 %v5679
    %6446 = vmatpush1.bf16.msra.mxu0 %v5678
    %6447 = vmatprep.subr.bf16.mxu0 %v5671
    %6448 = vmatpush1.bf16.msra.mxu0 %v5670
    %6449 = vmatprep.subr.bf16.mxu0 %v5791
    %6450 = vmatpush2.bf16.msra.mxu0 %v5790
    %6451 = vmatprep.subr.bf16.mxu0 %v5783
    %6452 = vmatpush2.bf16.msra.mxu0 %v5782
    %6453 = vmatprep.subr.bf16.mxu0 %v5775
    %6454 = vmatpush2.bf16.msra.mxu0 %v5774
    %6455 = vmatprep.subr.bf16.mxu0 %v5767
    %6456 = vmatpush2.bf16.msra.mxu0 %v5766
    %6457 = vmatprep.subr.bf16.mxu0 %v5759
    %6458 = vmatpush2.bf16.msra.mxu0 %v5758
    %6459 = vmatprep.subr.bf16.mxu0 %v5751
    %6460 = vmatpush2.bf16.msra.mxu0 %v5750
    %6461 = vmatprep.subr.bf16.mxu0 %v5743
    %6462 = vmatpush2.bf16.msra.mxu0 %v5742
    %6463 = vmatprep.subr.bf16.mxu0 %v5735
    %6464 = vmatpush2.bf16.msra.mxu0 %v5734
    %6465 = vmatprep.mubr.bf16.mxu0 %v3196
    %6466 = vmatmul.mubr.bf16.gmra.mxu0 %v3195
    %v6467 = vpop.f32.mrf.mxu0
    %v6468 = vadd.f32 %v6427, %v6467
    %v6469 = vpop.f32.mrf.mxu0
    %v6470 = vadd.f32 %v6429, %v6469
    %v6471 = vpop.f32.mrf.mxu0
    %v6472 = vpop.f32.mrf.mxu0
    %6473 = vdwg.mxu0
    %6474 = vmatprep.subr.bf16.mxu0 %v5345
    %6475 = vmatpush1.bf16.msra.mxu0 %v5344
    %6476 = vmatprep.subr.bf16.mxu0 %v5337
    %6477 = vmatpush1.bf16.msra.mxu0 %v5336
    %6478 = vmatprep.subr.bf16.mxu0 %v5329
    %6479 = vmatpush1.bf16.msra.mxu0 %v5328
    %6480 = vmatprep.subr.bf16.mxu0 %v5321
    %6481 = vmatpush1.bf16.msra.mxu0 %v5320
    %6482 = vmatprep.subr.bf16.mxu0 %v5313
    %6483 = vmatpush1.bf16.msra.mxu0 %v5312
    %6484 = vmatprep.subr.bf16.mxu0 %v5305
    %6485 = vmatpush1.bf16.msra.mxu0 %v5304
    %6486 = vmatprep.subr.bf16.mxu0 %v5297
    %6487 = vmatpush1.bf16.msra.mxu0 %v5296
    %6488 = vmatprep.subr.bf16.mxu0 %v5289
    %6489 = vmatpush1.bf16.msra.mxu0 %v5288
    %6490 = vmatprep.subr.bf16.mxu0 %v5409
    %6491 = vmatpush2.bf16.msra.mxu0 %v5408
    %6492 = vmatprep.subr.bf16.mxu0 %v5401
    %6493 = vmatpush2.bf16.msra.mxu0 %v5400
    %6494 = vmatprep.subr.bf16.mxu0 %v5393
    %6495 = vmatpush2.bf16.msra.mxu0 %v5392
    %6496 = vmatprep.subr.bf16.mxu0 %v5385
    %6497 = vmatpush2.bf16.msra.mxu0 %v5384
    %6498 = vmatprep.subr.bf16.mxu0 %v5377
    %6499 = vmatpush2.bf16.msra.mxu0 %v5376
    %6500 = vmatprep.subr.bf16.mxu0 %v5369
    %6501 = vmatpush2.bf16.msra.mxu0 %v5368
    %6502 = vmatprep.subr.bf16.mxu0 %v5361
    %6503 = vmatpush2.bf16.msra.mxu0 %v5360
    %6504 = vmatprep.subr.bf16.mxu0 %v5353
    %6505 = vmatpush2.bf16.msra.mxu0 %v5352
    %6506 = vmatprep.mubr.bf16.mxu0 %v3190
    %6507 = vmatmul.mubr.bf16.gmra.mxu0 %v3189
    %v6508 = vpop.f32.mrf.mxu0
    %v6509 = vadd.f32 %v3721, %v6508
    %v6510 = vpop.f32.mrf.mxu0
    %v6511 = vadd.f32 %v3725, %v6510
    %v6512 = vpop.f32.mrf.mxu0
    %v6513 = vpop.f32.mrf.mxu0
    %6514 = vdwg.mxu0
    %6515 = vmatprep.subr.bf16.mxu0 %v5473
    %6516 = vmatpush1.bf16.msra.mxu0 %v5472
    %6517 = vmatprep.subr.bf16.mxu0 %v5465
    %6518 = vmatpush1.bf16.msra.mxu0 %v5464
    %6519 = vmatprep.subr.bf16.mxu0 %v5457
    %6520 = vmatpush1.bf16.msra.mxu0 %v5456
    %6521 = vmatprep.subr.bf16.mxu0 %v5449
    %6522 = vmatpush1.bf16.msra.mxu0 %v5448
    %6523 = vmatprep.subr.bf16.mxu0 %v5441
    %6524 = vmatpush1.bf16.msra.mxu0 %v5440
    %6525 = vmatprep.subr.bf16.mxu0 %v5433
    %6526 = vmatpush1.bf16.msra.mxu0 %v5432
    %6527 = vmatprep.subr.bf16.mxu0 %v5425
    %6528 = vmatpush1.bf16.msra.mxu0 %v5424
    %6529 = vmatprep.subr.bf16.mxu0 %v5417
    %6530 = vmatpush1.bf16.msra.mxu0 %v5416
    %6531 = vmatprep.subr.bf16.mxu0 %v5537
    %6532 = vmatpush2.bf16.msra.mxu0 %v5536
    %6533 = vmatprep.subr.bf16.mxu0 %v5529
    %6534 = vmatpush2.bf16.msra.mxu0 %v5528
    %6535 = vmatprep.subr.bf16.mxu0 %v5521
    %6536 = vmatpush2.bf16.msra.mxu0 %v5520
    %6537 = vmatprep.subr.bf16.mxu0 %v5513
    %6538 = vmatpush2.bf16.msra.mxu0 %v5512
    %6539 = vmatprep.subr.bf16.mxu0 %v5505
    %6540 = vmatpush2.bf16.msra.mxu0 %v5504
    %6541 = vmatprep.subr.bf16.mxu0 %v5497
    %6542 = vmatpush2.bf16.msra.mxu0 %v5496
    %6543 = vmatprep.subr.bf16.mxu0 %v5489
    %6544 = vmatpush2.bf16.msra.mxu0 %v5488
    %6545 = vmatprep.subr.bf16.mxu0 %v5481
    %6546 = vmatpush2.bf16.msra.mxu0 %v5480
    %6547 = vmatprep.mubr.bf16.mxu0 %v3192
    %6548 = vmatmul.mubr.bf16.gmra.mxu0 %v3191
    %v6549 = vpop.f32.mrf.mxu0
    %v6550 = vadd.f32 %v6509, %v6549
    %v6551 = vpop.f32.mrf.mxu0
    %v6552 = vadd.f32 %v6511, %v6551
    %v6553 = vpop.f32.mrf.mxu0
    %v6554 = vpop.f32.mrf.mxu0
    %6555 = vdwg.mxu0
    %6556 = vmatprep.subr.bf16.mxu0 %v5601
    %6557 = vmatpush1.bf16.msra.mxu0 %v5600
    %6558 = vmatprep.subr.bf16.mxu0 %v5593
    %6559 = vmatpush1.bf16.msra.mxu0 %v5592
    %6560 = vmatprep.subr.bf16.mxu0 %v5585
    %6561 = vmatpush1.bf16.msra.mxu0 %v5584
    %6562 = vmatprep.subr.bf16.mxu0 %v5577
    %6563 = vmatpush1.bf16.msra.mxu0 %v5576
    %6564 = vmatprep.subr.bf16.mxu0 %v5569
    %6565 = vmatpush1.bf16.msra.mxu0 %v5568
    %6566 = vmatprep.subr.bf16.mxu0 %v5561
    %6567 = vmatpush1.bf16.msra.mxu0 %v5560
    %6568 = vmatprep.subr.bf16.mxu0 %v5553
    %6569 = vmatpush1.bf16.msra.mxu0 %v5552
    %6570 = vmatprep.subr.bf16.mxu0 %v5545
    %6571 = vmatpush1.bf16.msra.mxu0 %v5544
    %6572 = vmatprep.subr.bf16.mxu0 %v5665
    %6573 = vmatpush2.bf16.msra.mxu0 %v5664
    %6574 = vmatprep.subr.bf16.mxu0 %v5657
    %6575 = vmatpush2.bf16.msra.mxu0 %v5656
    %6576 = vmatprep.subr.bf16.mxu0 %v5649
    %6577 = vmatpush2.bf16.msra.mxu0 %v5648
    %6578 = vmatprep.subr.bf16.mxu0 %v5641
    %6579 = vmatpush2.bf16.msra.mxu0 %v5640
    %6580 = vmatprep.subr.bf16.mxu0 %v5633
    %6581 = vmatpush2.bf16.msra.mxu0 %v5632
    %6582 = vmatprep.subr.bf16.mxu0 %v5625
    %6583 = vmatpush2.bf16.msra.mxu0 %v5624
    %6584 = vmatprep.subr.bf16.mxu0 %v5617
    %6585 = vmatpush2.bf16.msra.mxu0 %v5616
    %6586 = vmatprep.subr.bf16.mxu0 %v5609
    %6587 = vmatpush2.bf16.msra.mxu0 %v5608
    %6588 = vmatprep.mubr.bf16.mxu0 %v3194
    %6589 = vmatmul.mubr.bf16.gmra.mxu0 %v3193
    %v6590 = vpop.f32.mrf.mxu0
    %v6591 = vadd.f32 %v6550, %v6590
    %v6592 = vpop.f32.mrf.mxu0
    %v6593 = vadd.f32 %v6552, %v6592
    %v6594 = vpop.f32.mrf.mxu0
    %v6595 = vpop.f32.mrf.mxu0
    %6596 = vdwg.mxu0
    %6597 = vmatprep.subr.bf16.mxu0 %v5729
    %6598 = vmatpush1.bf16.msra.mxu0 %v5728
    %6599 = vmatprep.subr.bf16.mxu0 %v5721
    %6600 = vmatpush1.bf16.msra.mxu0 %v5720
    %6601 = vmatprep.subr.bf16.mxu0 %v5713
    %6602 = vmatpush1.bf16.msra.mxu0 %v5712
    %6603 = vmatprep.subr.bf16.mxu0 %v5705
    %6604 = vmatpush1.bf16.msra.mxu0 %v5704
    %6605 = vmatprep.subr.bf16.mxu0 %v5697
    %6606 = vmatpush1.bf16.msra.mxu0 %v5696
    %6607 = vmatprep.subr.bf16.mxu0 %v5689
    %6608 = vmatpush1.bf16.msra.mxu0 %v5688
    %6609 = vmatprep.subr.bf16.mxu0 %v5681
    %6610 = vmatpush1.bf16.msra.mxu0 %v5680
    %6611 = vmatprep.subr.bf16.mxu0 %v5673
    %6612 = vmatpush1.bf16.msra.mxu0 %v5672
    %6613 = vmatprep.subr.bf16.mxu0 %v5793
    %6614 = vmatpush2.bf16.msra.mxu0 %v5792
    %6615 = vmatprep.subr.bf16.mxu0 %v5785
    %6616 = vmatpush2.bf16.msra.mxu0 %v5784
    %6617 = vmatprep.subr.bf16.mxu0 %v5777
    %6618 = vmatpush2.bf16.msra.mxu0 %v5776
    %6619 = vmatprep.subr.bf16.mxu0 %v5769
    %6620 = vmatpush2.bf16.msra.mxu0 %v5768
    %6621 = vmatprep.subr.bf16.mxu0 %v5761
    %6622 = vmatpush2.bf16.msra.mxu0 %v5760
    %6623 = vmatprep.subr.bf16.mxu0 %v5753
    %6624 = vmatpush2.bf16.msra.mxu0 %v5752
    %6625 = vmatprep.subr.bf16.mxu0 %v5745
    %6626 = vmatpush2.bf16.msra.mxu0 %v5744
    %6627 = vmatprep.subr.bf16.mxu0 %v5737
    %6628 = vmatpush2.bf16.msra.mxu0 %v5736
    %6629 = vmatprep.mubr.bf16.mxu0 %v3196
    %6630 = vmatmul.mubr.bf16.gmra.mxu0 %v3195
    %v6631 = vpop.f32.mrf.mxu0
    %v6632 = vadd.f32 %v6591, %v6631
    %v6633 = vpop.f32.mrf.mxu0
    %v6634 = vadd.f32 %v6593, %v6633
    %v6635 = vpop.f32.mrf.mxu0
    %v6636 = vpop.f32.mrf.mxu0
    %6637 = vdwg.mxu0
    %6638 = vmatprep.subr.bf16.mxu0 %v5347
    %6639 = vmatpush1.bf16.msra.mxu0 %v5346
    %6640 = vmatprep.subr.bf16.mxu0 %v5339
    %6641 = vmatpush1.bf16.msra.mxu0 %v5338
    %6642 = vmatprep.subr.bf16.mxu0 %v5331
    %6643 = vmatpush1.bf16.msra.mxu0 %v5330
    %6644 = vmatprep.subr.bf16.mxu0 %v5323
    %6645 = vmatpush1.bf16.msra.mxu0 %v5322
    %6646 = vmatprep.subr.bf16.mxu0 %v5315
    %6647 = vmatpush1.bf16.msra.mxu0 %v5314
    %6648 = vmatprep.subr.bf16.mxu0 %v5307
    %6649 = vmatpush1.bf16.msra.mxu0 %v5306
    %6650 = vmatprep.subr.bf16.mxu0 %v5299
    %6651 = vmatpush1.bf16.msra.mxu0 %v5298
    %6652 = vmatprep.subr.bf16.mxu0 %v5291
    %6653 = vmatpush1.bf16.msra.mxu0 %v5290
    %6654 = vmatprep.subr.bf16.mxu0 %v5411
    %6655 = vmatpush2.bf16.msra.mxu0 %v5410
    %6656 = vmatprep.subr.bf16.mxu0 %v5403
    %6657 = vmatpush2.bf16.msra.mxu0 %v5402
    %6658 = vmatprep.subr.bf16.mxu0 %v5395
    %6659 = vmatpush2.bf16.msra.mxu0 %v5394
    %6660 = vmatprep.subr.bf16.mxu0 %v5387
    %6661 = vmatpush2.bf16.msra.mxu0 %v5386
    %6662 = vmatprep.subr.bf16.mxu0 %v5379
    %6663 = vmatpush2.bf16.msra.mxu0 %v5378
    %6664 = vmatprep.subr.bf16.mxu0 %v5371
    %6665 = vmatpush2.bf16.msra.mxu0 %v5370
    %6666 = vmatprep.subr.bf16.mxu0 %v5363
    %6667 = vmatpush2.bf16.msra.mxu0 %v5362
    %6668 = vmatprep.subr.bf16.mxu0 %v5355
    %6669 = vmatpush2.bf16.msra.mxu0 %v5354
    %6670 = vmatprep.mubr.bf16.mxu0 %v3190
    %6671 = vmatmul.mubr.bf16.gmra.mxu0 %v3189
    %v6672 = vpop.f32.mrf.mxu0
    %v6673 = vadd.f32 %v3729, %v6672
    %v6674 = vpop.f32.mrf.mxu0
    %v6675 = vadd.f32 %v3733, %v6674
    %v6676 = vpop.f32.mrf.mxu0
    %v6677 = vpop.f32.mrf.mxu0
    %6678 = vdwg.mxu0
    %6679 = vmatprep.subr.bf16.mxu0 %v5475
    %6680 = vmatpush1.bf16.msra.mxu0 %v5474
    %6681 = vmatprep.subr.bf16.mxu0 %v5467
    %6682 = vmatpush1.bf16.msra.mxu0 %v5466
    %6683 = vmatprep.subr.bf16.mxu0 %v5459
    %6684 = vmatpush1.bf16.msra.mxu0 %v5458
    %6685 = vmatprep.subr.bf16.mxu0 %v5451
    %6686 = vmatpush1.bf16.msra.mxu0 %v5450
    %6687 = vmatprep.subr.bf16.mxu0 %v5443
    %6688 = vmatpush1.bf16.msra.mxu0 %v5442
    %6689 = vmatprep.subr.bf16.mxu0 %v5435
    %6690 = vmatpush1.bf16.msra.mxu0 %v5434
    %6691 = vmatprep.subr.bf16.mxu0 %v5427
    %6692 = vmatpush1.bf16.msra.mxu0 %v5426
    %6693 = vmatprep.subr.bf16.mxu0 %v5419
    %6694 = vmatpush1.bf16.msra.mxu0 %v5418
    %6695 = vmatprep.subr.bf16.mxu0 %v5539
    %6696 = vmatpush2.bf16.msra.mxu0 %v5538
    %6697 = vmatprep.subr.bf16.mxu0 %v5531
    %6698 = vmatpush2.bf16.msra.mxu0 %v5530
    %6699 = vmatprep.subr.bf16.mxu0 %v5523
    %6700 = vmatpush2.bf16.msra.mxu0 %v5522
    %6701 = vmatprep.subr.bf16.mxu0 %v5515
    %6702 = vmatpush2.bf16.msra.mxu0 %v5514
    %6703 = vmatprep.subr.bf16.mxu0 %v5507
    %6704 = vmatpush2.bf16.msra.mxu0 %v5506
    %6705 = vmatprep.subr.bf16.mxu0 %v5499
    %6706 = vmatpush2.bf16.msra.mxu0 %v5498
    %6707 = vmatprep.subr.bf16.mxu0 %v5491
    %6708 = vmatpush2.bf16.msra.mxu0 %v5490
    %6709 = vmatprep.subr.bf16.mxu0 %v5483
    %6710 = vmatpush2.bf16.msra.mxu0 %v5482
    %6711 = vmatprep.mubr.bf16.mxu0 %v3192
    %6712 = vmatmul.mubr.bf16.gmra.mxu0 %v3191
    %v6713 = vpop.f32.mrf.mxu0
    %v6714 = vadd.f32 %v6673, %v6713
    %v6715 = vpop.f32.mrf.mxu0
    %v6716 = vadd.f32 %v6675, %v6715
    %v6717 = vpop.f32.mrf.mxu0
    %v6718 = vpop.f32.mrf.mxu0
    %6719 = vdwg.mxu0
    %6720 = vmatprep.subr.bf16.mxu0 %v5603
    %6721 = vmatpush1.bf16.msra.mxu0 %v5602
    %6722 = vmatprep.subr.bf16.mxu0 %v5595
    %6723 = vmatpush1.bf16.msra.mxu0 %v5594
    %6724 = vmatprep.subr.bf16.mxu0 %v5587
    %6725 = vmatpush1.bf16.msra.mxu0 %v5586
    %6726 = vmatprep.subr.bf16.mxu0 %v5579
    %6727 = vmatpush1.bf16.msra.mxu0 %v5578
    %6728 = vmatprep.subr.bf16.mxu0 %v5571
    %6729 = vmatpush1.bf16.msra.mxu0 %v5570
    %6730 = vmatprep.subr.bf16.mxu0 %v5563
    %6731 = vmatpush1.bf16.msra.mxu0 %v5562
    %6732 = vmatprep.subr.bf16.mxu0 %v5555
    %6733 = vmatpush1.bf16.msra.mxu0 %v5554
    %6734 = vmatprep.subr.bf16.mxu0 %v5547
    %6735 = vmatpush1.bf16.msra.mxu0 %v5546
    %6736 = vmatprep.subr.bf16.mxu0 %v5667
    %6737 = vmatpush2.bf16.msra.mxu0 %v5666
    %6738 = vmatprep.subr.bf16.mxu0 %v5659
    %6739 = vmatpush2.bf16.msra.mxu0 %v5658
    %6740 = vmatprep.subr.bf16.mxu0 %v5651
    %6741 = vmatpush2.bf16.msra.mxu0 %v5650
    %6742 = vmatprep.subr.bf16.mxu0 %v5643
    %6743 = vmatpush2.bf16.msra.mxu0 %v5642
    %6744 = vmatprep.subr.bf16.mxu0 %v5635
    %6745 = vmatpush2.bf16.msra.mxu0 %v5634
    %6746 = vmatprep.subr.bf16.mxu0 %v5627
    %6747 = vmatpush2.bf16.msra.mxu0 %v5626
    %6748 = vmatprep.subr.bf16.mxu0 %v5619
    %6749 = vmatpush2.bf16.msra.mxu0 %v5618
    %6750 = vmatprep.subr.bf16.mxu0 %v5611
    %6751 = vmatpush2.bf16.msra.mxu0 %v5610
    %6752 = vmatprep.mubr.bf16.mxu0 %v3194
    %6753 = vmatmul.mubr.bf16.gmra.mxu0 %v3193
    %v6754 = vpop.f32.mrf.mxu0
    %v6755 = vadd.f32 %v6714, %v6754
    %v6756 = vpop.f32.mrf.mxu0
    %v6757 = vadd.f32 %v6716, %v6756
    %v6758 = vpop.f32.mrf.mxu0
    %v6759 = vpop.f32.mrf.mxu0
    %6760 = vdwg.mxu0
    %6761 = vmatprep.subr.bf16.mxu0 %v5731
    %6762 = vmatpush1.bf16.msra.mxu0 %v5730
    %6763 = vmatprep.subr.bf16.mxu0 %v5723
    %6764 = vmatpush1.bf16.msra.mxu0 %v5722
    %6765 = vmatprep.subr.bf16.mxu0 %v5715
    %6766 = vmatpush1.bf16.msra.mxu0 %v5714
    %6767 = vmatprep.subr.bf16.mxu0 %v5707
    %6768 = vmatpush1.bf16.msra.mxu0 %v5706
    %6769 = vmatprep.subr.bf16.mxu0 %v5699
    %6770 = vmatpush1.bf16.msra.mxu0 %v5698
    %6771 = vmatprep.subr.bf16.mxu0 %v5691
    %6772 = vmatpush1.bf16.msra.mxu0 %v5690
    %6773 = vmatprep.subr.bf16.mxu0 %v5683
    %6774 = vmatpush1.bf16.msra.mxu0 %v5682
    %6775 = vmatprep.subr.bf16.mxu0 %v5675
    %6776 = vmatpush1.bf16.msra.mxu0 %v5674
    %6777 = vmatprep.subr.bf16.mxu0 %v5795
    %6778 = vmatpush2.bf16.msra.mxu0 %v5794
    %6779 = vmatprep.subr.bf16.mxu0 %v5787
    %6780 = vmatpush2.bf16.msra.mxu0 %v5786
    %6781 = vmatprep.subr.bf16.mxu0 %v5779
    %6782 = vmatpush2.bf16.msra.mxu0 %v5778
    %6783 = vmatprep.subr.bf16.mxu0 %v5771
    %6784 = vmatpush2.bf16.msra.mxu0 %v5770
    %6785 = vmatprep.subr.bf16.mxu0 %v5763
    %6786 = vmatpush2.bf16.msra.mxu0 %v5762
    %6787 = vmatprep.subr.bf16.mxu0 %v5755
    %6788 = vmatpush2.bf16.msra.mxu0 %v5754
    %6789 = vmatprep.subr.bf16.mxu0 %v5747
    %6790 = vmatpush2.bf16.msra.mxu0 %v5746
    %6791 = vmatprep.subr.bf16.mxu0 %v5739
    %6792 = vmatpush2.bf16.msra.mxu0 %v5738
    %6793 = vmatprep.mubr.bf16.mxu0 %v3196
    %6794 = vmatmul.mubr.bf16.gmra.mxu0 %v3195
    %v6795 = vpop.f32.mrf.mxu0
    %v6796 = vadd.f32 %v6755, %v6795
    %v6797 = vpop.f32.mrf.mxu0
    %v6798 = vadd.f32 %v6757, %v6797
    %v6799 = vpop.f32.mrf.mxu0
    %v6800 = vpop.f32.mrf.mxu0
    %6801 = vdwg.mxu0
    %6802 = vmatprep.subr.bf16.mxu0 %v5349
    %6803 = vmatpush1.bf16.msra.mxu0 %v5348
    %6804 = vmatprep.subr.bf16.mxu0 %v5341
    %6805 = vmatpush1.bf16.msra.mxu0 %v5340
    %6806 = vmatprep.subr.bf16.mxu0 %v5333
    %6807 = vmatpush1.bf16.msra.mxu0 %v5332
    %6808 = vmatprep.subr.bf16.mxu0 %v5325
    %6809 = vmatpush1.bf16.msra.mxu0 %v5324
    %6810 = vmatprep.subr.bf16.mxu0 %v5317
    %6811 = vmatpush1.bf16.msra.mxu0 %v5316
    %6812 = vmatprep.subr.bf16.mxu0 %v5309
    %6813 = vmatpush1.bf16.msra.mxu0 %v5308
    %6814 = vmatprep.subr.bf16.mxu0 %v5301
    %6815 = vmatpush1.bf16.msra.mxu0 %v5300
    %6816 = vmatprep.subr.bf16.mxu0 %v5293
    %6817 = vmatpush1.bf16.msra.mxu0 %v5292
    %6818 = vmatprep.subr.bf16.mxu0 %v5413
    %6819 = vmatpush2.bf16.msra.mxu0 %v5412
    %6820 = vmatprep.subr.bf16.mxu0 %v5405
    %6821 = vmatpush2.bf16.msra.mxu0 %v5404
    %6822 = vmatprep.subr.bf16.mxu0 %v5397
    %6823 = vmatpush2.bf16.msra.mxu0 %v5396
    %6824 = vmatprep.subr.bf16.mxu0 %v5389
    %6825 = vmatpush2.bf16.msra.mxu0 %v5388
    %6826 = vmatprep.subr.bf16.mxu0 %v5381
    %6827 = vmatpush2.bf16.msra.mxu0 %v5380
    %6828 = vmatprep.subr.bf16.mxu0 %v5373
    %6829 = vmatpush2.bf16.msra.mxu0 %v5372
    %6830 = vmatprep.subr.bf16.mxu0 %v5365
    %6831 = vmatpush2.bf16.msra.mxu0 %v5364
    %6832 = vmatprep.subr.bf16.mxu0 %v5357
    %6833 = vmatpush2.bf16.msra.mxu0 %v5356
    %6834 = vmatprep.mubr.bf16.mxu0 %v3190
    %6835 = vmatmul.mubr.bf16.gmra.mxu0 %v3189
    %v6836 = vpop.f32.mrf.mxu0
    %v6837 = vadd.f32 %v3737, %v6836
    %v6838 = vpop.f32.mrf.mxu0
    %v6839 = vadd.f32 %v3741, %v6838
    %v6840 = vpop.f32.mrf.mxu0
    %v6841 = vpop.f32.mrf.mxu0
    %6842 = vdwg.mxu0
    %6843 = vmatprep.subr.bf16.mxu0 %v5477
    %6844 = vmatpush1.bf16.msra.mxu0 %v5476
    %6845 = vmatprep.subr.bf16.mxu0 %v5469
    %6846 = vmatpush1.bf16.msra.mxu0 %v5468
    %6847 = vmatprep.subr.bf16.mxu0 %v5461
    %6848 = vmatpush1.bf16.msra.mxu0 %v5460
    %6849 = vmatprep.subr.bf16.mxu0 %v5453
    %6850 = vmatpush1.bf16.msra.mxu0 %v5452
    %6851 = vmatprep.subr.bf16.mxu0 %v5445
    %6852 = vmatpush1.bf16.msra.mxu0 %v5444
    %6853 = vmatprep.subr.bf16.mxu0 %v5437
    %6854 = vmatpush1.bf16.msra.mxu0 %v5436
    %6855 = vmatprep.subr.bf16.mxu0 %v5429
    %6856 = vmatpush1.bf16.msra.mxu0 %v5428
    %6857 = vmatprep.subr.bf16.mxu0 %v5421
    %6858 = vmatpush1.bf16.msra.mxu0 %v5420
    %6859 = vmatprep.subr.bf16.mxu0 %v5541
    %6860 = vmatpush2.bf16.msra.mxu0 %v5540
    %6861 = vmatprep.subr.bf16.mxu0 %v5533
    %6862 = vmatpush2.bf16.msra.mxu0 %v5532
    %6863 = vmatprep.subr.bf16.mxu0 %v5525
    %6864 = vmatpush2.bf16.msra.mxu0 %v5524
    %6865 = vmatprep.subr.bf16.mxu0 %v5517
    %6866 = vmatpush2.bf16.msra.mxu0 %v5516
    %6867 = vmatprep.subr.bf16.mxu0 %v5509
    %6868 = vmatpush2.bf16.msra.mxu0 %v5508
    %6869 = vmatprep.subr.bf16.mxu0 %v5501
    %6870 = vmatpush2.bf16.msra.mxu0 %v5500
    %6871 = vmatprep.subr.bf16.mxu0 %v5493
    %6872 = vmatpush2.bf16.msra.mxu0 %v5492
    %6873 = vmatprep.subr.bf16.mxu0 %v5485
    %6874 = vmatpush2.bf16.msra.mxu0 %v5484
    %6875 = vmatprep.mubr.bf16.mxu0 %v3192
    %6876 = vmatmul.mubr.bf16.gmra.mxu0 %v3191
    %v6877 = vpop.f32.mrf.mxu0
    %v6878 = vadd.f32 %v6837, %v6877
    %v6879 = vpop.f32.mrf.mxu0
    %v6880 = vadd.f32 %v6839, %v6879
    %v6881 = vpop.f32.mrf.mxu0
    %v6882 = vpop.f32.mrf.mxu0
    %6883 = vdwg.mxu0
    %6884 = vmatprep.subr.bf16.mxu0 %v5605
    %6885 = vmatpush1.bf16.msra.mxu0 %v5604
    %6886 = vmatprep.subr.bf16.mxu0 %v5597
    %6887 = vmatpush1.bf16.msra.mxu0 %v5596
    %6888 = vmatprep.subr.bf16.mxu0 %v5589
    %6889 = vmatpush1.bf16.msra.mxu0 %v5588
    %6890 = vmatprep.subr.bf16.mxu0 %v5581
    %6891 = vmatpush1.bf16.msra.mxu0 %v5580
    %6892 = vmatprep.subr.bf16.mxu0 %v5573
    %6893 = vmatpush1.bf16.msra.mxu0 %v5572
    %6894 = vmatprep.subr.bf16.mxu0 %v5565
    %6895 = vmatpush1.bf16.msra.mxu0 %v5564
    %6896 = vmatprep.subr.bf16.mxu0 %v5557
    %6897 = vmatpush1.bf16.msra.mxu0 %v5556
    %6898 = vmatprep.subr.bf16.mxu0 %v5549
    %6899 = vmatpush1.bf16.msra.mxu0 %v5548
    %6900 = vmatprep.subr.bf16.mxu0 %v5669
    %6901 = vmatpush2.bf16.msra.mxu0 %v5668
    %6902 = vmatprep.subr.bf16.mxu0 %v5661
    %6903 = vmatpush2.bf16.msra.mxu0 %v5660
    %6904 = vmatprep.subr.bf16.mxu0 %v5653
    %6905 = vmatpush2.bf16.msra.mxu0 %v5652
    %6906 = vmatprep.subr.bf16.mxu0 %v5645
    %6907 = vmatpush2.bf16.msra.mxu0 %v5644
    %6908 = vmatprep.subr.bf16.mxu0 %v5637
    %6909 = vmatpush2.bf16.msra.mxu0 %v5636
    %6910 = vmatprep.subr.bf16.mxu0 %v5629
    %6911 = vmatpush2.bf16.msra.mxu0 %v5628
    %6912 = vmatprep.subr.bf16.mxu0 %v5621
    %6913 = vmatpush2.bf16.msra.mxu0 %v5620
    %6914 = vmatprep.subr.bf16.mxu0 %v5613
    %6915 = vmatpush2.bf16.msra.mxu0 %v5612
    %6916 = vmatprep.mubr.bf16.mxu0 %v3194
    %6917 = vmatmul.mubr.bf16.gmra.mxu0 %v3193
    %v6918 = vpop.f32.mrf.mxu0
    %v6919 = vadd.f32 %v6878, %v6918
    %v6920 = vpop.f32.mrf.mxu0
    %v6921 = vadd.f32 %v6880, %v6920
    %v6922 = vpop.f32.mrf.mxu0
    %v6923 = vpop.f32.mrf.mxu0
    %6924 = vdwg.mxu0
    %6925 = vmatprep.subr.bf16.mxu0 %v5733
    %6926 = vmatpush1.bf16.msra.mxu0 %v5732
    %6927 = vmatprep.subr.bf16.mxu0 %v5725
    %6928 = vmatpush1.bf16.msra.mxu0 %v5724
    %6929 = vmatprep.subr.bf16.mxu0 %v5717
    %6930 = vmatpush1.bf16.msra.mxu0 %v5716
    %6931 = vmatprep.subr.bf16.mxu0 %v5709
    %6932 = vmatpush1.bf16.msra.mxu0 %v5708
    %6933 = vmatprep.subr.bf16.mxu0 %v5701
    %6934 = vmatpush1.bf16.msra.mxu0 %v5700
    %6935 = vmatprep.subr.bf16.mxu0 %v5693
    %6936 = vmatpush1.bf16.msra.mxu0 %v5692
    %6937 = vmatprep.subr.bf16.mxu0 %v5685
    %6938 = vmatpush1.bf16.msra.mxu0 %v5684
    %6939 = vmatprep.subr.bf16.mxu0 %v5677
    %6940 = vmatpush1.bf16.msra.mxu0 %v5676
    %6941 = vmatprep.subr.bf16.mxu0 %v5797
    %6942 = vmatpush2.bf16.msra.mxu0 %v5796
    %6943 = vmatprep.subr.bf16.mxu0 %v5789
    %6944 = vmatpush2.bf16.msra.mxu0 %v5788
    %6945 = vmatprep.subr.bf16.mxu0 %v5781
    %6946 = vmatpush2.bf16.msra.mxu0 %v5780
    %6947 = vmatprep.subr.bf16.mxu0 %v5773
    %6948 = vmatpush2.bf16.msra.mxu0 %v5772
    %6949 = vmatprep.subr.bf16.mxu0 %v5765
    %6950 = vmatpush2.bf16.msra.mxu0 %v5764
    %6951 = vmatprep.subr.bf16.mxu0 %v5757
    %6952 = vmatpush2.bf16.msra.mxu0 %v5756
    %6953 = vmatprep.subr.bf16.mxu0 %v5749
    %6954 = vmatpush2.bf16.msra.mxu0 %v5748
    %6955 = vmatprep.subr.bf16.mxu0 %v5741
    %6956 = vmatpush2.bf16.msra.mxu0 %v5740
    %6957 = vmatprep.mubr.bf16.mxu0 %v3196
    %6958 = vmatmul.mubr.bf16.gmra.mxu0 %v3195
    %v6959 = vpop.f32.mrf.mxu0
    %v6960 = vadd.f32 %v6919, %v6959
    %v6961 = vpop.f32.mrf.mxu0
    %v6962 = vadd.f32 %v6921, %v6961
    %v6963 = vpop.f32.mrf.mxu0
    %v6964 = vpop.f32.mrf.mxu0
    %6965 = vdwg.mxu0
    %v6966 = vtanh.pop %v6468
    %v6967 = vtanh.pop %v6470
    %v6968 = vtanh.pop %v6632
    %v6969 = vtanh.pop %v6634
    %v6970 = vtanh.pop %v6796
    %v6971 = vtanh.pop %v6798
    %v6972 = vtanh.pop %v6960
    %v6973 = vtanh.pop %v6962
    %6974 = vst [vmem:[%s7] sm:$0xff] %v6966
    %6975 = vst [vmem:[%s7 + $0x8] sm:$0xff] %v6967
    %6976 = vst [vmem:[%s7 + $0x10] sm:$0xff] %v6968
    %6977 = vst [vmem:[%s7 + $0x18] sm:$0xff] %v6969
    %6978 = vst [vmem:[%s7 + $0x20] sm:$0xff] %v6970
    %6979 = vst [vmem:[%s7 + $0x28] sm:$0xff] %v6971
    %6980 = vst [vmem:[%s7 + $0x30] sm:$0xff] %v6972
    %6981 = vst [vmem:[%s7 + $0x38] sm:$0xff] %v6973
    // Predicated region
    $region50: #{generator_forward.1} parent=1 // pred_check
      _
    $region51: #{generator_forward.1} parent=1 // pred_check_branch
      %6983 = sbr.rel (0) target = $region53
    $region52: #{generator_forward.1} parent=1 // pred_region
      _
    $region53: #{generator_forward.1} parent=1 // pred_fallthru
      _
    // Predicated region
    $region54: #{generator_forward.1} parent=1 // pred_check
      _
    $region55: #{generator_forward.1} parent=1 // pred_check_branch
      %6985 = sbr.rel (0) target = $region57
    $region56: #{generator_forward.1} parent=1 // pred_region
      _
    $region57: #{generator_forward.1} parent=1 // pred_fallthru
      _
    %6986 = vsyncpa [#allocation6], 1
    %6987 = vsyncpa [#allocation8], 1
    %6988 = vsyncpa [#allocation11], 1
  %6989 = vsyncmov [#allocation4]
  %s6990 = vpop.sfrf %6989
  %p6991 = scmp.eq.s32.totalorder %s6990, 0
  %p6992 = pneg %p6991
  %6994 = shalt.err (%p6992)
  %s6995 = scalar_lea.sflag [#allocation4], 1
  %6996 = vsyncmov %s6995
  %s6997 = vpop.sfrf %6996
  %p6998 = scmp.eq.s32.totalorder %s6997, 0
  %p6999 = pneg %p6998
  %7001 = shalt.err (%p6999)

</llo_original>
